<compile_context>
chip_gen: v7x
topology: tpu7x:2x2x1
jax: 0.10.0
libtpu: 0.0.40
codegen_flags: <defaults>
</compile_context>

<pallas_src>
import functools

import jax
import jax.numpy as jnp
from jax import lax
from jax.experimental import pallas as pl
from jax.experimental.pallas import tpu as pltpu

EPS = 1e-5      # BatchNorm2d default eps
LANE = 128      # TPU lane width

_CHANNELS = ((3, 32), (32, 64), (64, 128))   # (Cin, Cout) of the three ResBlocks

_VMEM = pl.BlockSpec(memory_space=pltpu.MemorySpace.VMEM)


def _round_up(x, m):
    return ((x + m - 1) // m) * m


# ----------------------------- Pallas kernel ---------------------------------

def _resblock_pool_kernel(xcol_ref, w_ref, gb_ref, out_ref, *, n, ho, wo):
    """Fused Conv(4x4, stride 2) + BatchNorm(batch stats) + ReLU + AvgPool2d(2,2).

    xcol_ref: (P, Kp) bf16   im2col'd activations, P = n*ho*wo rows ordered (n, ho, wo),
                             Kp = 16*Cin padded up to a lane multiple (layer 1 only).
    w_ref:    (Kp, C) bf16   im2col weight matrix (C = Cout, unpadded).
    gb_ref:   (2, C)  f32    rows = (bn gamma, bn beta).  Conv bias is omitted: it is
                             exactly cancelled by the BN mean subtraction.
    out_ref:  (n, ho//2, wo//2, C) f32   pooled activations (NHWC).
    """
    p = n * ho * wo
    c = w_ref.shape[1]
    hq, wq = ho // 2, wo // 2

    # Single full-depth MXU pass (bf16 x bf16 -> f32 accumulate).
    y = jnp.dot(xcol_ref[...], w_ref[...], preferred_element_type=jnp.float32)   # (P, C)

    # Training-mode BatchNorm2d statistics over all N*Ho*Wo positions (one-pass sum / sum-sq).
    inv_p = 1.0 / p
    mean = jnp.sum(y, axis=0, keepdims=True) * inv_p
    ex2 = jnp.sum(y * y, axis=0, keepdims=True) * inv_p
    var = jnp.maximum(ex2 - mean * mean, 0.0)
    inv_std = lax.rsqrt(var + EPS)                      # EUP rsqrt
    scale = gb_ref[0:1, :] * inv_std * 0.25             # fold AvgPool's 1/4 into the affine
    shift = gb_ref[1:2, :] * 0.25 - mean * scale
    y = jnp.maximum(y * scale + shift, 0.0)             # BN + ReLU, f32 epilogue (pre-scaled 1/4)

    # AvgPool2d(2, 2) (floor mode) as a sum over the 2x2 window via even/odd slices; the 1/4
    # factor is already folded into scale/shift, and the AvgPool module's trailing ReLU is a
    # no-op on this non-negative average, so it is omitted.
    y4 = y.reshape(n, ho, wo, c)[:, :2 * hq, :2 * wq, :]
    yr = y4.reshape(n, hq, 2, 2 * wq, c)
    yh = yr[:, :, 0, :, :] + yr[:, :, 1, :, :]           # sum adjacent rows
    yc = yh.reshape(n, hq, wq, 2, c)
    out_ref[...] = yc[:, :, :, 0, :] + yc[:, :, :, 1, :]  # sum adjacent cols


# ------------------------------ host-side glue --------------------------------

def _prepare_layer(w, b, gamma, beta):
    """Reorganize PyTorch Conv2d weights into a single (16*Cin [padded to 128k], Cout)
    im2col matrix whose row order matches the host-side im2col below; pack BN gamma/beta.
    The conv bias `b` is intentionally unused (it is cancelled by the BN mean subtraction)."""
    del b
    cout, cin, _, _ = w.shape                 # (Cout, Cin, 4, 4)
    k = 16 * cin
    kp = _round_up(k, LANE)
    # w[cout, cin, 2*dh+ih, 2*dw+iw] -> wmat[((dh*2+dw)*4 + ih*2+iw)*Cin + cin, cout]
    w6 = w.reshape(cout, cin, 2, 2, 2, 2)     # (cout, cin, dh, ih, dw, iw)
    wmat = w6.transpose(2, 4, 3, 5, 1, 0).reshape(k, cout)
    if kp > k:
        wmat = jnp.pad(wmat, ((0, kp - k), (0, 0)))
    gb = jnp.stack([gamma, beta]).astype(jnp.float32)       # (2, Cout)
    return wmat.astype(jnp.bfloat16), gb


def resblock_avgpool(x_nhwc, wmat, gb):
    """ReflectionPad2d(1) -> Conv2d(cin,cout,4,2,padding=1) -> BN -> ReLU -> AvgPool2d(2,2) -> ReLU."""
    n, h, w, cin = x_nhwc.shape
    kp, cout = wmat.shape

    # bf16 activations for the MXU (cast fuses into the pad/transpose XLA glue).
    xb = x_nhwc.astype(jnp.bfloat16)
    # ReflectionPad2d(1), then Conv2d's implicit zero padding=1.
    xp = jnp.pad(xb, ((0, 0), (1, 1), (1, 1), (0, 0)), mode="reflect")
    xp = jnp.pad(xp, ((0, 0), (1, 1), (1, 1), (0, 0)))
    hs, ws = (h + 4) // 2, (w + 4) // 2

    # Space-to-depth into 2x2 super-pixels (layout plumbing only), channel order (ih, iw, cin).
    xs = xp.reshape(n, hs, 2, ws, 2, cin).transpose(0, 1, 3, 2, 4, 5).reshape(n, hs, ws, 4 * cin)

    # im2col of the 2x2 super-pixel window: the 4x4 stride-2 conv becomes ONE K=16*Cin dot.
    ho, wo = hs - 1, ws - 1                   # conv output spatial size = H/2 + 1
    xcol = jnp.concatenate(
        [xs[:, dh:dh + ho, dw:dw + wo, :] for dh in (0, 1) for dw in (0, 1)], axis=-1)
    if kp > 16 * cin:
        xcol = jnp.pad(xcol, ((0, 0), (0, 0), (0, 0), (0, kp - 16 * cin)))
    xcol = xcol.reshape(n * ho * wo, kp)

    hq, wq = ho // 2, wo // 2                 # avg-pool output spatial size
    kernel = functools.partial(_resblock_pool_kernel, n=n, ho=ho, wo=wo)
    return pl.pallas_call(
        kernel,
        out_shape=jax.ShapeDtypeStruct((n, hq, wq, cout), jnp.float32),
        in_specs=[_VMEM, _VMEM, _VMEM],
        out_specs=_VMEM,
    )(xcol, wmat, gb)


def encoder_forward(x_nchw, prepped):
    y = jnp.transpose(x_nchw, (0, 2, 3, 1))               # NCHW -> NHWC (lane-dense C)
    for wmat, gb in prepped:
        y = resblock_avgpool(y, wmat, gb)
    return jnp.transpose(y, (0, 3, 1, 2))                 # back to NCHW


def init_resblock_params(key, cin, cout):
    # Matches PyTorch Conv2d default init (uniform +/- 1/sqrt(fan_in)); BN: gamma=1, beta=0.
    k_w, k_b = jax.random.split(key)
    fan_in = cin * 4 * 4
    bound = 1.0 / (fan_in ** 0.5)
    w = jax.random.uniform(k_w, (cout, cin, 4, 4), jnp.float32, -bound, bound)
    b = jax.random.uniform(k_b, (cout,), jnp.float32, -bound, bound)   # unused (cancelled by BN)
    gamma = jnp.ones((cout,), jnp.float32)
    beta = jnp.zeros((cout,), jnp.float32)
    return (w, b, gamma, beta)


# ----------------------------------- main ---------------------------------------

if __name__ == "__main__":
    key = jax.random.PRNGKey(0)
    k_x, k1, k2, k3 = jax.random.split(key, 4)

    # Spatial 32 so every stage (incl. ReflectionPad2d on the 2x2 stage-3 input) is valid.
    x = jax.random.normal(k_x, (2, 3, 32, 32), jnp.float32)

    raw_params = [init_resblock_params(k, cin, cout)
                  for k, (cin, cout) in zip((k1, k2, k3), _CHANNELS)]
    prepped = tuple(_prepare_layer(*p) for p in raw_params)

    out = jax.jit(encoder_forward)(x, prepped)
    out = jax.block_until_ready(out)

    expected_shape = (2, 128, 1, 1)
    assert out.shape == expected_shape, (out.shape, expected_shape)
    assert bool(jnp.all(jnp.isfinite(out)))
    print("KERNEL_OK")
</pallas_src>

<mosaic_0001>
module attributes {stable_mosaic.version = 11 : i64} {
  func.func @_resblock_pool_kernel(%arg0: memref<578x128xbf16, #tpu.memory_space<vmem>>, %arg1: memref<128x32xbf16, #tpu.memory_space<vmem>>, %arg2: memref<2x32xf32, #tpu.memory_space<vmem>>, %arg3: memref<2x8x8x32xf32, #tpu.memory_space<vmem>>) attributes {dimension_semantics = [], scalar_prefetch = 0 : i64, scratch_operands = 0 : i64, tpu.core_type = #tpu.core_type<tc>} {
    %c0 = arith.constant 0 : index
    %c0_0 = arith.constant 0 : index
    %0 = vector.load %arg0[%c0, %c0_0] : memref<578x128xbf16, #tpu.memory_space<vmem>>, vector<578x128xbf16>
    %c0_1 = arith.constant 0 : index
    %c0_2 = arith.constant 0 : index
    %1 = vector.load %arg1[%c0_1, %c0_2] : memref<128x32xbf16, #tpu.memory_space<vmem>>, vector<128x32xbf16>
    %cst = arith.constant dense<0.000000e+00> : vector<578x32xf32>
    %2 = tpu.matmul %0, %1, %cst {dimension_numbers = #tpu.dot_dimension_numbers<[1], [0], [0], [1], [0, 0, 1, 1], [], []>} : vector<578x128xbf16>, vector<128x32xbf16>, vector<578x32xf32> -> vector<578x32xf32>
    %cst_3 = arith.constant dense<0.000000e+00> : vector<32xf32>
    %3 = vector.multi_reduction <add>, %2, %cst_3 [0] : vector<578x32xf32> to vector<32xf32>
    %4 = vector.shape_cast %3 : vector<32xf32> to vector<1x32xf32>
    %cst_4 = arith.constant 0.00173010386 : f32
    %5 = vector.broadcast %cst_4 : f32 to vector<1x32xf32>
    %6 = arith.mulf %4, %5 : vector<1x32xf32>
    %7 = arith.mulf %2, %2 : vector<578x32xf32>
    %cst_5 = arith.constant dense<0.000000e+00> : vector<32xf32>
    %8 = vector.multi_reduction <add>, %7, %cst_5 [0] : vector<578x32xf32> to vector<32xf32>
    %9 = vector.shape_cast %8 : vector<32xf32> to vector<1x32xf32>
    %cst_6 = arith.constant 0.00173010386 : f32
    %10 = vector.broadcast %cst_6 : f32 to vector<1x32xf32>
    %11 = arith.mulf %9, %10 : vector<1x32xf32>
    %12 = arith.mulf %6, %6 : vector<1x32xf32>
    %13 = arith.subf %11, %12 : vector<1x32xf32>
    %cst_7 = arith.constant 0.000000e+00 : f32
    %14 = vector.broadcast %cst_7 : f32 to vector<1x32xf32>
    %15 = arith.maximumf %13, %14 : vector<1x32xf32>
    %cst_8 = arith.constant 9.99999974E-6 : f32
    %16 = vector.broadcast %cst_8 : f32 to vector<1x32xf32>
    %17 = arith.addf %15, %16 : vector<1x32xf32>
    %18 = math.rsqrt %17 : vector<1x32xf32>
    %c0_9 = arith.constant 0 : index
    %c0_10 = arith.constant 0 : index
    %19 = vector.load %arg2[%c0_9, %c0_10] : memref<2x32xf32, #tpu.memory_space<vmem>>, vector<1x32xf32>
    %20 = arith.mulf %19, %18 : vector<1x32xf32>
    %cst_11 = arith.constant 2.500000e-01 : f32
    %21 = vector.broadcast %cst_11 : f32 to vector<1x32xf32>
    %22 = arith.mulf %20, %21 : vector<1x32xf32>
    %c1 = arith.constant 1 : index
    %c0_12 = arith.constant 0 : index
    %23 = vector.load %arg2[%c1, %c0_12] : memref<2x32xf32, #tpu.memory_space<vmem>>, vector<1x32xf32>
    %cst_13 = arith.constant 2.500000e-01 : f32
    %24 = vector.broadcast %cst_13 : f32 to vector<1x32xf32>
    %25 = arith.mulf %23, %24 : vector<1x32xf32>
    %26 = arith.mulf %6, %22 : vector<1x32xf32>
    %27 = arith.subf %25, %26 : vector<1x32xf32>
    %28 = vector.broadcast %22 : vector<1x32xf32> to vector<578x32xf32>
    %29 = arith.mulf %2, %28 : vector<578x32xf32>
    %30 = vector.broadcast %27 : vector<1x32xf32> to vector<578x32xf32>
    %31 = arith.addf %29, %30 : vector<578x32xf32>
    %cst_14 = arith.constant 0.000000e+00 : f32
    %32 = vector.broadcast %cst_14 : f32 to vector<578x32xf32>
    %33 = arith.maximumf %31, %32 : vector<578x32xf32>
    %34 = vector.shape_cast %33 : vector<578x32xf32> to vector<2x17x17x32xf32>
    %35 = vector.extract_strided_slice %34 {offsets = [0, 0, 0, 0], sizes = [2, 16, 16, 32], strides = [1, 1, 1, 1]} : vector<2x17x17x32xf32> to vector<2x16x16x32xf32>
    %36 = vector.shape_cast %35 : vector<2x16x16x32xf32> to vector<2x8x2x16x32xf32>
    %37 = vector.extract_strided_slice %36 {offsets = [0, 0, 0, 0, 0], sizes = [2, 8, 1, 16, 32], strides = [1, 1, 1, 1, 1]} : vector<2x8x2x16x32xf32> to vector<2x8x1x16x32xf32>
    %38 = vector.shape_cast %37 : vector<2x8x1x16x32xf32> to vector<2x8x16x32xf32>
    %39 = vector.extract_strided_slice %36 {offsets = [0, 0, 1, 0, 0], sizes = [2, 8, 1, 16, 32], strides = [1, 1, 1, 1, 1]} : vector<2x8x2x16x32xf32> to vector<2x8x1x16x32xf32>
    %40 = vector.shape_cast %39 : vector<2x8x1x16x32xf32> to vector<2x8x16x32xf32>
    %41 = arith.addf %38, %40 : vector<2x8x16x32xf32>
    %42 = vector.shape_cast %41 : vector<2x8x16x32xf32> to vector<2x8x8x2x32xf32>
    %43 = vector.extract_strided_slice %42 {offsets = [0, 0, 0, 0, 0], sizes = [2, 8, 8, 1, 32], strides = [1, 1, 1, 1, 1]} : vector<2x8x8x2x32xf32> to vector<2x8x8x1x32xf32>
    %44 = vector.shape_cast %43 : vector<2x8x8x1x32xf32> to vector<2x8x8x32xf32>
    %45 = vector.extract_strided_slice %42 {offsets = [0, 0, 0, 1, 0], sizes = [2, 8, 8, 1, 32], strides = [1, 1, 1, 1, 1]} : vector<2x8x8x2x32xf32> to vector<2x8x8x1x32xf32>
    %46 = vector.shape_cast %45 : vector<2x8x8x1x32xf32> to vector<2x8x8x32xf32>
    %47 = arith.addf %44, %46 : vector<2x8x8x32xf32>
    %c0_15 = arith.constant 0 : index
    %c0_16 = arith.constant 0 : index
    %c0_17 = arith.constant 0 : index
    %c0_18 = arith.constant 0 : index
    %48 = vector.load %arg3[%c0_15, %c0_16, %c0_17, %c0_18] : memref<2x8x8x32xf32, #tpu.memory_space<vmem>>, vector<2x8x8x32xf32>
    tpu.vector_store %arg3[%c0_15, %c0_16, %c0_17, %c0_18], %47 {strides = array<i32>} : memref<2x8x8x32xf32, #tpu.memory_space<vmem>>, vector<2x8x8x32xf32>,
    return
  }
}

module attributes {stable_mosaic.version = 11 : i64} {
  func.func @_resblock_pool_kernel(%arg0: memref<50x512xbf16, #tpu.memory_space<vmem>>, %arg1: memref<512x64xbf16, #tpu.memory_space<vmem>>, %arg2: memref<2x64xf32, #tpu.memory_space<vmem>>, %arg3: memref<2x2x2x64xf32, #tpu.memory_space<vmem>>) attributes {dimension_semantics = [], scalar_prefetch = 0 : i64, scratch_operands = 0 : i64, tpu.core_type = #tpu.core_type<tc>} {
    %c0 = arith.constant 0 : index
    %c0_0 = arith.constant 0 : index
    %0 = vector.load %arg0[%c0, %c0_0] : memref<50x512xbf16, #tpu.memory_space<vmem>>, vector<50x512xbf16>
    %c0_1 = arith.constant 0 : index
    %c0_2 = arith.constant 0 : index
    %1 = vector.load %arg1[%c0_1, %c0_2] : memref<512x64xbf16, #tpu.memory_space<vmem>>, vector<512x64xbf16>
    %cst = arith.constant dense<0.000000e+00> : vector<50x64xf32>
    %2 = tpu.matmul %0, %1, %cst {dimension_numbers = #tpu.dot_dimension_numbers<[1], [0], [0], [1], [0, 0, 1, 1], [], []>} : vector<50x512xbf16>, vector<512x64xbf16>, vector<50x64xf32> -> vector<50x64xf32>
    %cst_3 = arith.constant dense<0.000000e+00> : vector<64xf32>
    %3 = vector.multi_reduction <add>, %2, %cst_3 [0] : vector<50x64xf32> to vector<64xf32>
    %4 = vector.shape_cast %3 : vector<64xf32> to vector<1x64xf32>
    %cst_4 = arith.constant 2.000000e-02 : f32
    %5 = vector.broadcast %cst_4 : f32 to vector<1x64xf32>
    %6 = arith.mulf %4, %5 : vector<1x64xf32>
    %7 = arith.mulf %2, %2 : vector<50x64xf32>
    %cst_5 = arith.constant dense<0.000000e+00> : vector<64xf32>
    %8 = vector.multi_reduction <add>, %7, %cst_5 [0] : vector<50x64xf32> to vector<64xf32>
    %9 = vector.shape_cast %8 : vector<64xf32> to vector<1x64xf32>
    %cst_6 = arith.constant 2.000000e-02 : f32
    %10 = vector.broadcast %cst_6 : f32 to vector<1x64xf32>
    %11 = arith.mulf %9, %10 : vector<1x64xf32>
    %12 = arith.mulf %6, %6 : vector<1x64xf32>
    %13 = arith.subf %11, %12 : vector<1x64xf32>
    %cst_7 = arith.constant 0.000000e+00 : f32
    %14 = vector.broadcast %cst_7 : f32 to vector<1x64xf32>
    %15 = arith.maximumf %13, %14 : vector<1x64xf32>
    %cst_8 = arith.constant 9.99999974E-6 : f32
    %16 = vector.broadcast %cst_8 : f32 to vector<1x64xf32>
    %17 = arith.addf %15, %16 : vector<1x64xf32>
    %18 = math.rsqrt %17 : vector<1x64xf32>
    %c0_9 = arith.constant 0 : index
    %c0_10 = arith.constant 0 : index
    %19 = vector.load %arg2[%c0_9, %c0_10] : memref<2x64xf32, #tpu.memory_space<vmem>>, vector<1x64xf32>
    %20 = arith.mulf %19, %18 : vector<1x64xf32>
    %cst_11 = arith.constant 2.500000e-01 : f32
    %21 = vector.broadcast %cst_11 : f32 to vector<1x64xf32>
    %22 = arith.mulf %20, %21 : vector<1x64xf32>
    %c1 = arith.constant 1 : index
    %c0_12 = arith.constant 0 : index
    %23 = vector.load %arg2[%c1, %c0_12] : memref<2x64xf32, #tpu.memory_space<vmem>>, vector<1x64xf32>
    %cst_13 = arith.constant 2.500000e-01 : f32
    %24 = vector.broadcast %cst_13 : f32 to vector<1x64xf32>
    %25 = arith.mulf %23, %24 : vector<1x64xf32>
    %26 = arith.mulf %6, %22 : vector<1x64xf32>
    %27 = arith.subf %25, %26 : vector<1x64xf32>
    %28 = vector.broadcast %22 : vector<1x64xf32> to vector<50x64xf32>
    %29 = arith.mulf %2, %28 : vector<50x64xf32>
    %30 = vector.broadcast %27 : vector<1x64xf32> to vector<50x64xf32>
    %31 = arith.addf %29, %30 : vector<50x64xf32>
    %cst_14 = arith.constant 0.000000e+00 : f32
    %32 = vector.broadcast %cst_14 : f32 to vector<50x64xf32>
    %33 = arith.maximumf %31, %32 : vector<50x64xf32>
    %34 = vector.shape_cast %33 : vector<50x64xf32> to vector<2x5x5x64xf32>
    %35 = vector.extract_strided_slice %34 {offsets = [0, 0, 0, 0], sizes = [2, 4, 4, 64], strides = [1, 1, 1, 1]} : vector<2x5x5x64xf32> to vector<2x4x4x64xf32>
    %36 = vector.shape_cast %35 : vector<2x4x4x64xf32> to vector<2x2x2x4x64xf32>
    %37 = vector.extract_strided_slice %36 {offsets = [0, 0, 0, 0, 0], sizes = [2, 2, 1, 4, 64], strides = [1, 1, 1, 1, 1]} : vector<2x2x2x4x64xf32> to vector<2x2x1x4x64xf32>
    %38 = vector.shape_cast %37 : vector<2x2x1x4x64xf32> to vector<2x2x4x64xf32>
    %39 = vector.extract_strided_slice %36 {offsets = [0, 0, 1, 0, 0], sizes = [2, 2, 1, 4, 64], strides = [1, 1, 1, 1, 1]} : vector<2x2x2x4x64xf32> to vector<2x2x1x4x64xf32>
    %40 = vector.shape_cast %39 : vector<2x2x1x4x64xf32> to vector<2x2x4x64xf32>
    %41 = arith.addf %38, %40 : vector<2x2x4x64xf32>
    %42 = vector.shape_cast %41 : vector<2x2x4x64xf32> to vector<2x2x2x2x64xf32>
    %43 = vector.extract_strided_slice %42 {offsets = [0, 0, 0, 0, 0], sizes = [2, 2, 2, 1, 64], strides = [1, 1, 1, 1, 1]} : vector<2x2x2x2x64xf32> to vector<2x2x2x1x64xf32>
    %44 = vector.shape_cast %43 : vector<2x2x2x1x64xf32> to vector<2x2x2x64xf32>
    %45 = vector.extract_strided_slice %42 {offsets = [0, 0, 0, 1, 0], sizes = [2, 2, 2, 1, 64], strides = [1, 1, 1, 1, 1]} : vector<2x2x2x2x64xf32> to vector<2x2x2x1x64xf32>
    %46 = vector.shape_cast %45 : vector<2x2x2x1x64xf32> to vector<2x2x2x64xf32>
    %47 = arith.addf %44, %46 : vector<2x2x2x64xf32>
    %c0_15 = arith.constant 0 : index
    %c0_16 = arith.constant 0 : index
    %c0_17 = arith.constant 0 : index
    %c0_18 = arith.constant 0 : index
    %48 = vector.load %arg3[%c0_15, %c0_16, %c0_17, %c0_18] : memref<2x2x2x64xf32, #tpu.memory_space<vmem>>, vector<2x2x2x64xf32>
    tpu.vector_store %arg3[%c0_15, %c0_16, %c0_17, %c0_18], %47 {strides = array<i32>} : memref<2x2x2x64xf32, #tpu.memory_space<vmem>>, vector<2x2x2x64xf32>,
    return
  }
}

module attributes {stable_mosaic.version = 11 : i64} {
  func.func @_resblock_pool_kernel(%arg0: memref<8x1024xbf16, #tpu.memory_space<vmem>>, %arg1: memref<1024x128xbf16, #tpu.memory_space<vmem>>, %arg2: memref<2x128xf32, #tpu.memory_space<vmem>>, %arg3: memref<2x1x1x128xf32, #tpu.memory_space<vmem>>) attributes {dimension_semantics = [], scalar_prefetch = 0 : i64, scratch_operands = 0 : i64, tpu.core_type = #tpu.core_type<tc>} {
    %c0 = arith.constant 0 : index
    %c0_0 = arith.constant 0 : index
    %0 = vector.load %arg0[%c0, %c0_0] : memref<8x1024xbf16, #tpu.memory_space<vmem>>, vector<8x1024xbf16>
    %c0_1 = arith.constant 0 : index
    %c0_2 = arith.constant 0 : index
    %1 = vector.load %arg1[%c0_1, %c0_2] : memref<1024x128xbf16, #tpu.memory_space<vmem>>, vector<1024x128xbf16>
    %cst = arith.constant dense<0.000000e+00> : vector<8x128xf32>
    %2 = tpu.matmul %0, %1, %cst {dimension_numbers = #tpu.dot_dimension_numbers<[1], [0], [0], [1], [0, 0, 1, 1], [], []>} : vector<8x1024xbf16>, vector<1024x128xbf16>, vector<8x128xf32> -> vector<8x128xf32>
    %cst_3 = arith.constant dense<0.000000e+00> : vector<128xf32>
    %3 = vector.multi_reduction <add>, %2, %cst_3 [0] : vector<8x128xf32> to vector<128xf32>
    %4 = vector.shape_cast %3 : vector<128xf32> to vector<1x128xf32>
    %cst_4 = arith.constant 1.250000e-01 : f32
    %5 = vector.broadcast %cst_4 : f32 to vector<1x128xf32>
    %6 = arith.mulf %4, %5 : vector<1x128xf32>
    %7 = arith.mulf %2, %2 : vector<8x128xf32>
    %cst_5 = arith.constant dense<0.000000e+00> : vector<128xf32>
    %8 = vector.multi_reduction <add>, %7, %cst_5 [0] : vector<8x128xf32> to vector<128xf32>
    %9 = vector.shape_cast %8 : vector<128xf32> to vector<1x128xf32>
    %cst_6 = arith.constant 1.250000e-01 : f32
    %10 = vector.broadcast %cst_6 : f32 to vector<1x128xf32>
    %11 = arith.mulf %9, %10 : vector<1x128xf32>
    %12 = arith.mulf %6, %6 : vector<1x128xf32>
    %13 = arith.subf %11, %12 : vector<1x128xf32>
    %cst_7 = arith.constant 0.000000e+00 : f32
    %14 = vector.broadcast %cst_7 : f32 to vector<1x128xf32>
    %15 = arith.maximumf %13, %14 : vector<1x128xf32>
    %cst_8 = arith.constant 9.99999974E-6 : f32
    %16 = vector.broadcast %cst_8 : f32 to vector<1x128xf32>
    %17 = arith.addf %15, %16 : vector<1x128xf32>
    %18 = math.rsqrt %17 : vector<1x128xf32>
    %c0_9 = arith.constant 0 : index
    %c0_10 = arith.constant 0 : index
    %19 = vector.load %arg2[%c0_9, %c0_10] : memref<2x128xf32, #tpu.memory_space<vmem>>, vector<1x128xf32>
    %20 = arith.mulf %19, %18 : vector<1x128xf32>
    %cst_11 = arith.constant 2.500000e-01 : f32
    %21 = vector.broadcast %cst_11 : f32 to vector<1x128xf32>
    %22 = arith.mulf %20, %21 : vector<1x128xf32>
    %c1 = arith.constant 1 : index
    %c0_12 = arith.constant 0 : index
    %23 = vector.load %arg2[%c1, %c0_12] : memref<2x128xf32, #tpu.memory_space<vmem>>, vector<1x128xf32>
    %cst_13 = arith.constant 2.500000e-01 : f32
    %24 = vector.broadcast %cst_13 : f32 to vector<1x128xf32>
    %25 = arith.mulf %23, %24 : vector<1x128xf32>
    %26 = arith.mulf %6, %22 : vector<1x128xf32>
    %27 = arith.subf %25, %26 : vector<1x128xf32>
    %28 = vector.broadcast %22 : vector<1x128xf32> to vector<8x128xf32>
    %29 = arith.mulf %2, %28 : vector<8x128xf32>
    %30 = vector.broadcast %27 : vector<1x128xf32> to vector<8x128xf32>
    %31 = arith.addf %29, %30 : vector<8x128xf32>
    %cst_14 = arith.constant 0.000000e+00 : f32
    %32 = vector.broadcast %cst_14 : f32 to vector<8x128xf32>
    %33 = arith.maximumf %31, %32 : vector<8x128xf32>
    %34 = vector.shape_cast %33 : vector<8x128xf32> to vector<2x2x2x128xf32>
    %35 = vector.shape_cast %34 : vector<2x2x2x128xf32> to vector<2x1x2x2x128xf32>
    %36 = vector.extract_strided_slice %35 {offsets = [0, 0, 0, 0, 0], sizes = [2, 1, 1, 2, 128], strides = [1, 1, 1, 1, 1]} : vector<2x1x2x2x128xf32> to vector<2x1x1x2x128xf32>
    %37 = vector.shape_cast %36 : vector<2x1x1x2x128xf32> to vector<2x1x2x128xf32>
    %38 = vector.extract_strided_slice %35 {offsets = [0, 0, 1, 0, 0], sizes = [2, 1, 1, 2, 128], strides = [1, 1, 1, 1, 1]} : vector<2x1x2x2x128xf32> to vector<2x1x1x2x128xf32>
    %39 = vector.shape_cast %38 : vector<2x1x1x2x128xf32> to vector<2x1x2x128xf32>
    %40 = arith.addf %37, %39 : vector<2x1x2x128xf32>
    %41 = vector.shape_cast %40 : vector<2x1x2x128xf32> to vector<2x1x1x2x128xf32>
    %42 = vector.extract_strided_slice %41 {offsets = [0, 0, 0, 0, 0], sizes = [2, 1, 1, 1, 128], strides = [1, 1, 1, 1, 1]} : vector<2x1x1x2x128xf32> to vector<2x1x1x1x128xf32>
    %43 = vector.shape_cast %42 : vector<2x1x1x1x128xf32> to vector<2x1x1x128xf32>
    %44 = vector.extract_strided_slice %41 {offsets = [0, 0, 0, 1, 0], sizes = [2, 1, 1, 1, 128], strides = [1, 1, 1, 1, 1]} : vector<2x1x1x2x128xf32> to vector<2x1x1x1x128xf32>
    %45 = vector.shape_cast %44 : vector<2x1x1x1x128xf32> to vector<2x1x1x128xf32>
    %46 = arith.addf %43, %45 : vector<2x1x1x128xf32>
    %c0_15 = arith.constant 0 : index
    %c0_16 = arith.constant 0 : index
    %c0_17 = arith.constant 0 : index
    %c0_18 = arith.constant 0 : index
    %47 = vector.load %arg3[%c0_15, %c0_16, %c0_17, %c0_18] : memref<2x1x1x128xf32, #tpu.memory_space<vmem>>, vector<2x1x1x128xf32>
    tpu.vector_store %arg3[%c0_15, %c0_16, %c0_17, %c0_18], %46 {strides = array<i32>} : memref<2x1x1x128xf32, #tpu.memory_space<vmem>>, vector<2x1x1x128xf32>,
    return
  }
}

</mosaic_0001>

<llo_original>
// kernel: encoder_forward.3
$region0: #{encoder_forward.3}
  #allocation0 [shape = 'u32[]', space=smem, size = 0x4, offset = 0x4, fixed_abs, tag = 'smem constant byte address 0x4 - core index']
  #allocation1 [shape = 'u32[144,128]{1,0:T(1,128)}', space=vmem, size = 0x12000, scoped, tag = 'internal scratch']
  %s0 = inlined_call_operand.vmem [shape: bf16[578,128], index: 0, kind: input, shape index: {}]
  %s1 = inlined_call_operand.vmem [shape: bf16[128,32], index: 1, kind: input, shape index: {}]
  %s2 = inlined_call_operand.vmem [shape: f32[2,32], index: 2, kind: input, shape index: {}]
  %s3 = inlined_call_operand.vmem [shape: f32[2,8,8,32], index: 3, kind: output, shape index: {}]
  %s4 = sld [smem:[#allocation0]]
  $region22: #{encoder_forward.3} parent=0
    _
  %s6 = ssub.s32 1, %s4
  %s7 = scalar_select 0, %s6, %s4
  // Predicated region
  $region2: #{encoder_forward.3} parent=0 // pred_check
    _
  $region3: #{encoder_forward.3} parent=0 // pred_check_branch
    %9 = sbr.rel (0) target = $region5
  $region4: #{encoder_forward.3} parent=0 // pred_region
    _
  $region5: #{encoder_forward.3} parent=0 // pred_fallthru
    _
  // Predicated region
  $region6: #{encoder_forward.3} parent=0 // pred_check
    _
  $region7: #{encoder_forward.3} parent=0 // pred_check_branch
    %11 = sbr.rel (0) target = $region9
  $region8: #{encoder_forward.3} parent=0 // pred_region
    _
  $region9: #{encoder_forward.3} parent=0 // pred_fallthru
    _
  // Predicated region
  $region10: #{encoder_forward.3} parent=0 // pred_check
    _
  $region11: #{encoder_forward.3} parent=0 // pred_check_branch
    %13 = sbr.rel (0) target = $region13
  $region12: #{encoder_forward.3} parent=0 // pred_region
    _
  $region13: #{encoder_forward.3} parent=0 // pred_fallthru
    _
  %v15 = vld [vmem:[%s0] sm:$0xf]
  %v16 = vld [vmem:[%s0 + $0x4] sm:$0xf]
  %v17 = vld [vmem:[%s0 + $0x8] sm:$0xf]
  %v18 = vld [vmem:[%s0 + $0xc] sm:$0xf]
  %v19 = vld [vmem:[%s0 + $0x10] sm:$0xf]
  %v20 = vld [vmem:[%s0 + $0x14] sm:$0xf]
  %v21 = vld [vmem:[%s0 + $0x18] sm:$0xf]
  %v22 = vld [vmem:[%s0 + $0x1c] sm:$0xf]
  %v23 = vld [vmem:[%s0 + $0x20] sm:$0xf]
  %v24 = vld [vmem:[%s0 + $0x24] sm:$0xf]
  %v25 = vld [vmem:[%s0 + $0x28] sm:$0xf]
  %v26 = vld [vmem:[%s0 + $0x2c] sm:$0xf]
  %v27 = vld [vmem:[%s0 + $0x30] sm:$0xf]
  %v28 = vld [vmem:[%s0 + $0x34] sm:$0xf]
  %v29 = vld [vmem:[%s0 + $0x38] sm:$0xf]
  %v30 = vld [vmem:[%s0 + $0x3c] sm:$0xf]
  %v31 = vld [vmem:[%s0 + $0x40] sm:$0xf]
  %v32 = vld [vmem:[%s0 + $0x44] sm:$0xf]
  %v33 = vld [vmem:[%s0 + $0x48] sm:$0xf]
  %v34 = vld [vmem:[%s0 + $0x4c] sm:$0xf]
  %v35 = vld [vmem:[%s0 + $0x50] sm:$0xf]
  %v36 = vld [vmem:[%s0 + $0x54] sm:$0xf]
  %v37 = vld [vmem:[%s0 + $0x58] sm:$0xf]
  %v38 = vld [vmem:[%s0 + $0x5c] sm:$0xf]
  %v39 = vld [vmem:[%s0 + $0x60] sm:$0xf]
  %v40 = vld [vmem:[%s0 + $0x64] sm:$0xf]
  %v41 = vld [vmem:[%s0 + $0x68] sm:$0xf]
  %v42 = vld [vmem:[%s0 + $0x6c] sm:$0xf]
  %v43 = vld [vmem:[%s0 + $0x70] sm:$0xf]
  %v44 = vld [vmem:[%s0 + $0x74] sm:$0xf]
  %v45 = vld [vmem:[%s0 + $0x78] sm:$0xf]
  %v46 = vld [vmem:[%s0 + $0x7c] sm:$0xf]
  %v47 = vld [vmem:[%s0 + $0x80] sm:$0xf]
  %v48 = vld [vmem:[%s0 + $0x84] sm:$0xf]
  %v49 = vld [vmem:[%s0 + $0x88] sm:$0xf]
  %v50 = vld [vmem:[%s0 + $0x8c] sm:$0xf]
  %v51 = vld [vmem:[%s0 + $0x90] sm:$0xf]
  %v52 = vld [vmem:[%s0 + $0x94] sm:$0xf]
  %v53 = vld [vmem:[%s0 + $0x98] sm:$0xf]
  %v54 = vld [vmem:[%s0 + $0x9c] sm:$0xf]
  %v55 = vld [vmem:[%s0 + $0xa0] sm:$0xf]
  %v56 = vld [vmem:[%s0 + $0xa4] sm:$0xf]
  %v57 = vld [vmem:[%s0 + $0xa8] sm:$0xf]
  %v58 = vld [vmem:[%s0 + $0xac] sm:$0xf]
  %v59 = vld [vmem:[%s0 + $0xb0] sm:$0xf]
  %v60 = vld [vmem:[%s0 + $0xb4] sm:$0xf]
  %v61 = vld [vmem:[%s0 + $0xb8] sm:$0xf]
  %v62 = vld [vmem:[%s0 + $0xbc] sm:$0xf]
  %v63 = vld [vmem:[%s0 + $0xc0] sm:$0xf]
  %v64 = vld [vmem:[%s0 + $0xc4] sm:$0xf]
  %v65 = vld [vmem:[%s0 + $0xc8] sm:$0xf]
  %v66 = vld [vmem:[%s0 + $0xcc] sm:$0xf]
  %v67 = vld [vmem:[%s0 + $0xd0] sm:$0xf]
  %v68 = vld [vmem:[%s0 + $0xd4] sm:$0xf]
  %v69 = vld [vmem:[%s0 + $0xd8] sm:$0xf]
  %v70 = vld [vmem:[%s0 + $0xdc] sm:$0xf]
  %v71 = vld [vmem:[%s0 + $0xe0] sm:$0xf]
  %v72 = vld [vmem:[%s0 + $0xe4] sm:$0xf]
  %v73 = vld [vmem:[%s0 + $0xe8] sm:$0xf]
  %v74 = vld [vmem:[%s0 + $0xec] sm:$0xf]
  %v75 = vld [vmem:[%s0 + $0xf0] sm:$0xf]
  %v76 = vld [vmem:[%s0 + $0xf4] sm:$0xf]
  %v77 = vld [vmem:[%s0 + $0xf8] sm:$0xf]
  %v78 = vld [vmem:[%s0 + $0xfc] sm:$0xf]
  %v79 = vld [vmem:[%s0 + $0x100] sm:$0xf]
  %v80 = vld [vmem:[%s0 + $0x104] sm:$0xf]
  %v81 = vld [vmem:[%s0 + $0x108] sm:$0xf]
  %v82 = vld [vmem:[%s0 + $0x10c] sm:$0xf]
  %v83 = vld [vmem:[%s0 + $0x110] sm:$0xf]
  %v84 = vld [vmem:[%s0 + $0x114] sm:$0xf]
  %v85 = vld [vmem:[%s0 + $0x118] sm:$0xf]
  %v86 = vld [vmem:[%s0 + $0x11c] sm:$0xf]
  %v87 = vld [vmem:[%s0 + $0x120] sm:$0x1]
  %v88 = vld [vmem:[%s1] sm:$0xf]
  %v89 = vld [vmem:[%s1 + $0x4] sm:$0xf]
  %v90 = vld [vmem:[%s1 + $0x8] sm:$0xf]
  %v91 = vld [vmem:[%s1 + $0xc] sm:$0xf]
  %v92 = vld [vmem:[%s1 + $0x10] sm:$0xf]
  %v93 = vld [vmem:[%s1 + $0x14] sm:$0xf]
  %v94 = vld [vmem:[%s1 + $0x18] sm:$0xf]
  %v95 = vld [vmem:[%s1 + $0x1c] sm:$0xf]
  %v96 = vld [vmem:[%s1 + $0x20] sm:$0xf]
  %v97 = vld [vmem:[%s1 + $0x24] sm:$0xf]
  %v98 = vld [vmem:[%s1 + $0x28] sm:$0xf]
  %v99 = vld [vmem:[%s1 + $0x2c] sm:$0xf]
  %v100 = vld [vmem:[%s1 + $0x30] sm:$0xf]
  %v101 = vld [vmem:[%s1 + $0x34] sm:$0xf]
  %v102 = vld [vmem:[%s1 + $0x38] sm:$0xf]
  %v103 = vld [vmem:[%s1 + $0x3c] sm:$0xf]
  %v177 = vunpack.c.l.b16 %v15
  %v178 = vunpack.c.l.b16 %v16
  %v179 = vunpack.c.l.b16 %v17
  %v180 = vunpack.c.l.b16 %v18
  %v181 = vunpack.c.l.b16 %v19
  %v182 = vunpack.c.l.b16 %v20
  %v183 = vunpack.c.l.b16 %v21
  %v184 = vunpack.c.l.b16 %v22
  %v185 = vunpack.c.l.b16 %v23
  %v186 = vunpack.c.l.b16 %v24
  %v187 = vunpack.c.l.b16 %v25
  %v188 = vunpack.c.l.b16 %v26
  %v189 = vunpack.c.l.b16 %v27
  %v190 = vunpack.c.l.b16 %v28
  %v191 = vunpack.c.l.b16 %v29
  %v192 = vunpack.c.l.b16 %v30
  %v193 = vunpack.c.l.b16 %v31
  %v194 = vunpack.c.l.b16 %v32
  %v195 = vunpack.c.l.b16 %v33
  %v196 = vunpack.c.l.b16 %v34
  %v197 = vunpack.c.l.b16 %v35
  %v198 = vunpack.c.l.b16 %v36
  %v199 = vunpack.c.l.b16 %v37
  %v200 = vunpack.c.l.b16 %v38
  %v201 = vunpack.c.l.b16 %v39
  %v202 = vunpack.c.l.b16 %v40
  %v203 = vunpack.c.l.b16 %v41
  %v204 = vunpack.c.l.b16 %v42
  %v205 = vunpack.c.l.b16 %v43
  %v206 = vunpack.c.l.b16 %v44
  %v207 = vunpack.c.l.b16 %v45
  %v208 = vunpack.c.l.b16 %v46
  %v209 = vunpack.c.l.b16 %v47
  %v210 = vunpack.c.l.b16 %v48
  %v211 = vunpack.c.l.b16 %v49
  %v212 = vunpack.c.l.b16 %v50
  %v213 = vunpack.c.l.b16 %v51
  %v214 = vunpack.c.l.b16 %v52
  %v215 = vunpack.c.l.b16 %v53
  %v216 = vunpack.c.l.b16 %v54
  %v217 = vunpack.c.l.b16 %v55
  %v218 = vunpack.c.l.b16 %v56
  %v219 = vunpack.c.l.b16 %v57
  %v220 = vunpack.c.l.b16 %v58
  %v221 = vunpack.c.l.b16 %v59
  %v222 = vunpack.c.l.b16 %v60
  %v223 = vunpack.c.l.b16 %v61
  %v224 = vunpack.c.l.b16 %v62
  %v225 = vunpack.c.l.b16 %v63
  %v226 = vunpack.c.l.b16 %v64
  %v227 = vunpack.c.l.b16 %v65
  %v228 = vunpack.c.l.b16 %v66
  %v229 = vunpack.c.l.b16 %v67
  %v230 = vunpack.c.l.b16 %v68
  %v231 = vunpack.c.l.b16 %v69
  %v232 = vunpack.c.l.b16 %v70
  %v233 = vunpack.c.l.b16 %v71
  %v234 = vunpack.c.l.b16 %v72
  %v235 = vunpack.c.l.b16 %v73
  %v236 = vunpack.c.l.b16 %v74
  %v237 = vunpack.c.l.b16 %v75
  %v238 = vunpack.c.l.b16 %v76
  %v239 = vunpack.c.l.b16 %v77
  %v240 = vunpack.c.l.b16 %v78
  %v241 = vunpack.c.l.b16 %v79
  %v242 = vunpack.c.l.b16 %v80
  %v243 = vunpack.c.l.b16 %v81
  %v244 = vunpack.c.l.b16 %v82
  %v245 = vunpack.c.l.b16 %v83
  %v246 = vunpack.c.l.b16 %v84
  %v247 = vunpack.c.l.b16 %v85
  %v248 = vunpack.c.l.b16 %v86
  %v249 = vunpack.c.l.b16 %v87
  %v250 = vpack.c.b16 %v178, %v177
  %v251 = vpack.c.b16 %v180, %v179
  %v252 = vpack.c.b16 %v182, %v181
  %v253 = vpack.c.b16 %v184, %v183
  %v254 = vpack.c.b16 %v186, %v185
  %v255 = vpack.c.b16 %v188, %v187
  %v256 = vpack.c.b16 %v190, %v189
  %v257 = vpack.c.b16 %v192, %v191
  %v258 = vpack.c.b16 %v194, %v193
  %v259 = vpack.c.b16 %v196, %v195
  %v260 = vpack.c.b16 %v198, %v197
  %v261 = vpack.c.b16 %v200, %v199
  %v262 = vpack.c.b16 %v202, %v201
  %v263 = vpack.c.b16 %v204, %v203
  %v264 = vpack.c.b16 %v206, %v205
  %v265 = vpack.c.b16 %v208, %v207
  %v266 = vpack.c.b16 %v210, %v209
  %v267 = vpack.c.b16 %v212, %v211
  %v268 = vpack.c.b16 %v214, %v213
  %v269 = vpack.c.b16 %v216, %v215
  %v270 = vpack.c.b16 %v218, %v217
  %v271 = vpack.c.b16 %v220, %v219
  %v272 = vpack.c.b16 %v222, %v221
  %v273 = vpack.c.b16 %v224, %v223
  %v274 = vpack.c.b16 %v226, %v225
  %v275 = vpack.c.b16 %v228, %v227
  %v276 = vpack.c.b16 %v230, %v229
  %v277 = vpack.c.b16 %v232, %v231
  %v278 = vpack.c.b16 %v234, %v233
  %v279 = vpack.c.b16 %v236, %v235
  %v280 = vpack.c.b16 %v238, %v237
  %v281 = vpack.c.b16 %v240, %v239
  %v282 = vpack.c.b16 %v242, %v241
  %v283 = vpack.c.b16 %v244, %v243
  %v284 = vpack.c.b16 %v246, %v245
  %v285 = vpack.c.b16 %v248, %v247
  %v286 = vpack.c.b16 %v249, %v249
  %v340 = vunpack.c.l.b16 %v88
  %v341 = vunpack.c.l.b16 %v89
  %v342 = vunpack.c.l.b16 %v90
  %v343 = vunpack.c.l.b16 %v91
  %v344 = vunpack.c.l.b16 %v92
  %v345 = vunpack.c.l.b16 %v93
  %v346 = vunpack.c.l.b16 %v94
  %v347 = vunpack.c.l.b16 %v95
  %v348 = vunpack.c.l.b16 %v96
  %v349 = vunpack.c.l.b16 %v97
  %v350 = vunpack.c.l.b16 %v98
  %v351 = vunpack.c.l.b16 %v99
  %v352 = vunpack.c.l.b16 %v100
  %v353 = vunpack.c.l.b16 %v101
  %v354 = vunpack.c.l.b16 %v102
  %v355 = vunpack.c.l.b16 %v103
  %v356 = vpack.c.b16 %v341, %v340
  %v357 = vpack.c.b16 %v343, %v342
  %v358 = vpack.c.b16 %v345, %v344
  %v359 = vpack.c.b16 %v347, %v346
  %v360 = vpack.c.b16 %v349, %v348
  %v361 = vpack.c.b16 %v351, %v350
  %v362 = vpack.c.b16 %v353, %v352
  %v363 = vpack.c.b16 %v355, %v354
  %372 = vmatprep.subr.bf16.mxu0 0
  %373 = vmatpush1.bf16.msra.mxu0 %v356
  %374 = vmatprep.subr.bf16.mxu0 0
  %375 = vmatpush1.bf16.msra.mxu0 %v357
  %376 = vmatprep.subr.bf16.mxu0 0
  %377 = vmatpush1.bf16.msra.mxu0 %v358
  %378 = vmatprep.subr.bf16.mxu0 0
  %379 = vmatpush1.bf16.msra.mxu0 %v359
  %380 = vmatprep.subr.bf16.mxu0 0
  %381 = vmatpush1.bf16.msra.mxu0 %v360
  %382 = vmatprep.subr.bf16.mxu0 0
  %383 = vmatpush1.bf16.msra.mxu0 %v361
  %384 = vmatprep.subr.bf16.mxu0 0
  %385 = vmatpush1.bf16.msra.mxu0 %v362
  %386 = vmatprep.subr.bf16.mxu0 0
  %387 = vmatpush1.bf16.msra.mxu0 %v363
  %388 = vmatprep.subr.bf16.mxu0 0
  %389 = vmatpush1.bf16.msra.mxu0 0
  %390 = vmatprep.subr.bf16.mxu0 0
  %391 = vmatpush1.bf16.msra.mxu0 0
  %392 = vmatprep.subr.bf16.mxu0 0
  %393 = vmatpush1.bf16.msra.mxu0 0
  %394 = vmatprep.subr.bf16.mxu0 0
  %395 = vmatpush1.bf16.msra.mxu0 0
  %396 = vmatprep.subr.bf16.mxu0 0
  %397 = vmatpush1.bf16.msra.mxu0 0
  %398 = vmatprep.subr.bf16.mxu0 0
  %399 = vmatpush1.bf16.msra.mxu0 0
  %400 = vmatprep.subr.bf16.mxu0 0
  %401 = vmatpush1.bf16.msra.mxu0 0
  %402 = vmatprep.subr.bf16.mxu0 0
  %403 = vmatpush1.bf16.msra.mxu0 0
  %404 = vmatprep.mubr.bf16.mxu0 0
  %405 = vmatmul.mubr.bf16.gmra.mrb[0].mxu0 %v250
  %v406 = vpop.f32.mrb[0].mxu0
  %v407 = vadd.f32 0.0, %v406
  %v408 = vpop.f32.mrb[0].mxu0
  %v409 = vpop.f32.mrb[0].mxu0
  %v410 = vadd.f32 0.0, %v409
  %v411 = vpop.f32.mrb[0].mxu0
  %412 = vmatprep.mubr.bf16.mxu0 0
  %413 = vmatmul.mubr.bf16.gmra.mrb[0].mxu0 %v251
  %v414 = vpop.f32.mrb[0].mxu0
  %v415 = vadd.f32 0.0, %v414
  %v416 = vpop.f32.mrb[0].mxu0
  %v417 = vpop.f32.mrb[0].mxu0
  %v418 = vadd.f32 0.0, %v417
  %v419 = vpop.f32.mrb[0].mxu0
  %420 = vmatprep.mubr.bf16.mxu0 0
  %421 = vmatmul.mubr.bf16.gmra.mrb[0].mxu0 %v252
  %v422 = vpop.f32.mrb[0].mxu0
  %v423 = vadd.f32 0.0, %v422
  %v424 = vpop.f32.mrb[0].mxu0
  %v425 = vpop.f32.mrb[0].mxu0
  %v426 = vadd.f32 0.0, %v425
  %v427 = vpop.f32.mrb[0].mxu0
  %428 = vmatprep.mubr.bf16.mxu0 0
  %429 = vmatmul.mubr.bf16.gmra.mrb[0].mxu0 %v253
  %v430 = vpop.f32.mrb[0].mxu0
  %v431 = vadd.f32 0.0, %v430
  %v432 = vpop.f32.mrb[0].mxu0
  %v433 = vpop.f32.mrb[0].mxu0
  %v434 = vadd.f32 0.0, %v433
  %v435 = vpop.f32.mrb[0].mxu0
  %436 = vmatprep.mubr.bf16.mxu0 0
  %437 = vmatmul.mubr.bf16.gmra.mrb[0].mxu0 %v254
  %v438 = vpop.f32.mrb[0].mxu0
  %v439 = vadd.f32 0.0, %v438
  %v440 = vpop.f32.mrb[0].mxu0
  %v441 = vpop.f32.mrb[0].mxu0
  %v442 = vadd.f32 0.0, %v441
  %v443 = vpop.f32.mrb[0].mxu0
  %444 = vmatprep.mubr.bf16.mxu0 0
  %445 = vmatmul.mubr.bf16.gmra.mrb[0].mxu0 %v255
  %v446 = vpop.f32.mrb[0].mxu0
  %v447 = vadd.f32 0.0, %v446
  %v448 = vpop.f32.mrb[0].mxu0
  %v449 = vpop.f32.mrb[0].mxu0
  %v450 = vadd.f32 0.0, %v449
  %v451 = vpop.f32.mrb[0].mxu0
  %452 = vmatprep.mubr.bf16.mxu0 0
  %453 = vmatmul.mubr.bf16.gmra.mrb[0].mxu0 %v256
  %v454 = vpop.f32.mrb[0].mxu0
  %v455 = vadd.f32 0.0, %v454
  %v456 = vpop.f32.mrb[0].mxu0
  %v457 = vpop.f32.mrb[0].mxu0
  %v458 = vadd.f32 0.0, %v457
  %v459 = vpop.f32.mrb[0].mxu0
  %460 = vmatprep.mubr.bf16.mxu0 0
  %461 = vmatmul.mubr.bf16.gmra.mrb[0].mxu0 %v257
  %v462 = vpop.f32.mrb[0].mxu0
  %v463 = vadd.f32 0.0, %v462
  %v464 = vpop.f32.mrb[0].mxu0
  %v465 = vpop.f32.mrb[0].mxu0
  %v466 = vadd.f32 0.0, %v465
  %v467 = vpop.f32.mrb[0].mxu0
  %468 = vmatprep.mubr.bf16.mxu0 0
  %469 = vmatmul.mubr.bf16.gmra.mrb[0].mxu0 %v258
  %v470 = vpop.f32.mrb[0].mxu0
  %v471 = vadd.f32 0.0, %v470
  %v472 = vpop.f32.mrb[0].mxu0
  %v473 = vpop.f32.mrb[0].mxu0
  %v474 = vadd.f32 0.0, %v473
  %v475 = vpop.f32.mrb[0].mxu0
  %476 = vmatprep.mubr.bf16.mxu0 0
  %477 = vmatmul.mubr.bf16.gmra.mrb[0].mxu0 %v259
  %v478 = vpop.f32.mrb[0].mxu0
  %v479 = vadd.f32 0.0, %v478
  %v480 = vpop.f32.mrb[0].mxu0
  %v481 = vpop.f32.mrb[0].mxu0
  %v482 = vadd.f32 0.0, %v481
  %v483 = vpop.f32.mrb[0].mxu0
  %484 = vmatprep.mubr.bf16.mxu0 0
  %485 = vmatmul.mubr.bf16.gmra.mrb[0].mxu0 %v260
  %v486 = vpop.f32.mrb[0].mxu0
  %v487 = vadd.f32 0.0, %v486
  %v488 = vpop.f32.mrb[0].mxu0
  %v489 = vpop.f32.mrb[0].mxu0
  %v490 = vadd.f32 0.0, %v489
  %v491 = vpop.f32.mrb[0].mxu0
  %492 = vmatprep.mubr.bf16.mxu0 0
  %493 = vmatmul.mubr.bf16.gmra.mrb[0].mxu0 %v261
  %v494 = vpop.f32.mrb[0].mxu0
  %v495 = vadd.f32 0.0, %v494
  %v496 = vpop.f32.mrb[0].mxu0
  %v497 = vpop.f32.mrb[0].mxu0
  %v498 = vadd.f32 0.0, %v497
  %v499 = vpop.f32.mrb[0].mxu0
  %500 = vmatprep.mubr.bf16.mxu0 0
  %501 = vmatmul.mubr.bf16.gmra.mrb[0].mxu0 %v262
  %v502 = vpop.f32.mrb[0].mxu0
  %v503 = vadd.f32 0.0, %v502
  %v504 = vpop.f32.mrb[0].mxu0
  %v505 = vpop.f32.mrb[0].mxu0
  %v506 = vadd.f32 0.0, %v505
  %v507 = vpop.f32.mrb[0].mxu0
  %508 = vmatprep.mubr.bf16.mxu0 0
  %509 = vmatmul.mubr.bf16.gmra.mrb[0].mxu0 %v263
  %v510 = vpop.f32.mrb[0].mxu0
  %v511 = vadd.f32 0.0, %v510
  %v512 = vpop.f32.mrb[0].mxu0
  %v513 = vpop.f32.mrb[0].mxu0
  %v514 = vadd.f32 0.0, %v513
  %v515 = vpop.f32.mrb[0].mxu0
  %516 = vmatprep.mubr.bf16.mxu0 0
  %517 = vmatmul.mubr.bf16.gmra.mrb[0].mxu0 %v264
  %v518 = vpop.f32.mrb[0].mxu0
  %v519 = vadd.f32 0.0, %v518
  %v520 = vpop.f32.mrb[0].mxu0
  %v521 = vpop.f32.mrb[0].mxu0
  %v522 = vadd.f32 0.0, %v521
  %v523 = vpop.f32.mrb[0].mxu0
  %524 = vmatprep.mubr.bf16.mxu0 0
  %525 = vmatmul.mubr.bf16.gmra.mrb[0].mxu0 %v265
  %v526 = vpop.f32.mrb[0].mxu0
  %v527 = vadd.f32 0.0, %v526
  %v528 = vpop.f32.mrb[0].mxu0
  %v529 = vpop.f32.mrb[0].mxu0
  %v530 = vadd.f32 0.0, %v529
  %v531 = vpop.f32.mrb[0].mxu0
  %532 = vmatprep.mubr.bf16.mxu0 0
  %533 = vmatmul.mubr.bf16.gmra.mrb[0].mxu0 %v266
  %v534 = vpop.f32.mrb[0].mxu0
  %v535 = vadd.f32 0.0, %v534
  %v536 = vpop.f32.mrb[0].mxu0
  %v537 = vpop.f32.mrb[0].mxu0
  %v538 = vadd.f32 0.0, %v537
  %v539 = vpop.f32.mrb[0].mxu0
  %540 = vmatprep.mubr.bf16.mxu0 0
  %541 = vmatmul.mubr.bf16.gmra.mrb[0].mxu0 %v267
  %v542 = vpop.f32.mrb[0].mxu0
  %v543 = vadd.f32 0.0, %v542
  %v544 = vpop.f32.mrb[0].mxu0
  %v545 = vpop.f32.mrb[0].mxu0
  %v546 = vadd.f32 0.0, %v545
  %v547 = vpop.f32.mrb[0].mxu0
  %548 = vmatprep.mubr.bf16.mxu0 0
  %549 = vmatmul.mubr.bf16.gmra.mrb[0].mxu0 %v268
  %v550 = vpop.f32.mrb[0].mxu0
  %v551 = vadd.f32 0.0, %v550
  %v552 = vpop.f32.mrb[0].mxu0
  %v553 = vpop.f32.mrb[0].mxu0
  %v554 = vadd.f32 0.0, %v553
  %v555 = vpop.f32.mrb[0].mxu0
  %556 = vmatprep.mubr.bf16.mxu0 0
  %557 = vmatmul.mubr.bf16.gmra.mrb[0].mxu0 %v269
  %v558 = vpop.f32.mrb[0].mxu0
  %v559 = vadd.f32 0.0, %v558
  %v560 = vpop.f32.mrb[0].mxu0
  %v561 = vpop.f32.mrb[0].mxu0
  %v562 = vadd.f32 0.0, %v561
  %v563 = vpop.f32.mrb[0].mxu0
  %564 = vmatprep.mubr.bf16.mxu0 0
  %565 = vmatmul.mubr.bf16.gmra.mrb[0].mxu0 %v270
  %v566 = vpop.f32.mrb[0].mxu0
  %v567 = vadd.f32 0.0, %v566
  %v568 = vpop.f32.mrb[0].mxu0
  %v569 = vpop.f32.mrb[0].mxu0
  %v570 = vadd.f32 0.0, %v569
  %v571 = vpop.f32.mrb[0].mxu0
  %572 = vmatprep.mubr.bf16.mxu0 0
  %573 = vmatmul.mubr.bf16.gmra.mrb[0].mxu0 %v271
  %v574 = vpop.f32.mrb[0].mxu0
  %v575 = vadd.f32 0.0, %v574
  %v576 = vpop.f32.mrb[0].mxu0
  %v577 = vpop.f32.mrb[0].mxu0
  %v578 = vadd.f32 0.0, %v577
  %v579 = vpop.f32.mrb[0].mxu0
  %580 = vmatprep.mubr.bf16.mxu0 0
  %581 = vmatmul.mubr.bf16.gmra.mrb[0].mxu0 %v272
  %v582 = vpop.f32.mrb[0].mxu0
  %v583 = vadd.f32 0.0, %v582
  %v584 = vpop.f32.mrb[0].mxu0
  %v585 = vpop.f32.mrb[0].mxu0
  %v586 = vadd.f32 0.0, %v585
  %v587 = vpop.f32.mrb[0].mxu0
  %588 = vmatprep.mubr.bf16.mxu0 0
  %589 = vmatmul.mubr.bf16.gmra.mrb[0].mxu0 %v273
  %v590 = vpop.f32.mrb[0].mxu0
  %v591 = vadd.f32 0.0, %v590
  %v592 = vpop.f32.mrb[0].mxu0
  %v593 = vpop.f32.mrb[0].mxu0
  %v594 = vadd.f32 0.0, %v593
  %v595 = vpop.f32.mrb[0].mxu0
  %596 = vmatprep.mubr.bf16.mxu0 0
  %597 = vmatmul.mubr.bf16.gmra.mrb[0].mxu0 %v274
  %v598 = vpop.f32.mrb[0].mxu0
  %v599 = vadd.f32 0.0, %v598
  %v600 = vpop.f32.mrb[0].mxu0
  %v601 = vpop.f32.mrb[0].mxu0
  %v602 = vadd.f32 0.0, %v601
  %v603 = vpop.f32.mrb[0].mxu0
  %604 = vmatprep.mubr.bf16.mxu0 0
  %605 = vmatmul.mubr.bf16.gmra.mrb[0].mxu0 %v275
  %v606 = vpop.f32.mrb[0].mxu0
  %v607 = vadd.f32 0.0, %v606
  %v608 = vpop.f32.mrb[0].mxu0
  %v609 = vpop.f32.mrb[0].mxu0
  %v610 = vadd.f32 0.0, %v609
  %v611 = vpop.f32.mrb[0].mxu0
  %612 = vmatprep.mubr.bf16.mxu0 0
  %613 = vmatmul.mubr.bf16.gmra.mrb[0].mxu0 %v276
  %v614 = vpop.f32.mrb[0].mxu0
  %v615 = vadd.f32 0.0, %v614
  %v616 = vpop.f32.mrb[0].mxu0
  %v617 = vpop.f32.mrb[0].mxu0
  %v618 = vadd.f32 0.0, %v617
  %v619 = vpop.f32.mrb[0].mxu0
  %620 = vmatprep.mubr.bf16.mxu0 0
  %621 = vmatmul.mubr.bf16.gmra.mrb[0].mxu0 %v277
  %v622 = vpop.f32.mrb[0].mxu0
  %v623 = vadd.f32 0.0, %v622
  %v624 = vpop.f32.mrb[0].mxu0
  %v625 = vpop.f32.mrb[0].mxu0
  %v626 = vadd.f32 0.0, %v625
  %v627 = vpop.f32.mrb[0].mxu0
  %628 = vmatprep.mubr.bf16.mxu0 0
  %629 = vmatmul.mubr.bf16.gmra.mrb[0].mxu0 %v278
  %v630 = vpop.f32.mrb[0].mxu0
  %v631 = vadd.f32 0.0, %v630
  %v632 = vpop.f32.mrb[0].mxu0
  %v633 = vpop.f32.mrb[0].mxu0
  %v634 = vadd.f32 0.0, %v633
  %v635 = vpop.f32.mrb[0].mxu0
  %636 = vmatprep.mubr.bf16.mxu0 0
  %637 = vmatmul.mubr.bf16.gmra.mrb[0].mxu0 %v279
  %v638 = vpop.f32.mrb[0].mxu0
  %v639 = vadd.f32 0.0, %v638
  %v640 = vpop.f32.mrb[0].mxu0
  %v641 = vpop.f32.mrb[0].mxu0
  %v642 = vadd.f32 0.0, %v641
  %v643 = vpop.f32.mrb[0].mxu0
  %644 = vmatprep.mubr.bf16.mxu0 0
  %645 = vmatmul.mubr.bf16.gmra.mrb[0].mxu0 %v280
  %v646 = vpop.f32.mrb[0].mxu0
  %v647 = vadd.f32 0.0, %v646
  %v648 = vpop.f32.mrb[0].mxu0
  %v649 = vpop.f32.mrb[0].mxu0
  %v650 = vadd.f32 0.0, %v649
  %v651 = vpop.f32.mrb[0].mxu0
  %652 = vmatprep.mubr.bf16.mxu0 0
  %653 = vmatmul.mubr.bf16.gmra.mrb[0].mxu0 %v281
  %v654 = vpop.f32.mrb[0].mxu0
  %v655 = vadd.f32 0.0, %v654
  %v656 = vpop.f32.mrb[0].mxu0
  %v657 = vpop.f32.mrb[0].mxu0
  %v658 = vadd.f32 0.0, %v657
  %v659 = vpop.f32.mrb[0].mxu0
  %660 = vmatprep.mubr.bf16.mxu0 0
  %661 = vmatmul.mubr.bf16.gmra.mrb[0].mxu0 %v282
  %v662 = vpop.f32.mrb[0].mxu0
  %v663 = vadd.f32 0.0, %v662
  %v664 = vpop.f32.mrb[0].mxu0
  %v665 = vpop.f32.mrb[0].mxu0
  %v666 = vadd.f32 0.0, %v665
  %v667 = vpop.f32.mrb[0].mxu0
  %668 = vmatprep.mubr.bf16.mxu0 0
  %669 = vmatmul.mubr.bf16.gmra.mrb[0].mxu0 %v283
  %v670 = vpop.f32.mrb[0].mxu0
  %v671 = vadd.f32 0.0, %v670
  %v672 = vpop.f32.mrb[0].mxu0
  %v673 = vpop.f32.mrb[0].mxu0
  %v674 = vadd.f32 0.0, %v673
  %v675 = vpop.f32.mrb[0].mxu0
  %676 = vmatprep.mubr.bf16.mxu0 0
  %677 = vmatmul.mubr.bf16.gmra.mrb[0].mxu0 %v284
  %v678 = vpop.f32.mrb[0].mxu0
  %v679 = vadd.f32 0.0, %v678
  %v680 = vpop.f32.mrb[0].mxu0
  %v681 = vpop.f32.mrb[0].mxu0
  %v682 = vadd.f32 0.0, %v681
  %v683 = vpop.f32.mrb[0].mxu0
  %684 = vmatprep.mubr.bf16.mxu0 0
  %685 = vmatmul.mubr.bf16.gmra.mrb[0].mxu0 %v285
  %v686 = vpop.f32.mrb[0].mxu0
  %v687 = vadd.f32 0.0, %v686
  %v688 = vpop.f32.mrb[0].mxu0
  %v689 = vpop.f32.mrb[0].mxu0
  %v690 = vadd.f32 0.0, %v689
  %v691 = vpop.f32.mrb[0].mxu0
  %692 = vmatprep.mubr.bf16.mxu0 0
  %693 = vmatmul.mubr.bf16.gmra.mrb[0].mxu0 %v286
  %v694 = vpop.f32.mrb[0].mxu0
  %v695 = vadd.f32 0.0, %v694
  %v696 = vpop.f32.mrb[0].mxu0
  %v697 = vpop.f32.mrb[0].mxu0
  %v698 = vpop.f32.mrb[0].mxu0
  %699 = vdwg.mxu0
  %vm700 = vcmask 261120
  %v701 = vsel %vm700, %v407, 0.0
  %v702 = vsel %vm700, %v410, 0.0
  %v703 = vadd.f32 %v701, %v702
  %v704 = vsel %vm700, %v415, 0.0
  %v705 = vadd.f32 %v703, %v704
  %v706 = vsel %vm700, %v418, 0.0
  %v707 = vadd.f32 %v705, %v706
  %v708 = vsel %vm700, %v423, 0.0
  %v709 = vadd.f32 %v707, %v708
  %v710 = vsel %vm700, %v426, 0.0
  %v711 = vadd.f32 %v709, %v710
  %v712 = vsel %vm700, %v431, 0.0
  %v713 = vadd.f32 %v711, %v712
  %v714 = vsel %vm700, %v434, 0.0
  %v715 = vadd.f32 %v713, %v714
  %v716 = vsel %vm700, %v439, 0.0
  %v717 = vadd.f32 %v715, %v716
  %v718 = vsel %vm700, %v442, 0.0
  %v719 = vadd.f32 %v717, %v718
  %v720 = vsel %vm700, %v447, 0.0
  %v721 = vadd.f32 %v719, %v720
  %v722 = vsel %vm700, %v450, 0.0
  %v723 = vadd.f32 %v721, %v722
  %v724 = vsel %vm700, %v455, 0.0
  %v725 = vadd.f32 %v723, %v724
  %v726 = vsel %vm700, %v458, 0.0
  %v727 = vadd.f32 %v725, %v726
  %v728 = vsel %vm700, %v463, 0.0
  %v729 = vadd.f32 %v727, %v728
  %v730 = vsel %vm700, %v466, 0.0
  %v731 = vadd.f32 %v729, %v730
  %v732 = vsel %vm700, %v471, 0.0
  %v733 = vadd.f32 %v731, %v732
  %v734 = vsel %vm700, %v474, 0.0
  %v735 = vadd.f32 %v733, %v734
  %v736 = vsel %vm700, %v479, 0.0
  %v737 = vadd.f32 %v735, %v736
  %v738 = vsel %vm700, %v482, 0.0
  %v739 = vadd.f32 %v737, %v738
  %v740 = vsel %vm700, %v487, 0.0
  %v741 = vadd.f32 %v739, %v740
  %v742 = vsel %vm700, %v490, 0.0
  %v743 = vadd.f32 %v741, %v742
  %v744 = vsel %vm700, %v495, 0.0
  %v745 = vadd.f32 %v743, %v744
  %v746 = vsel %vm700, %v498, 0.0
  %v747 = vadd.f32 %v745, %v746
  %v748 = vsel %vm700, %v503, 0.0
  %v749 = vadd.f32 %v747, %v748
  %v750 = vsel %vm700, %v506, 0.0
  %v751 = vadd.f32 %v749, %v750
  %v752 = vsel %vm700, %v511, 0.0
  %v753 = vadd.f32 %v751, %v752
  %v754 = vsel %vm700, %v514, 0.0
  %v755 = vadd.f32 %v753, %v754
  %v756 = vsel %vm700, %v519, 0.0
  %v757 = vadd.f32 %v755, %v756
  %v758 = vsel %vm700, %v522, 0.0
  %v759 = vadd.f32 %v757, %v758
  %v760 = vsel %vm700, %v527, 0.0
  %v761 = vadd.f32 %v759, %v760
  %v762 = vsel %vm700, %v530, 0.0
  %v763 = vadd.f32 %v761, %v762
  %v764 = vsel %vm700, %v535, 0.0
  %v765 = vadd.f32 %v763, %v764
  %v766 = vsel %vm700, %v538, 0.0
  %v767 = vadd.f32 %v765, %v766
  %v768 = vsel %vm700, %v543, 0.0
  %v769 = vadd.f32 %v767, %v768
  %v770 = vsel %vm700, %v546, 0.0
  %v771 = vadd.f32 %v769, %v770
  %v772 = vsel %vm700, %v551, 0.0
  %v773 = vadd.f32 %v771, %v772
  %v774 = vsel %vm700, %v554, 0.0
  %v775 = vadd.f32 %v773, %v774
  %v776 = vsel %vm700, %v559, 0.0
  %v777 = vadd.f32 %v775, %v776
  %v778 = vsel %vm700, %v562, 0.0
  %v779 = vadd.f32 %v777, %v778
  %v780 = vsel %vm700, %v567, 0.0
  %v781 = vadd.f32 %v779, %v780
  %v782 = vsel %vm700, %v570, 0.0
  %v783 = vadd.f32 %v781, %v782
  %v784 = vsel %vm700, %v575, 0.0
  %v785 = vadd.f32 %v783, %v784
  %v786 = vsel %vm700, %v578, 0.0
  %v787 = vadd.f32 %v785, %v786
  %v788 = vsel %vm700, %v583, 0.0
  %v789 = vadd.f32 %v787, %v788
  %v790 = vsel %vm700, %v586, 0.0
  %v791 = vadd.f32 %v789, %v790
  %v792 = vsel %vm700, %v591, 0.0
  %v793 = vadd.f32 %v791, %v792
  %v794 = vsel %vm700, %v594, 0.0
  %v795 = vadd.f32 %v793, %v794
  %v796 = vsel %vm700, %v599, 0.0
  %v797 = vadd.f32 %v795, %v796
  %v798 = vsel %vm700, %v602, 0.0
  %v799 = vadd.f32 %v797, %v798
  %v800 = vsel %vm700, %v607, 0.0
  %v801 = vadd.f32 %v799, %v800
  %v802 = vsel %vm700, %v610, 0.0
  %v803 = vadd.f32 %v801, %v802
  %v804 = vsel %vm700, %v615, 0.0
  %v805 = vadd.f32 %v803, %v804
  %v806 = vsel %vm700, %v618, 0.0
  %v807 = vadd.f32 %v805, %v806
  %v808 = vsel %vm700, %v623, 0.0
  %v809 = vadd.f32 %v807, %v808
  %v810 = vsel %vm700, %v626, 0.0
  %v811 = vadd.f32 %v809, %v810
  %v812 = vsel %vm700, %v631, 0.0
  %v813 = vadd.f32 %v811, %v812
  %v814 = vsel %vm700, %v634, 0.0
  %v815 = vadd.f32 %v813, %v814
  %v816 = vsel %vm700, %v639, 0.0
  %v817 = vadd.f32 %v815, %v816
  %v818 = vsel %vm700, %v642, 0.0
  %v819 = vadd.f32 %v817, %v818
  %v820 = vsel %vm700, %v647, 0.0
  %v821 = vadd.f32 %v819, %v820
  %v822 = vsel %vm700, %v650, 0.0
  %v823 = vadd.f32 %v821, %v822
  %v824 = vsel %vm700, %v655, 0.0
  %v825 = vadd.f32 %v823, %v824
  %v826 = vsel %vm700, %v658, 0.0
  %v827 = vadd.f32 %v825, %v826
  %v828 = vsel %vm700, %v663, 0.0
  %v829 = vadd.f32 %v827, %v828
  %v830 = vsel %vm700, %v666, 0.0
  %v831 = vadd.f32 %v829, %v830
  %v832 = vsel %vm700, %v671, 0.0
  %v833 = vadd.f32 %v831, %v832
  %v834 = vsel %vm700, %v674, 0.0
  %v835 = vadd.f32 %v833, %v834
  %v836 = vsel %vm700, %v679, 0.0
  %v837 = vadd.f32 %v835, %v836
  %v838 = vsel %vm700, %v682, 0.0
  %v839 = vadd.f32 %v837, %v838
  %v840 = vsel %vm700, %v687, 0.0
  %v841 = vadd.f32 %v839, %v840
  %v842 = vsel %vm700, %v690, 0.0
  %v843 = vadd.f32 %v841, %v842
  %vm844 = vcmask 254976
  %v845 = vsel %vm844, %v695, 0.0
  %v846 = vadd.f32 %v843, %v845
  %v847 = vrot.slane %v846, 4
  %v848 = vadd.f32 %v846, %v847
  %v849 = vrot.slane %v848, 2
  %v850 = vadd.f32 %v848, %v849
  %v851 = vrot.slane %v850, 1
  %v852 = vadd.f32 %v850, %v851
  %v853 = vmul.f32 %v852, 0.0017301039
  %v854 = vmul.f32 %v407, %v407
  %v855 = vmul.f32 %v410, %v410
  %v856 = vmul.f32 %v415, %v415
  %v857 = vmul.f32 %v418, %v418
  %v858 = vmul.f32 %v423, %v423
  %v859 = vmul.f32 %v426, %v426
  %v860 = vmul.f32 %v431, %v431
  %v861 = vmul.f32 %v434, %v434
  %v862 = vmul.f32 %v439, %v439
  %v863 = vmul.f32 %v442, %v442
  %v864 = vmul.f32 %v447, %v447
  %v865 = vmul.f32 %v450, %v450
  %v866 = vmul.f32 %v455, %v455
  %v867 = vmul.f32 %v458, %v458
  %v868 = vmul.f32 %v463, %v463
  %v869 = vmul.f32 %v466, %v466
  %v870 = vmul.f32 %v471, %v471
  %v871 = vmul.f32 %v474, %v474
  %v872 = vmul.f32 %v479, %v479
  %v873 = vmul.f32 %v482, %v482
  %v874 = vmul.f32 %v487, %v487
  %v875 = vmul.f32 %v490, %v490
  %v876 = vmul.f32 %v495, %v495
  %v877 = vmul.f32 %v498, %v498
  %v878 = vmul.f32 %v503, %v503
  %v879 = vmul.f32 %v506, %v506
  %v880 = vmul.f32 %v511, %v511
  %v881 = vmul.f32 %v514, %v514
  %v882 = vmul.f32 %v519, %v519
  %v883 = vmul.f32 %v522, %v522
  %v884 = vmul.f32 %v527, %v527
  %v885 = vmul.f32 %v530, %v530
  %v886 = vmul.f32 %v535, %v535
  %v887 = vmul.f32 %v538, %v538
  %v888 = vmul.f32 %v543, %v543
  %v889 = vmul.f32 %v546, %v546
  %v890 = vmul.f32 %v551, %v551
  %v891 = vmul.f32 %v554, %v554
  %v892 = vmul.f32 %v559, %v559
  %v893 = vmul.f32 %v562, %v562
  %v894 = vmul.f32 %v567, %v567
  %v895 = vmul.f32 %v570, %v570
  %v896 = vmul.f32 %v575, %v575
  %v897 = vmul.f32 %v578, %v578
  %v898 = vmul.f32 %v583, %v583
  %v899 = vmul.f32 %v586, %v586
  %v900 = vmul.f32 %v591, %v591
  %v901 = vmul.f32 %v594, %v594
  %v902 = vmul.f32 %v599, %v599
  %v903 = vmul.f32 %v602, %v602
  %v904 = vmul.f32 %v607, %v607
  %v905 = vmul.f32 %v610, %v610
  %v906 = vmul.f32 %v615, %v615
  %v907 = vmul.f32 %v618, %v618
  %v908 = vmul.f32 %v623, %v623
  %v909 = vmul.f32 %v626, %v626
  %v910 = vmul.f32 %v631, %v631
  %v911 = vmul.f32 %v634, %v634
  %v912 = vmul.f32 %v639, %v639
  %v913 = vmul.f32 %v642, %v642
  %v914 = vmul.f32 %v647, %v647
  %v915 = vmul.f32 %v650, %v650
  %v916 = vmul.f32 %v655, %v655
  %v917 = vmul.f32 %v658, %v658
  %v918 = vmul.f32 %v663, %v663
  %v919 = vmul.f32 %v666, %v666
  %v920 = vmul.f32 %v671, %v671
  %v921 = vmul.f32 %v674, %v674
  %v922 = vmul.f32 %v679, %v679
  %v923 = vmul.f32 %v682, %v682
  %v924 = vmul.f32 %v687, %v687
  %v925 = vmul.f32 %v690, %v690
  %v926 = vmul.f32 %v695, %v695
  %v927 = vsel %vm700, %v854, 0.0
  %v928 = vsel %vm700, %v855, 0.0
  %v929 = vadd.f32 %v927, %v928
  %v930 = vsel %vm700, %v856, 0.0
  %v931 = vadd.f32 %v929, %v930
  %v932 = vsel %vm700, %v857, 0.0
  %v933 = vadd.f32 %v931, %v932
  %v934 = vsel %vm700, %v858, 0.0
  %v935 = vadd.f32 %v933, %v934
  %v936 = vsel %vm700, %v859, 0.0
  %v937 = vadd.f32 %v935, %v936
  %v938 = vsel %vm700, %v860, 0.0
  %v939 = vadd.f32 %v937, %v938
  %v940 = vsel %vm700, %v861, 0.0
  %v941 = vadd.f32 %v939, %v940
  %v942 = vsel %vm700, %v862, 0.0
  %v943 = vadd.f32 %v941, %v942
  %v944 = vsel %vm700, %v863, 0.0
  %v945 = vadd.f32 %v943, %v944
  %v946 = vsel %vm700, %v864, 0.0
  %v947 = vadd.f32 %v945, %v946
  %v948 = vsel %vm700, %v865, 0.0
  %v949 = vadd.f32 %v947, %v948
  %v950 = vsel %vm700, %v866, 0.0
  %v951 = vadd.f32 %v949, %v950
  %v952 = vsel %vm700, %v867, 0.0
  %v953 = vadd.f32 %v951, %v952
  %v954 = vsel %vm700, %v868, 0.0
  %v955 = vadd.f32 %v953, %v954
  %v956 = vsel %vm700, %v869, 0.0
  %v957 = vadd.f32 %v955, %v956
  %v958 = vsel %vm700, %v870, 0.0
  %v959 = vadd.f32 %v957, %v958
  %v960 = vsel %vm700, %v871, 0.0
  %v961 = vadd.f32 %v959, %v960
  %v962 = vsel %vm700, %v872, 0.0
  %v963 = vadd.f32 %v961, %v962
  %v964 = vsel %vm700, %v873, 0.0
  %v965 = vadd.f32 %v963, %v964
  %v966 = vsel %vm700, %v874, 0.0
  %v967 = vadd.f32 %v965, %v966
  %v968 = vsel %vm700, %v875, 0.0
  %v969 = vadd.f32 %v967, %v968
  %v970 = vsel %vm700, %v876, 0.0
  %v971 = vadd.f32 %v969, %v970
  %v972 = vsel %vm700, %v877, 0.0
  %v973 = vadd.f32 %v971, %v972
  %v974 = vsel %vm700, %v878, 0.0
  %v975 = vadd.f32 %v973, %v974
  %v976 = vsel %vm700, %v879, 0.0
  %v977 = vadd.f32 %v975, %v976
  %v978 = vsel %vm700, %v880, 0.0
  %v979 = vadd.f32 %v977, %v978
  %v980 = vsel %vm700, %v881, 0.0
  %v981 = vadd.f32 %v979, %v980
  %v982 = vsel %vm700, %v882, 0.0
  %v983 = vadd.f32 %v981, %v982
  %v984 = vsel %vm700, %v883, 0.0
  %v985 = vadd.f32 %v983, %v984
  %v986 = vsel %vm700, %v884, 0.0
  %v987 = vadd.f32 %v985, %v986
  %v988 = vsel %vm700, %v885, 0.0
  %v989 = vadd.f32 %v987, %v988
  %v990 = vsel %vm700, %v886, 0.0
  %v991 = vadd.f32 %v989, %v990
  %v992 = vsel %vm700, %v887, 0.0
  %v993 = vadd.f32 %v991, %v992
  %v994 = vsel %vm700, %v888, 0.0
  %v995 = vadd.f32 %v993, %v994
  %v996 = vsel %vm700, %v889, 0.0
  %v997 = vadd.f32 %v995, %v996
  %v998 = vsel %vm700, %v890, 0.0
  %v999 = vadd.f32 %v997, %v998
  %v1000 = vsel %vm700, %v891, 0.0
  %v1001 = vadd.f32 %v999, %v1000
  %v1002 = vsel %vm700, %v892, 0.0
  %v1003 = vadd.f32 %v1001, %v1002
  %v1004 = vsel %vm700, %v893, 0.0
  %v1005 = vadd.f32 %v1003, %v1004
  %v1006 = vsel %vm700, %v894, 0.0
  %v1007 = vadd.f32 %v1005, %v1006
  %v1008 = vsel %vm700, %v895, 0.0
  %v1009 = vadd.f32 %v1007, %v1008
  %v1010 = vsel %vm700, %v896, 0.0
  %v1011 = vadd.f32 %v1009, %v1010
  %v1012 = vsel %vm700, %v897, 0.0
  %v1013 = vadd.f32 %v1011, %v1012
  %v1014 = vsel %vm700, %v898, 0.0
  %v1015 = vadd.f32 %v1013, %v1014
  %v1016 = vsel %vm700, %v899, 0.0
  %v1017 = vadd.f32 %v1015, %v1016
  %v1018 = vsel %vm700, %v900, 0.0
  %v1019 = vadd.f32 %v1017, %v1018
  %v1020 = vsel %vm700, %v901, 0.0
  %v1021 = vadd.f32 %v1019, %v1020
  %v1022 = vsel %vm700, %v902, 0.0
  %v1023 = vadd.f32 %v1021, %v1022
  %v1024 = vsel %vm700, %v903, 0.0
  %v1025 = vadd.f32 %v1023, %v1024
  %v1026 = vsel %vm700, %v904, 0.0
  %v1027 = vadd.f32 %v1025, %v1026
  %v1028 = vsel %vm700, %v905, 0.0
  %v1029 = vadd.f32 %v1027, %v1028
  %v1030 = vsel %vm700, %v906, 0.0
  %v1031 = vadd.f32 %v1029, %v1030
  %v1032 = vsel %vm700, %v907, 0.0
  %v1033 = vadd.f32 %v1031, %v1032
  %v1034 = vsel %vm700, %v908, 0.0
  %v1035 = vadd.f32 %v1033, %v1034
  %v1036 = vsel %vm700, %v909, 0.0
  %v1037 = vadd.f32 %v1035, %v1036
  %v1038 = vsel %vm700, %v910, 0.0
  %v1039 = vadd.f32 %v1037, %v1038
  %v1040 = vsel %vm700, %v911, 0.0
  %v1041 = vadd.f32 %v1039, %v1040
  %v1042 = vsel %vm700, %v912, 0.0
  %v1043 = vadd.f32 %v1041, %v1042
  %v1044 = vsel %vm700, %v913, 0.0
  %v1045 = vadd.f32 %v1043, %v1044
  %v1046 = vsel %vm700, %v914, 0.0
  %v1047 = vadd.f32 %v1045, %v1046
  %v1048 = vsel %vm700, %v915, 0.0
  %v1049 = vadd.f32 %v1047, %v1048
  %v1050 = vsel %vm700, %v916, 0.0
  %v1051 = vadd.f32 %v1049, %v1050
  %v1052 = vsel %vm700, %v917, 0.0
  %v1053 = vadd.f32 %v1051, %v1052
  %v1054 = vsel %vm700, %v918, 0.0
  %v1055 = vadd.f32 %v1053, %v1054
  %v1056 = vsel %vm700, %v919, 0.0
  %v1057 = vadd.f32 %v1055, %v1056
  %v1058 = vsel %vm700, %v920, 0.0
  %v1059 = vadd.f32 %v1057, %v1058
  %v1060 = vsel %vm700, %v921, 0.0
  %v1061 = vadd.f32 %v1059, %v1060
  %v1062 = vsel %vm700, %v922, 0.0
  %v1063 = vadd.f32 %v1061, %v1062
  %v1064 = vsel %vm700, %v923, 0.0
  %v1065 = vadd.f32 %v1063, %v1064
  %v1066 = vsel %vm700, %v924, 0.0
  %v1067 = vadd.f32 %v1065, %v1066
  %v1068 = vsel %vm700, %v925, 0.0
  %v1069 = vadd.f32 %v1067, %v1068
  %v1070 = vsel %vm844, %v926, 0.0
  %v1071 = vadd.f32 %v1069, %v1070
  %v1072 = vrot.slane %v1071, 4
  %v1073 = vadd.f32 %v1071, %v1072
  %v1074 = vrot.slane %v1073, 2
  %v1075 = vadd.f32 %v1073, %v1074
  %v1076 = vrot.slane %v1075, 1
  %v1077 = vadd.f32 %v1075, %v1076
  %v1078 = vmul.f32 %v1077, 0.0017301039
  %v1079 = vmul.f32 %v853, %v853
  %v1080 = vsub.f32 %v1078, %v1079
  %v1081 = vmax.f32 %v1080, 0.0
  %v1082 = vadd.f32 %v1081, 1e-05
  %v1083 = vrsqrt.pop %v1082
  %v1084 = vld [vmem:[%s2] sm:$0x1]
  %v1085 = vmul.f32 %v1084, %v1083
  %v1086 = vmul.f32 %v1085, 0.25
  %v1087 = vld [vmem:[%s2 + $0x1] sm:$0x1]
  %v1088 = vmul.f32 %v1087, 0.25
  %v1089 = vmul.f32 %v853, %v1086
  %v1090 = vsub.f32 %v1088, %v1089
  %v1091 = vlaneseq
  %v1092 = vshrl.u32 %v1091, 7
  %v1093 = vsub.s32 0, %v1092
  %v1094 = vrot.slane %v1086, %v1093
  %v1095 = vmul.f32 %v407, %v1094
  %v1096 = vmul.f32 %v410, %v1094
  %v1097 = vmul.f32 %v415, %v1094
  %v1098 = vmul.f32 %v418, %v1094
  %v1099 = vmul.f32 %v423, %v1094
  %v1100 = vmul.f32 %v426, %v1094
  %v1101 = vmul.f32 %v431, %v1094
  %v1102 = vmul.f32 %v434, %v1094
  %v1103 = vmul.f32 %v439, %v1094
  %v1104 = vmul.f32 %v442, %v1094
  %v1105 = vmul.f32 %v447, %v1094
  %v1106 = vmul.f32 %v450, %v1094
  %v1107 = vmul.f32 %v455, %v1094
  %v1108 = vmul.f32 %v458, %v1094
  %v1109 = vmul.f32 %v463, %v1094
  %v1110 = vmul.f32 %v466, %v1094
  %v1111 = vmul.f32 %v471, %v1094
  %v1112 = vmul.f32 %v474, %v1094
  %v1113 = vmul.f32 %v479, %v1094
  %v1114 = vmul.f32 %v482, %v1094
  %v1115 = vmul.f32 %v487, %v1094
  %v1116 = vmul.f32 %v490, %v1094
  %v1117 = vmul.f32 %v495, %v1094
  %v1118 = vmul.f32 %v498, %v1094
  %v1119 = vmul.f32 %v503, %v1094
  %v1120 = vmul.f32 %v506, %v1094
  %v1121 = vmul.f32 %v511, %v1094
  %v1122 = vmul.f32 %v514, %v1094
  %v1123 = vmul.f32 %v519, %v1094
  %v1124 = vmul.f32 %v522, %v1094
  %v1125 = vmul.f32 %v527, %v1094
  %v1126 = vmul.f32 %v530, %v1094
  %v1127 = vmul.f32 %v535, %v1094
  %v1128 = vmul.f32 %v538, %v1094
  %v1129 = vmul.f32 %v551, %v1094
  %v1130 = vmul.f32 %v554, %v1094
  %v1131 = vmul.f32 %v559, %v1094
  %v1132 = vmul.f32 %v562, %v1094
  %v1133 = vmul.f32 %v567, %v1094
  %v1134 = vmul.f32 %v570, %v1094
  %v1135 = vmul.f32 %v575, %v1094
  %v1136 = vmul.f32 %v578, %v1094
  %v1137 = vmul.f32 %v583, %v1094
  %v1138 = vmul.f32 %v586, %v1094
  %v1139 = vmul.f32 %v591, %v1094
  %v1140 = vmul.f32 %v594, %v1094
  %v1141 = vmul.f32 %v599, %v1094
  %v1142 = vmul.f32 %v602, %v1094
  %v1143 = vmul.f32 %v607, %v1094
  %v1144 = vmul.f32 %v610, %v1094
  %v1145 = vmul.f32 %v615, %v1094
  %v1146 = vmul.f32 %v618, %v1094
  %v1147 = vmul.f32 %v623, %v1094
  %v1148 = vmul.f32 %v626, %v1094
  %v1149 = vmul.f32 %v631, %v1094
  %v1150 = vmul.f32 %v634, %v1094
  %v1151 = vmul.f32 %v639, %v1094
  %v1152 = vmul.f32 %v642, %v1094
  %v1153 = vmul.f32 %v647, %v1094
  %v1154 = vmul.f32 %v650, %v1094
  %v1155 = vmul.f32 %v655, %v1094
  %v1156 = vmul.f32 %v658, %v1094
  %v1157 = vmul.f32 %v663, %v1094
  %v1158 = vmul.f32 %v666, %v1094
  %v1159 = vmul.f32 %v671, %v1094
  %v1160 = vmul.f32 %v674, %v1094
  %v1161 = vmul.f32 %v679, %v1094
  %v1162 = vmul.f32 %v682, %v1094
  %v1163 = vlaneseq
  %v1164 = vshrl.u32 %v1163, 7
  %v1165 = vsub.s32 0, %v1164
  %v1166 = vrot.slane %v1090, %v1165
  %v1167 = vadd.f32 %v1095, %v1166
  %v1168 = vadd.f32 %v1096, %v1166
  %v1169 = vadd.f32 %v1097, %v1166
  %v1170 = vadd.f32 %v1098, %v1166
  %v1171 = vadd.f32 %v1099, %v1166
  %v1172 = vadd.f32 %v1100, %v1166
  %v1173 = vadd.f32 %v1101, %v1166
  %v1174 = vadd.f32 %v1102, %v1166
  %v1175 = vadd.f32 %v1103, %v1166
  %v1176 = vadd.f32 %v1104, %v1166
  %v1177 = vadd.f32 %v1105, %v1166
  %v1178 = vadd.f32 %v1106, %v1166
  %v1179 = vadd.f32 %v1107, %v1166
  %v1180 = vadd.f32 %v1108, %v1166
  %v1181 = vadd.f32 %v1109, %v1166
  %v1182 = vadd.f32 %v1110, %v1166
  %v1183 = vadd.f32 %v1111, %v1166
  %v1184 = vadd.f32 %v1112, %v1166
  %v1185 = vadd.f32 %v1113, %v1166
  %v1186 = vadd.f32 %v1114, %v1166
  %v1187 = vadd.f32 %v1115, %v1166
  %v1188 = vadd.f32 %v1116, %v1166
  %v1189 = vadd.f32 %v1117, %v1166
  %v1190 = vadd.f32 %v1118, %v1166
  %v1191 = vadd.f32 %v1119, %v1166
  %v1192 = vadd.f32 %v1120, %v1166
  %v1193 = vadd.f32 %v1121, %v1166
  %v1194 = vadd.f32 %v1122, %v1166
  %v1195 = vadd.f32 %v1123, %v1166
  %v1196 = vadd.f32 %v1124, %v1166
  %v1197 = vadd.f32 %v1125, %v1166
  %v1198 = vadd.f32 %v1126, %v1166
  %v1199 = vadd.f32 %v1127, %v1166
  %v1200 = vadd.f32 %v1128, %v1166
  %v1201 = vadd.f32 %v1129, %v1166
  %v1202 = vadd.f32 %v1130, %v1166
  %v1203 = vadd.f32 %v1131, %v1166
  %v1204 = vadd.f32 %v1132, %v1166
  %v1205 = vadd.f32 %v1133, %v1166
  %v1206 = vadd.f32 %v1134, %v1166
  %v1207 = vadd.f32 %v1135, %v1166
  %v1208 = vadd.f32 %v1136, %v1166
  %v1209 = vadd.f32 %v1137, %v1166
  %v1210 = vadd.f32 %v1138, %v1166
  %v1211 = vadd.f32 %v1139, %v1166
  %v1212 = vadd.f32 %v1140, %v1166
  %v1213 = vadd.f32 %v1141, %v1166
  %v1214 = vadd.f32 %v1142, %v1166
  %v1215 = vadd.f32 %v1143, %v1166
  %v1216 = vadd.f32 %v1144, %v1166
  %v1217 = vadd.f32 %v1145, %v1166
  %v1218 = vadd.f32 %v1146, %v1166
  %v1219 = vadd.f32 %v1147, %v1166
  %v1220 = vadd.f32 %v1148, %v1166
  %v1221 = vadd.f32 %v1149, %v1166
  %v1222 = vadd.f32 %v1150, %v1166
  %v1223 = vadd.f32 %v1151, %v1166
  %v1224 = vadd.f32 %v1152, %v1166
  %v1225 = vadd.f32 %v1153, %v1166
  %v1226 = vadd.f32 %v1154, %v1166
  %v1227 = vadd.f32 %v1155, %v1166
  %v1228 = vadd.f32 %v1156, %v1166
  %v1229 = vadd.f32 %v1157, %v1166
  %v1230 = vadd.f32 %v1158, %v1166
  %v1231 = vadd.f32 %v1159, %v1166
  %v1232 = vadd.f32 %v1160, %v1166
  %v1233 = vadd.f32 %v1161, %v1166
  %v1234 = vadd.f32 %v1162, %v1166
  %v1235 = vmax.f32 %v1167, 0.0
  %v1236 = vmax.f32 %v1168, 0.0
  %v1237 = vmax.f32 %v1169, 0.0
  %v1238 = vmax.f32 %v1170, 0.0
  %v1239 = vmax.f32 %v1171, 0.0
  %v1240 = vmax.f32 %v1172, 0.0
  %v1241 = vmax.f32 %v1173, 0.0
  %v1242 = vmax.f32 %v1174, 0.0
  %v1243 = vmax.f32 %v1175, 0.0
  %v1244 = vmax.f32 %v1176, 0.0
  %v1245 = vmax.f32 %v1177, 0.0
  %v1246 = vmax.f32 %v1178, 0.0
  %v1247 = vmax.f32 %v1179, 0.0
  %v1248 = vmax.f32 %v1180, 0.0
  %v1249 = vmax.f32 %v1181, 0.0
  %v1250 = vmax.f32 %v1182, 0.0
  %v1251 = vmax.f32 %v1183, 0.0
  %v1252 = vmax.f32 %v1184, 0.0
  %v1253 = vmax.f32 %v1185, 0.0
  %v1254 = vmax.f32 %v1186, 0.0
  %v1255 = vmax.f32 %v1187, 0.0
  %v1256 = vmax.f32 %v1188, 0.0
  %v1257 = vmax.f32 %v1189, 0.0
  %v1258 = vmax.f32 %v1190, 0.0
  %v1259 = vmax.f32 %v1191, 0.0
  %v1260 = vmax.f32 %v1192, 0.0
  %v1261 = vmax.f32 %v1193, 0.0
  %v1262 = vmax.f32 %v1194, 0.0
  %v1263 = vmax.f32 %v1195, 0.0
  %v1264 = vmax.f32 %v1196, 0.0
  %v1265 = vmax.f32 %v1197, 0.0
  %v1266 = vmax.f32 %v1198, 0.0
  %v1267 = vmax.f32 %v1199, 0.0
  %v1268 = vmax.f32 %v1200, 0.0
  %v1269 = vmax.f32 %v1201, 0.0
  %v1270 = vmax.f32 %v1202, 0.0
  %v1271 = vmax.f32 %v1203, 0.0
  %v1272 = vmax.f32 %v1204, 0.0
  %v1273 = vmax.f32 %v1205, 0.0
  %v1274 = vmax.f32 %v1206, 0.0
  %v1275 = vmax.f32 %v1207, 0.0
  %v1276 = vmax.f32 %v1208, 0.0
  %v1277 = vmax.f32 %v1209, 0.0
  %v1278 = vmax.f32 %v1210, 0.0
  %v1279 = vmax.f32 %v1211, 0.0
  %v1280 = vmax.f32 %v1212, 0.0
  %v1281 = vmax.f32 %v1213, 0.0
  %v1282 = vmax.f32 %v1214, 0.0
  %v1283 = vmax.f32 %v1215, 0.0
  %v1284 = vmax.f32 %v1216, 0.0
  %v1285 = vmax.f32 %v1217, 0.0
  %v1286 = vmax.f32 %v1218, 0.0
  %v1287 = vmax.f32 %v1219, 0.0
  %v1288 = vmax.f32 %v1220, 0.0
  %v1289 = vmax.f32 %v1221, 0.0
  %v1290 = vmax.f32 %v1222, 0.0
  %v1291 = vmax.f32 %v1223, 0.0
  %v1292 = vmax.f32 %v1224, 0.0
  %v1293 = vmax.f32 %v1225, 0.0
  %v1294 = vmax.f32 %v1226, 0.0
  %v1295 = vmax.f32 %v1227, 0.0
  %v1296 = vmax.f32 %v1228, 0.0
  %v1297 = vmax.f32 %v1229, 0.0
  %v1298 = vmax.f32 %v1230, 0.0
  %v1299 = vmax.f32 %v1231, 0.0
  %v1300 = vmax.f32 %v1232, 0.0
  %v1301 = vmax.f32 %v1233, 0.0
  %v1302 = vmax.f32 %v1234, 0.0
  %v1371 = vcombine.high %v1235, %v1235
  %v1373 = vunpack.c.l.s4 1966171168
  %v1374 = vunpack.c.0.s8 %v1373
  %v1375 = vlaneseq
  %v1376 = vshrl.u32 %v1375, 7
  %v1377 = vsub.s32 %v1374, %v1376
  %v1378 = vrot.slane %v1235, %v1377
  %v1380 = vunpack.c.l.s4 1966171168
  %v1381 = vunpack.c.0.s8 %v1380
  %v1382 = vlaneseq
  %v1383 = vshrl.u32 %v1382, 7
  %v1384 = vsub.s32 %v1381, %v1383
  %v1385 = vrot.slane %v1371, %v1384
  %v1386 = vcombine.high %v1378, %v1378
  %v1387 = vcombine.high %v1385, %v1385
  %v1389 = vunpack.c.l.s4 1966171168
  %v1390 = vunpack.c.0.s8 %v1389
  %v1391 = vlaneseq
  %v1392 = vshrl.u32 %v1391, 7
  %v1393 = vsub.s32 %v1390, %v1392
  %v1394 = vrot.slane %v1378, %v1393
  %v1396 = vunpack.c.l.s4 1966171168
  %v1397 = vunpack.c.0.s8 %v1396
  %v1398 = vlaneseq
  %v1399 = vshrl.u32 %v1398, 7
  %v1400 = vsub.s32 %v1397, %v1399
  %v1401 = vrot.slane %v1385, %v1400
  %v1403 = vunpack.c.l.s4 1966171168
  %v1404 = vunpack.c.0.s8 %v1403
  %v1405 = vlaneseq
  %v1406 = vshrl.u32 %v1405, 7
  %v1407 = vsub.s32 %v1404, %v1406
  %v1408 = vrot.slane %v1386, %v1407
  %v1410 = vunpack.c.l.s4 1966171168
  %v1411 = vunpack.c.0.s8 %v1410
  %v1412 = vlaneseq
  %v1413 = vshrl.u32 %v1412, 7
  %v1414 = vsub.s32 %v1411, %v1413
  %v1415 = vrot.slane %v1387, %v1414
  %v1416 = vcombine.high %v1394, %v1394
  %v1417 = vcombine.high %v1401, %v1401
  %v1418 = vcombine.high %v1408, %v1408
  %v1419 = vcombine.high %v1415, %v1415
  %v1420 = vcombine.high %v1236, %v1236
  %v1422 = vunpack.c.l.s4 1966171168
  %v1423 = vunpack.c.0.s8 %v1422
  %v1424 = vlaneseq
  %v1425 = vshrl.u32 %v1424, 7
  %v1426 = vsub.s32 %v1423, %v1425
  %v1427 = vrot.slane %v1236, %v1426
  %v1429 = vunpack.c.l.s4 1966171168
  %v1430 = vunpack.c.0.s8 %v1429
  %v1431 = vlaneseq
  %v1432 = vshrl.u32 %v1431, 7
  %v1433 = vsub.s32 %v1430, %v1432
  %v1434 = vrot.slane %v1420, %v1433
  %v1435 = vcombine.high %v1427, %v1427
  %v1436 = vcombine.high %v1434, %v1434
  %v1438 = vunpack.c.l.s4 1966171168
  %v1439 = vunpack.c.0.s8 %v1438
  %v1440 = vlaneseq
  %v1441 = vshrl.u32 %v1440, 7
  %v1442 = vsub.s32 %v1439, %v1441
  %v1443 = vrot.slane %v1427, %v1442
  %v1445 = vunpack.c.l.s4 1966171168
  %v1446 = vunpack.c.0.s8 %v1445
  %v1447 = vlaneseq
  %v1448 = vshrl.u32 %v1447, 7
  %v1449 = vsub.s32 %v1446, %v1448
  %v1450 = vrot.slane %v1434, %v1449
  %v1452 = vunpack.c.l.s4 1966171168
  %v1453 = vunpack.c.0.s8 %v1452
  %v1454 = vlaneseq
  %v1455 = vshrl.u32 %v1454, 7
  %v1456 = vsub.s32 %v1453, %v1455
  %v1457 = vrot.slane %v1435, %v1456
  %v1459 = vunpack.c.l.s4 1966171168
  %v1460 = vunpack.c.0.s8 %v1459
  %v1461 = vlaneseq
  %v1462 = vshrl.u32 %v1461, 7
  %v1463 = vsub.s32 %v1460, %v1462
  %v1464 = vrot.slane %v1436, %v1463
  %v1465 = vcombine.high %v1443, %v1443
  %v1466 = vcombine.high %v1450, %v1450
  %v1467 = vcombine.high %v1457, %v1457
  %v1468 = vcombine.high %v1464, %v1464
  %v1469 = vcombine.high %v1237, %v1237
  %v1471 = vunpack.c.l.s4 1966171168
  %v1472 = vunpack.c.0.s8 %v1471
  %v1473 = vlaneseq
  %v1474 = vshrl.u32 %v1473, 7
  %v1475 = vsub.s32 %v1472, %v1474
  %v1476 = vrot.slane %v1237, %v1475
  %v1478 = vunpack.c.l.s4 1966171168
  %v1479 = vunpack.c.0.s8 %v1478
  %v1480 = vlaneseq
  %v1481 = vshrl.u32 %v1480, 7
  %v1482 = vsub.s32 %v1479, %v1481
  %v1483 = vrot.slane %v1469, %v1482
  %v1484 = vcombine.high %v1476, %v1476
  %v1485 = vcombine.high %v1483, %v1483
  %v1487 = vunpack.c.l.s4 1966171168
  %v1488 = vunpack.c.0.s8 %v1487
  %v1489 = vlaneseq
  %v1490 = vshrl.u32 %v1489, 7
  %v1491 = vsub.s32 %v1488, %v1490
  %v1492 = vrot.slane %v1476, %v1491
  %v1494 = vunpack.c.l.s4 1966171168
  %v1495 = vunpack.c.0.s8 %v1494
  %v1496 = vlaneseq
  %v1497 = vshrl.u32 %v1496, 7
  %v1498 = vsub.s32 %v1495, %v1497
  %v1499 = vrot.slane %v1483, %v1498
  %v1501 = vunpack.c.l.s4 1966171168
  %v1502 = vunpack.c.0.s8 %v1501
  %v1503 = vlaneseq
  %v1504 = vshrl.u32 %v1503, 7
  %v1505 = vsub.s32 %v1502, %v1504
  %v1506 = vrot.slane %v1484, %v1505
  %v1508 = vunpack.c.l.s4 1966171168
  %v1509 = vunpack.c.0.s8 %v1508
  %v1510 = vlaneseq
  %v1511 = vshrl.u32 %v1510, 7
  %v1512 = vsub.s32 %v1509, %v1511
  %v1513 = vrot.slane %v1485, %v1512
  %v1514 = vcombine.high %v1492, %v1492
  %v1515 = vcombine.high %v1499, %v1499
  %v1516 = vcombine.high %v1506, %v1506
  %v1517 = vcombine.high %v1513, %v1513
  %v1518 = vcombine.high %v1238, %v1238
  %v1520 = vunpack.c.l.s4 1966171168
  %v1521 = vunpack.c.0.s8 %v1520
  %v1522 = vlaneseq
  %v1523 = vshrl.u32 %v1522, 7
  %v1524 = vsub.s32 %v1521, %v1523
  %v1525 = vrot.slane %v1238, %v1524
  %v1527 = vunpack.c.l.s4 1966171168
  %v1528 = vunpack.c.0.s8 %v1527
  %v1529 = vlaneseq
  %v1530 = vshrl.u32 %v1529, 7
  %v1531 = vsub.s32 %v1528, %v1530
  %v1532 = vrot.slane %v1518, %v1531
  %v1533 = vcombine.high %v1525, %v1525
  %v1534 = vcombine.high %v1532, %v1532
  %v1536 = vunpack.c.l.s4 1966171168
  %v1537 = vunpack.c.0.s8 %v1536
  %v1538 = vlaneseq
  %v1539 = vshrl.u32 %v1538, 7
  %v1540 = vsub.s32 %v1537, %v1539
  %v1541 = vrot.slane %v1525, %v1540
  %v1543 = vunpack.c.l.s4 1966171168
  %v1544 = vunpack.c.0.s8 %v1543
  %v1545 = vlaneseq
  %v1546 = vshrl.u32 %v1545, 7
  %v1547 = vsub.s32 %v1544, %v1546
  %v1548 = vrot.slane %v1532, %v1547
  %v1550 = vunpack.c.l.s4 1966171168
  %v1551 = vunpack.c.0.s8 %v1550
  %v1552 = vlaneseq
  %v1553 = vshrl.u32 %v1552, 7
  %v1554 = vsub.s32 %v1551, %v1553
  %v1555 = vrot.slane %v1533, %v1554
  %v1557 = vunpack.c.l.s4 1966171168
  %v1558 = vunpack.c.0.s8 %v1557
  %v1559 = vlaneseq
  %v1560 = vshrl.u32 %v1559, 7
  %v1561 = vsub.s32 %v1558, %v1560
  %v1562 = vrot.slane %v1534, %v1561
  %v1563 = vcombine.high %v1541, %v1541
  %v1564 = vcombine.high %v1548, %v1548
  %v1565 = vcombine.high %v1555, %v1555
  %v1566 = vcombine.high %v1562, %v1562
  %v1567 = vcombine.high %v1239, %v1239
  %v1569 = vunpack.c.l.s4 1966171168
  %v1570 = vunpack.c.0.s8 %v1569
  %v1571 = vlaneseq
  %v1572 = vshrl.u32 %v1571, 7
  %v1573 = vsub.s32 %v1570, %v1572
  %v1574 = vrot.slane %v1239, %v1573
  %v1576 = vunpack.c.l.s4 1966171168
  %v1577 = vunpack.c.0.s8 %v1576
  %v1578 = vlaneseq
  %v1579 = vshrl.u32 %v1578, 7
  %v1580 = vsub.s32 %v1577, %v1579
  %v1581 = vrot.slane %v1567, %v1580
  %v1582 = vcombine.high %v1574, %v1574
  %v1583 = vcombine.high %v1581, %v1581
  %v1585 = vunpack.c.l.s4 1966171168
  %v1586 = vunpack.c.0.s8 %v1585
  %v1587 = vlaneseq
  %v1588 = vshrl.u32 %v1587, 7
  %v1589 = vsub.s32 %v1586, %v1588
  %v1590 = vrot.slane %v1574, %v1589
  %v1592 = vunpack.c.l.s4 1966171168
  %v1593 = vunpack.c.0.s8 %v1592
  %v1594 = vlaneseq
  %v1595 = vshrl.u32 %v1594, 7
  %v1596 = vsub.s32 %v1593, %v1595
  %v1597 = vrot.slane %v1581, %v1596
  %v1599 = vunpack.c.l.s4 1966171168
  %v1600 = vunpack.c.0.s8 %v1599
  %v1601 = vlaneseq
  %v1602 = vshrl.u32 %v1601, 7
  %v1603 = vsub.s32 %v1600, %v1602
  %v1604 = vrot.slane %v1582, %v1603
  %v1606 = vunpack.c.l.s4 1966171168
  %v1607 = vunpack.c.0.s8 %v1606
  %v1608 = vlaneseq
  %v1609 = vshrl.u32 %v1608, 7
  %v1610 = vsub.s32 %v1607, %v1609
  %v1611 = vrot.slane %v1583, %v1610
  %v1612 = vcombine.high %v1590, %v1590
  %v1613 = vcombine.high %v1597, %v1597
  %v1614 = vcombine.high %v1604, %v1604
  %v1615 = vcombine.high %v1611, %v1611
  %v1616 = vcombine.high %v1240, %v1240
  %v1618 = vunpack.c.l.s4 1966171168
  %v1619 = vunpack.c.0.s8 %v1618
  %v1620 = vlaneseq
  %v1621 = vshrl.u32 %v1620, 7
  %v1622 = vsub.s32 %v1619, %v1621
  %v1623 = vrot.slane %v1240, %v1622
  %v1625 = vunpack.c.l.s4 1966171168
  %v1626 = vunpack.c.0.s8 %v1625
  %v1627 = vlaneseq
  %v1628 = vshrl.u32 %v1627, 7
  %v1629 = vsub.s32 %v1626, %v1628
  %v1630 = vrot.slane %v1616, %v1629
  %v1631 = vcombine.high %v1623, %v1623
  %v1632 = vcombine.high %v1630, %v1630
  %v1634 = vunpack.c.l.s4 1966171168
  %v1635 = vunpack.c.0.s8 %v1634
  %v1636 = vlaneseq
  %v1637 = vshrl.u32 %v1636, 7
  %v1638 = vsub.s32 %v1635, %v1637
  %v1639 = vrot.slane %v1623, %v1638
  %v1641 = vunpack.c.l.s4 1966171168
  %v1642 = vunpack.c.0.s8 %v1641
  %v1643 = vlaneseq
  %v1644 = vshrl.u32 %v1643, 7
  %v1645 = vsub.s32 %v1642, %v1644
  %v1646 = vrot.slane %v1630, %v1645
  %v1648 = vunpack.c.l.s4 1966171168
  %v1649 = vunpack.c.0.s8 %v1648
  %v1650 = vlaneseq
  %v1651 = vshrl.u32 %v1650, 7
  %v1652 = vsub.s32 %v1649, %v1651
  %v1653 = vrot.slane %v1631, %v1652
  %v1655 = vunpack.c.l.s4 1966171168
  %v1656 = vunpack.c.0.s8 %v1655
  %v1657 = vlaneseq
  %v1658 = vshrl.u32 %v1657, 7
  %v1659 = vsub.s32 %v1656, %v1658
  %v1660 = vrot.slane %v1632, %v1659
  %v1661 = vcombine.high %v1639, %v1639
  %v1662 = vcombine.high %v1646, %v1646
  %v1663 = vcombine.high %v1653, %v1653
  %v1664 = vcombine.high %v1660, %v1660
  %v1665 = vcombine.high %v1241, %v1241
  %v1667 = vunpack.c.l.s4 1966171168
  %v1668 = vunpack.c.0.s8 %v1667
  %v1669 = vlaneseq
  %v1670 = vshrl.u32 %v1669, 7
  %v1671 = vsub.s32 %v1668, %v1670
  %v1672 = vrot.slane %v1241, %v1671
  %v1674 = vunpack.c.l.s4 1966171168
  %v1675 = vunpack.c.0.s8 %v1674
  %v1676 = vlaneseq
  %v1677 = vshrl.u32 %v1676, 7
  %v1678 = vsub.s32 %v1675, %v1677
  %v1679 = vrot.slane %v1665, %v1678
  %v1680 = vcombine.high %v1672, %v1672
  %v1681 = vcombine.high %v1679, %v1679
  %v1683 = vunpack.c.l.s4 1966171168
  %v1684 = vunpack.c.0.s8 %v1683
  %v1685 = vlaneseq
  %v1686 = vshrl.u32 %v1685, 7
  %v1687 = vsub.s32 %v1684, %v1686
  %v1688 = vrot.slane %v1672, %v1687
  %v1690 = vunpack.c.l.s4 1966171168
  %v1691 = vunpack.c.0.s8 %v1690
  %v1692 = vlaneseq
  %v1693 = vshrl.u32 %v1692, 7
  %v1694 = vsub.s32 %v1691, %v1693
  %v1695 = vrot.slane %v1679, %v1694
  %v1697 = vunpack.c.l.s4 1966171168
  %v1698 = vunpack.c.0.s8 %v1697
  %v1699 = vlaneseq
  %v1700 = vshrl.u32 %v1699, 7
  %v1701 = vsub.s32 %v1698, %v1700
  %v1702 = vrot.slane %v1680, %v1701
  %v1704 = vunpack.c.l.s4 1966171168
  %v1705 = vunpack.c.0.s8 %v1704
  %v1706 = vlaneseq
  %v1707 = vshrl.u32 %v1706, 7
  %v1708 = vsub.s32 %v1705, %v1707
  %v1709 = vrot.slane %v1681, %v1708
  %v1710 = vcombine.high %v1695, %v1695
  %v1711 = vcombine.high %v1702, %v1702
  %v1712 = vcombine.high %v1709, %v1709
  %v1713 = vcombine.high %v1242, %v1242
  %v1715 = vunpack.c.l.s4 1966171168
  %v1716 = vunpack.c.0.s8 %v1715
  %v1717 = vlaneseq
  %v1718 = vshrl.u32 %v1717, 7
  %v1719 = vsub.s32 %v1716, %v1718
  %v1720 = vrot.slane %v1242, %v1719
  %v1722 = vunpack.c.l.s4 1966171168
  %v1723 = vunpack.c.0.s8 %v1722
  %v1724 = vlaneseq
  %v1725 = vshrl.u32 %v1724, 7
  %v1726 = vsub.s32 %v1723, %v1725
  %v1727 = vrot.slane %v1713, %v1726
  %v1728 = vcombine.high %v1720, %v1720
  %v1729 = vcombine.high %v1727, %v1727
  %v1731 = vunpack.c.l.s4 1966171168
  %v1732 = vunpack.c.0.s8 %v1731
  %v1733 = vlaneseq
  %v1734 = vshrl.u32 %v1733, 7
  %v1735 = vsub.s32 %v1732, %v1734
  %v1736 = vrot.slane %v1720, %v1735
  %v1738 = vunpack.c.l.s4 1966171168
  %v1739 = vunpack.c.0.s8 %v1738
  %v1740 = vlaneseq
  %v1741 = vshrl.u32 %v1740, 7
  %v1742 = vsub.s32 %v1739, %v1741
  %v1743 = vrot.slane %v1727, %v1742
  %v1745 = vunpack.c.l.s4 1966171168
  %v1746 = vunpack.c.0.s8 %v1745
  %v1747 = vlaneseq
  %v1748 = vshrl.u32 %v1747, 7
  %v1749 = vsub.s32 %v1746, %v1748
  %v1750 = vrot.slane %v1728, %v1749
  %v1752 = vunpack.c.l.s4 1966171168
  %v1753 = vunpack.c.0.s8 %v1752
  %v1754 = vlaneseq
  %v1755 = vshrl.u32 %v1754, 7
  %v1756 = vsub.s32 %v1753, %v1755
  %v1757 = vrot.slane %v1729, %v1756
  %v1758 = vcombine.high %v1736, %v1736
  %v1759 = vcombine.high %v1743, %v1743
  %v1760 = vcombine.high %v1750, %v1750
  %v1761 = vcombine.high %v1757, %v1757
  %v1762 = vcombine.high %v1243, %v1243
  %v1764 = vunpack.c.l.s4 1966171168
  %v1765 = vunpack.c.0.s8 %v1764
  %v1766 = vlaneseq
  %v1767 = vshrl.u32 %v1766, 7
  %v1768 = vsub.s32 %v1765, %v1767
  %v1769 = vrot.slane %v1243, %v1768
  %v1771 = vunpack.c.l.s4 1966171168
  %v1772 = vunpack.c.0.s8 %v1771
  %v1773 = vlaneseq
  %v1774 = vshrl.u32 %v1773, 7
  %v1775 = vsub.s32 %v1772, %v1774
  %v1776 = vrot.slane %v1762, %v1775
  %v1777 = vcombine.high %v1769, %v1769
  %v1778 = vcombine.high %v1776, %v1776
  %v1780 = vunpack.c.l.s4 1966171168
  %v1781 = vunpack.c.0.s8 %v1780
  %v1782 = vlaneseq
  %v1783 = vshrl.u32 %v1782, 7
  %v1784 = vsub.s32 %v1781, %v1783
  %v1785 = vrot.slane %v1769, %v1784
  %v1787 = vunpack.c.l.s4 1966171168
  %v1788 = vunpack.c.0.s8 %v1787
  %v1789 = vlaneseq
  %v1790 = vshrl.u32 %v1789, 7
  %v1791 = vsub.s32 %v1788, %v1790
  %v1792 = vrot.slane %v1776, %v1791
  %v1794 = vunpack.c.l.s4 1966171168
  %v1795 = vunpack.c.0.s8 %v1794
  %v1796 = vlaneseq
  %v1797 = vshrl.u32 %v1796, 7
  %v1798 = vsub.s32 %v1795, %v1797
  %v1799 = vrot.slane %v1777, %v1798
  %v1801 = vunpack.c.l.s4 1966171168
  %v1802 = vunpack.c.0.s8 %v1801
  %v1803 = vlaneseq
  %v1804 = vshrl.u32 %v1803, 7
  %v1805 = vsub.s32 %v1802, %v1804
  %v1806 = vrot.slane %v1778, %v1805
  %v1807 = vcombine.high %v1785, %v1785
  %v1808 = vcombine.high %v1792, %v1792
  %v1809 = vcombine.high %v1806, %v1806
  %v1810 = vcombine.high %v1244, %v1244
  %v1812 = vunpack.c.l.s4 1966171168
  %v1813 = vunpack.c.0.s8 %v1812
  %v1814 = vlaneseq
  %v1815 = vshrl.u32 %v1814, 7
  %v1816 = vsub.s32 %v1813, %v1815
  %v1817 = vrot.slane %v1244, %v1816
  %v1819 = vunpack.c.l.s4 1966171168
  %v1820 = vunpack.c.0.s8 %v1819
  %v1821 = vlaneseq
  %v1822 = vshrl.u32 %v1821, 7
  %v1823 = vsub.s32 %v1820, %v1822
  %v1824 = vrot.slane %v1810, %v1823
  %v1825 = vcombine.high %v1817, %v1817
  %v1826 = vcombine.high %v1824, %v1824
  %v1828 = vunpack.c.l.s4 1966171168
  %v1829 = vunpack.c.0.s8 %v1828
  %v1830 = vlaneseq
  %v1831 = vshrl.u32 %v1830, 7
  %v1832 = vsub.s32 %v1829, %v1831
  %v1833 = vrot.slane %v1817, %v1832
  %v1835 = vunpack.c.l.s4 1966171168
  %v1836 = vunpack.c.0.s8 %v1835
  %v1837 = vlaneseq
  %v1838 = vshrl.u32 %v1837, 7
  %v1839 = vsub.s32 %v1836, %v1838
  %v1840 = vrot.slane %v1824, %v1839
  %v1842 = vunpack.c.l.s4 1966171168
  %v1843 = vunpack.c.0.s8 %v1842
  %v1844 = vlaneseq
  %v1845 = vshrl.u32 %v1844, 7
  %v1846 = vsub.s32 %v1843, %v1845
  %v1847 = vrot.slane %v1825, %v1846
  %v1849 = vunpack.c.l.s4 1966171168
  %v1850 = vunpack.c.0.s8 %v1849
  %v1851 = vlaneseq
  %v1852 = vshrl.u32 %v1851, 7
  %v1853 = vsub.s32 %v1850, %v1852
  %v1854 = vrot.slane %v1826, %v1853
  %v1855 = vcombine.high %v1833, %v1833
  %v1856 = vcombine.high %v1840, %v1840
  %v1857 = vcombine.high %v1847, %v1847
  %v1858 = vcombine.high %v1854, %v1854
  %v1859 = vcombine.high %v1245, %v1245
  %v1861 = vunpack.c.l.s4 1966171168
  %v1862 = vunpack.c.0.s8 %v1861
  %v1863 = vlaneseq
  %v1864 = vshrl.u32 %v1863, 7
  %v1865 = vsub.s32 %v1862, %v1864
  %v1866 = vrot.slane %v1245, %v1865
  %v1868 = vunpack.c.l.s4 1966171168
  %v1869 = vunpack.c.0.s8 %v1868
  %v1870 = vlaneseq
  %v1871 = vshrl.u32 %v1870, 7
  %v1872 = vsub.s32 %v1869, %v1871
  %v1873 = vrot.slane %v1859, %v1872
  %v1874 = vcombine.high %v1866, %v1866
  %v1875 = vcombine.high %v1873, %v1873
  %v1877 = vunpack.c.l.s4 1966171168
  %v1878 = vunpack.c.0.s8 %v1877
  %v1879 = vlaneseq
  %v1880 = vshrl.u32 %v1879, 7
  %v1881 = vsub.s32 %v1878, %v1880
  %v1882 = vrot.slane %v1866, %v1881
  %v1884 = vunpack.c.l.s4 1966171168
  %v1885 = vunpack.c.0.s8 %v1884
  %v1886 = vlaneseq
  %v1887 = vshrl.u32 %v1886, 7
  %v1888 = vsub.s32 %v1885, %v1887
  %v1889 = vrot.slane %v1873, %v1888
  %v1891 = vunpack.c.l.s4 1966171168
  %v1892 = vunpack.c.0.s8 %v1891
  %v1893 = vlaneseq
  %v1894 = vshrl.u32 %v1893, 7
  %v1895 = vsub.s32 %v1892, %v1894
  %v1896 = vrot.slane %v1874, %v1895
  %v1898 = vunpack.c.l.s4 1966171168
  %v1899 = vunpack.c.0.s8 %v1898
  %v1900 = vlaneseq
  %v1901 = vshrl.u32 %v1900, 7
  %v1902 = vsub.s32 %v1899, %v1901
  %v1903 = vrot.slane %v1875, %v1902
  %v1904 = vcombine.high %v1882, %v1882
  %v1905 = vcombine.high %v1889, %v1889
  %v1906 = vcombine.high %v1896, %v1896
  %v1907 = vcombine.high %v1903, %v1903
  %v1908 = vcombine.high %v1246, %v1246
  %v1910 = vunpack.c.l.s4 1966171168
  %v1911 = vunpack.c.0.s8 %v1910
  %v1912 = vlaneseq
  %v1913 = vshrl.u32 %v1912, 7
  %v1914 = vsub.s32 %v1911, %v1913
  %v1915 = vrot.slane %v1246, %v1914
  %v1917 = vunpack.c.l.s4 1966171168
  %v1918 = vunpack.c.0.s8 %v1917
  %v1919 = vlaneseq
  %v1920 = vshrl.u32 %v1919, 7
  %v1921 = vsub.s32 %v1918, %v1920
  %v1922 = vrot.slane %v1908, %v1921
  %v1923 = vcombine.high %v1915, %v1915
  %v1924 = vcombine.high %v1922, %v1922
  %v1926 = vunpack.c.l.s4 1966171168
  %v1927 = vunpack.c.0.s8 %v1926
  %v1928 = vlaneseq
  %v1929 = vshrl.u32 %v1928, 7
  %v1930 = vsub.s32 %v1927, %v1929
  %v1931 = vrot.slane %v1915, %v1930
  %v1933 = vunpack.c.l.s4 1966171168
  %v1934 = vunpack.c.0.s8 %v1933
  %v1935 = vlaneseq
  %v1936 = vshrl.u32 %v1935, 7
  %v1937 = vsub.s32 %v1934, %v1936
  %v1938 = vrot.slane %v1922, %v1937
  %v1940 = vunpack.c.l.s4 1966171168
  %v1941 = vunpack.c.0.s8 %v1940
  %v1942 = vlaneseq
  %v1943 = vshrl.u32 %v1942, 7
  %v1944 = vsub.s32 %v1941, %v1943
  %v1945 = vrot.slane %v1923, %v1944
  %v1947 = vunpack.c.l.s4 1966171168
  %v1948 = vunpack.c.0.s8 %v1947
  %v1949 = vlaneseq
  %v1950 = vshrl.u32 %v1949, 7
  %v1951 = vsub.s32 %v1948, %v1950
  %v1952 = vrot.slane %v1924, %v1951
  %v1953 = vcombine.high %v1931, %v1931
  %v1954 = vcombine.high %v1938, %v1938
  %v1955 = vcombine.high %v1945, %v1945
  %v1956 = vcombine.high %v1952, %v1952
  %v1957 = vcombine.high %v1247, %v1247
  %v1959 = vunpack.c.l.s4 1966171168
  %v1960 = vunpack.c.0.s8 %v1959
  %v1961 = vlaneseq
  %v1962 = vshrl.u32 %v1961, 7
  %v1963 = vsub.s32 %v1960, %v1962
  %v1964 = vrot.slane %v1247, %v1963
  %v1966 = vunpack.c.l.s4 1966171168
  %v1967 = vunpack.c.0.s8 %v1966
  %v1968 = vlaneseq
  %v1969 = vshrl.u32 %v1968, 7
  %v1970 = vsub.s32 %v1967, %v1969
  %v1971 = vrot.slane %v1957, %v1970
  %v1972 = vcombine.high %v1964, %v1964
  %v1973 = vcombine.high %v1971, %v1971
  %v1975 = vunpack.c.l.s4 1966171168
  %v1976 = vunpack.c.0.s8 %v1975
  %v1977 = vlaneseq
  %v1978 = vshrl.u32 %v1977, 7
  %v1979 = vsub.s32 %v1976, %v1978
  %v1980 = vrot.slane %v1964, %v1979
  %v1982 = vunpack.c.l.s4 1966171168
  %v1983 = vunpack.c.0.s8 %v1982
  %v1984 = vlaneseq
  %v1985 = vshrl.u32 %v1984, 7
  %v1986 = vsub.s32 %v1983, %v1985
  %v1987 = vrot.slane %v1971, %v1986
  %v1989 = vunpack.c.l.s4 1966171168
  %v1990 = vunpack.c.0.s8 %v1989
  %v1991 = vlaneseq
  %v1992 = vshrl.u32 %v1991, 7
  %v1993 = vsub.s32 %v1990, %v1992
  %v1994 = vrot.slane %v1972, %v1993
  %v1996 = vunpack.c.l.s4 1966171168
  %v1997 = vunpack.c.0.s8 %v1996
  %v1998 = vlaneseq
  %v1999 = vshrl.u32 %v1998, 7
  %v2000 = vsub.s32 %v1997, %v1999
  %v2001 = vrot.slane %v1973, %v2000
  %v2002 = vcombine.high %v1980, %v1980
  %v2003 = vcombine.high %v1987, %v1987
  %v2004 = vcombine.high %v1994, %v1994
  %v2005 = vcombine.high %v2001, %v2001
  %v2006 = vcombine.high %v1248, %v1248
  %v2008 = vunpack.c.l.s4 1966171168
  %v2009 = vunpack.c.0.s8 %v2008
  %v2010 = vlaneseq
  %v2011 = vshrl.u32 %v2010, 7
  %v2012 = vsub.s32 %v2009, %v2011
  %v2013 = vrot.slane %v1248, %v2012
  %v2015 = vunpack.c.l.s4 1966171168
  %v2016 = vunpack.c.0.s8 %v2015
  %v2017 = vlaneseq
  %v2018 = vshrl.u32 %v2017, 7
  %v2019 = vsub.s32 %v2016, %v2018
  %v2020 = vrot.slane %v2006, %v2019
  %v2021 = vcombine.high %v2013, %v2013
  %v2022 = vcombine.high %v2020, %v2020
  %v2024 = vunpack.c.l.s4 1966171168
  %v2025 = vunpack.c.0.s8 %v2024
  %v2026 = vlaneseq
  %v2027 = vshrl.u32 %v2026, 7
  %v2028 = vsub.s32 %v2025, %v2027
  %v2029 = vrot.slane %v2013, %v2028
  %v2031 = vunpack.c.l.s4 1966171168
  %v2032 = vunpack.c.0.s8 %v2031
  %v2033 = vlaneseq
  %v2034 = vshrl.u32 %v2033, 7
  %v2035 = vsub.s32 %v2032, %v2034
  %v2036 = vrot.slane %v2020, %v2035
  %v2038 = vunpack.c.l.s4 1966171168
  %v2039 = vunpack.c.0.s8 %v2038
  %v2040 = vlaneseq
  %v2041 = vshrl.u32 %v2040, 7
  %v2042 = vsub.s32 %v2039, %v2041
  %v2043 = vrot.slane %v2021, %v2042
  %v2045 = vunpack.c.l.s4 1966171168
  %v2046 = vunpack.c.0.s8 %v2045
  %v2047 = vlaneseq
  %v2048 = vshrl.u32 %v2047, 7
  %v2049 = vsub.s32 %v2046, %v2048
  %v2050 = vrot.slane %v2022, %v2049
  %v2051 = vcombine.high %v2029, %v2029
  %v2052 = vcombine.high %v2036, %v2036
  %v2053 = vcombine.high %v2043, %v2043
  %v2054 = vcombine.high %v2050, %v2050
  %v2055 = vcombine.high %v1249, %v1249
  %v2057 = vunpack.c.l.s4 1966171168
  %v2058 = vunpack.c.0.s8 %v2057
  %v2059 = vlaneseq
  %v2060 = vshrl.u32 %v2059, 7
  %v2061 = vsub.s32 %v2058, %v2060
  %v2062 = vrot.slane %v1249, %v2061
  %v2064 = vunpack.c.l.s4 1966171168
  %v2065 = vunpack.c.0.s8 %v2064
  %v2066 = vlaneseq
  %v2067 = vshrl.u32 %v2066, 7
  %v2068 = vsub.s32 %v2065, %v2067
  %v2069 = vrot.slane %v2055, %v2068
  %v2070 = vcombine.high %v2062, %v2062
  %v2071 = vcombine.high %v2069, %v2069
  %v2073 = vunpack.c.l.s4 1966171168
  %v2074 = vunpack.c.0.s8 %v2073
  %v2075 = vlaneseq
  %v2076 = vshrl.u32 %v2075, 7
  %v2077 = vsub.s32 %v2074, %v2076
  %v2078 = vrot.slane %v2062, %v2077
  %v2080 = vunpack.c.l.s4 1966171168
  %v2081 = vunpack.c.0.s8 %v2080
  %v2082 = vlaneseq
  %v2083 = vshrl.u32 %v2082, 7
  %v2084 = vsub.s32 %v2081, %v2083
  %v2085 = vrot.slane %v2069, %v2084
  %v2087 = vunpack.c.l.s4 1966171168
  %v2088 = vunpack.c.0.s8 %v2087
  %v2089 = vlaneseq
  %v2090 = vshrl.u32 %v2089, 7
  %v2091 = vsub.s32 %v2088, %v2090
  %v2092 = vrot.slane %v2070, %v2091
  %v2094 = vunpack.c.l.s4 1966171168
  %v2095 = vunpack.c.0.s8 %v2094
  %v2096 = vlaneseq
  %v2097 = vshrl.u32 %v2096, 7
  %v2098 = vsub.s32 %v2095, %v2097
  %v2099 = vrot.slane %v2071, %v2098
  %v2100 = vcombine.high %v2078, %v2078
  %v2101 = vcombine.high %v2092, %v2092
  %v2102 = vcombine.high %v2099, %v2099
  %v2103 = vcombine.high %v1250, %v1250
  %v2105 = vunpack.c.l.s4 1966171168
  %v2106 = vunpack.c.0.s8 %v2105
  %v2107 = vlaneseq
  %v2108 = vshrl.u32 %v2107, 7
  %v2109 = vsub.s32 %v2106, %v2108
  %v2110 = vrot.slane %v1250, %v2109
  %v2112 = vunpack.c.l.s4 1966171168
  %v2113 = vunpack.c.0.s8 %v2112
  %v2114 = vlaneseq
  %v2115 = vshrl.u32 %v2114, 7
  %v2116 = vsub.s32 %v2113, %v2115
  %v2117 = vrot.slane %v2103, %v2116
  %v2118 = vcombine.high %v2110, %v2110
  %v2119 = vcombine.high %v2117, %v2117
  %v2121 = vunpack.c.l.s4 1966171168
  %v2122 = vunpack.c.0.s8 %v2121
  %v2123 = vlaneseq
  %v2124 = vshrl.u32 %v2123, 7
  %v2125 = vsub.s32 %v2122, %v2124
  %v2126 = vrot.slane %v2110, %v2125
  %v2128 = vunpack.c.l.s4 1966171168
  %v2129 = vunpack.c.0.s8 %v2128
  %v2130 = vlaneseq
  %v2131 = vshrl.u32 %v2130, 7
  %v2132 = vsub.s32 %v2129, %v2131
  %v2133 = vrot.slane %v2117, %v2132
  %v2135 = vunpack.c.l.s4 1966171168
  %v2136 = vunpack.c.0.s8 %v2135
  %v2137 = vlaneseq
  %v2138 = vshrl.u32 %v2137, 7
  %v2139 = vsub.s32 %v2136, %v2138
  %v2140 = vrot.slane %v2118, %v2139
  %v2142 = vunpack.c.l.s4 1966171168
  %v2143 = vunpack.c.0.s8 %v2142
  %v2144 = vlaneseq
  %v2145 = vshrl.u32 %v2144, 7
  %v2146 = vsub.s32 %v2143, %v2145
  %v2147 = vrot.slane %v2119, %v2146
  %v2148 = vcombine.high %v2126, %v2126
  %v2149 = vcombine.high %v2133, %v2133
  %v2150 = vcombine.high %v2140, %v2140
  %v2151 = vcombine.high %v2147, %v2147
  %v2152 = vcombine.high %v1251, %v1251
  %v2154 = vunpack.c.l.s4 1966171168
  %v2155 = vunpack.c.0.s8 %v2154
  %v2156 = vlaneseq
  %v2157 = vshrl.u32 %v2156, 7
  %v2158 = vsub.s32 %v2155, %v2157
  %v2159 = vrot.slane %v1251, %v2158
  %v2161 = vunpack.c.l.s4 1966171168
  %v2162 = vunpack.c.0.s8 %v2161
  %v2163 = vlaneseq
  %v2164 = vshrl.u32 %v2163, 7
  %v2165 = vsub.s32 %v2162, %v2164
  %v2166 = vrot.slane %v2152, %v2165
  %v2167 = vcombine.high %v2159, %v2159
  %v2168 = vcombine.high %v2166, %v2166
  %v2170 = vunpack.c.l.s4 1966171168
  %v2171 = vunpack.c.0.s8 %v2170
  %v2172 = vlaneseq
  %v2173 = vshrl.u32 %v2172, 7
  %v2174 = vsub.s32 %v2171, %v2173
  %v2175 = vrot.slane %v2159, %v2174
  %v2177 = vunpack.c.l.s4 1966171168
  %v2178 = vunpack.c.0.s8 %v2177
  %v2179 = vlaneseq
  %v2180 = vshrl.u32 %v2179, 7
  %v2181 = vsub.s32 %v2178, %v2180
  %v2182 = vrot.slane %v2166, %v2181
  %v2184 = vunpack.c.l.s4 1966171168
  %v2185 = vunpack.c.0.s8 %v2184
  %v2186 = vlaneseq
  %v2187 = vshrl.u32 %v2186, 7
  %v2188 = vsub.s32 %v2185, %v2187
  %v2189 = vrot.slane %v2167, %v2188
  %v2191 = vunpack.c.l.s4 1966171168
  %v2192 = vunpack.c.0.s8 %v2191
  %v2193 = vlaneseq
  %v2194 = vshrl.u32 %v2193, 7
  %v2195 = vsub.s32 %v2192, %v2194
  %v2196 = vrot.slane %v2168, %v2195
  %v2197 = vcombine.high %v2175, %v2175
  %v2198 = vcombine.high %v2182, %v2182
  %v2199 = vcombine.high %v2189, %v2189
  %v2200 = vcombine.high %v1252, %v1252
  %v2202 = vunpack.c.l.s4 1966171168
  %v2203 = vunpack.c.0.s8 %v2202
  %v2204 = vlaneseq
  %v2205 = vshrl.u32 %v2204, 7
  %v2206 = vsub.s32 %v2203, %v2205
  %v2207 = vrot.slane %v1252, %v2206
  %v2209 = vunpack.c.l.s4 1966171168
  %v2210 = vunpack.c.0.s8 %v2209
  %v2211 = vlaneseq
  %v2212 = vshrl.u32 %v2211, 7
  %v2213 = vsub.s32 %v2210, %v2212
  %v2214 = vrot.slane %v2200, %v2213
  %v2215 = vcombine.high %v2207, %v2207
  %v2216 = vcombine.high %v2214, %v2214
  %v2218 = vunpack.c.l.s4 1966171168
  %v2219 = vunpack.c.0.s8 %v2218
  %v2220 = vlaneseq
  %v2221 = vshrl.u32 %v2220, 7
  %v2222 = vsub.s32 %v2219, %v2221
  %v2223 = vrot.slane %v2207, %v2222
  %v2225 = vunpack.c.l.s4 1966171168
  %v2226 = vunpack.c.0.s8 %v2225
  %v2227 = vlaneseq
  %v2228 = vshrl.u32 %v2227, 7
  %v2229 = vsub.s32 %v2226, %v2228
  %v2230 = vrot.slane %v2214, %v2229
  %v2232 = vunpack.c.l.s4 1966171168
  %v2233 = vunpack.c.0.s8 %v2232
  %v2234 = vlaneseq
  %v2235 = vshrl.u32 %v2234, 7
  %v2236 = vsub.s32 %v2233, %v2235
  %v2237 = vrot.slane %v2215, %v2236
  %v2239 = vunpack.c.l.s4 1966171168
  %v2240 = vunpack.c.0.s8 %v2239
  %v2241 = vlaneseq
  %v2242 = vshrl.u32 %v2241, 7
  %v2243 = vsub.s32 %v2240, %v2242
  %v2244 = vrot.slane %v2216, %v2243
  %v2245 = vcombine.high %v2223, %v2223
  %v2246 = vcombine.high %v2230, %v2230
  %v2247 = vcombine.high %v2237, %v2237
  %v2248 = vcombine.high %v2244, %v2244
  %v2249 = vcombine.high %v1253, %v1253
  %v2251 = vunpack.c.l.s4 1966171168
  %v2252 = vunpack.c.0.s8 %v2251
  %v2253 = vlaneseq
  %v2254 = vshrl.u32 %v2253, 7
  %v2255 = vsub.s32 %v2252, %v2254
  %v2256 = vrot.slane %v1253, %v2255
  %v2258 = vunpack.c.l.s4 1966171168
  %v2259 = vunpack.c.0.s8 %v2258
  %v2260 = vlaneseq
  %v2261 = vshrl.u32 %v2260, 7
  %v2262 = vsub.s32 %v2259, %v2261
  %v2263 = vrot.slane %v2249, %v2262
  %v2264 = vcombine.high %v2256, %v2256
  %v2265 = vcombine.high %v2263, %v2263
  %v2267 = vunpack.c.l.s4 1966171168
  %v2268 = vunpack.c.0.s8 %v2267
  %v2269 = vlaneseq
  %v2270 = vshrl.u32 %v2269, 7
  %v2271 = vsub.s32 %v2268, %v2270
  %v2272 = vrot.slane %v2256, %v2271
  %v2274 = vunpack.c.l.s4 1966171168
  %v2275 = vunpack.c.0.s8 %v2274
  %v2276 = vlaneseq
  %v2277 = vshrl.u32 %v2276, 7
  %v2278 = vsub.s32 %v2275, %v2277
  %v2279 = vrot.slane %v2263, %v2278
  %v2281 = vunpack.c.l.s4 1966171168
  %v2282 = vunpack.c.0.s8 %v2281
  %v2283 = vlaneseq
  %v2284 = vshrl.u32 %v2283, 7
  %v2285 = vsub.s32 %v2282, %v2284
  %v2286 = vrot.slane %v2264, %v2285
  %v2288 = vunpack.c.l.s4 1966171168
  %v2289 = vunpack.c.0.s8 %v2288
  %v2290 = vlaneseq
  %v2291 = vshrl.u32 %v2290, 7
  %v2292 = vsub.s32 %v2289, %v2291
  %v2293 = vrot.slane %v2265, %v2292
  %v2294 = vcombine.high %v2272, %v2272
  %v2295 = vcombine.high %v2279, %v2279
  %v2296 = vcombine.high %v2286, %v2286
  %v2297 = vcombine.high %v2293, %v2293
  %v2298 = vcombine.high %v1254, %v1254
  %v2300 = vunpack.c.l.s4 1966171168
  %v2301 = vunpack.c.0.s8 %v2300
  %v2302 = vlaneseq
  %v2303 = vshrl.u32 %v2302, 7
  %v2304 = vsub.s32 %v2301, %v2303
  %v2305 = vrot.slane %v1254, %v2304
  %v2307 = vunpack.c.l.s4 1966171168
  %v2308 = vunpack.c.0.s8 %v2307
  %v2309 = vlaneseq
  %v2310 = vshrl.u32 %v2309, 7
  %v2311 = vsub.s32 %v2308, %v2310
  %v2312 = vrot.slane %v2298, %v2311
  %v2313 = vcombine.high %v2305, %v2305
  %v2314 = vcombine.high %v2312, %v2312
  %v2316 = vunpack.c.l.s4 1966171168
  %v2317 = vunpack.c.0.s8 %v2316
  %v2318 = vlaneseq
  %v2319 = vshrl.u32 %v2318, 7
  %v2320 = vsub.s32 %v2317, %v2319
  %v2321 = vrot.slane %v2305, %v2320
  %v2323 = vunpack.c.l.s4 1966171168
  %v2324 = vunpack.c.0.s8 %v2323
  %v2325 = vlaneseq
  %v2326 = vshrl.u32 %v2325, 7
  %v2327 = vsub.s32 %v2324, %v2326
  %v2328 = vrot.slane %v2312, %v2327
  %v2330 = vunpack.c.l.s4 1966171168
  %v2331 = vunpack.c.0.s8 %v2330
  %v2332 = vlaneseq
  %v2333 = vshrl.u32 %v2332, 7
  %v2334 = vsub.s32 %v2331, %v2333
  %v2335 = vrot.slane %v2313, %v2334
  %v2337 = vunpack.c.l.s4 1966171168
  %v2338 = vunpack.c.0.s8 %v2337
  %v2339 = vlaneseq
  %v2340 = vshrl.u32 %v2339, 7
  %v2341 = vsub.s32 %v2338, %v2340
  %v2342 = vrot.slane %v2314, %v2341
  %v2343 = vcombine.high %v2321, %v2321
  %v2344 = vcombine.high %v2328, %v2328
  %v2345 = vcombine.high %v2335, %v2335
  %v2346 = vcombine.high %v2342, %v2342
  %v2347 = vcombine.high %v1255, %v1255
  %v2349 = vunpack.c.l.s4 1966171168
  %v2350 = vunpack.c.0.s8 %v2349
  %v2351 = vlaneseq
  %v2352 = vshrl.u32 %v2351, 7
  %v2353 = vsub.s32 %v2350, %v2352
  %v2354 = vrot.slane %v1255, %v2353
  %v2356 = vunpack.c.l.s4 1966171168
  %v2357 = vunpack.c.0.s8 %v2356
  %v2358 = vlaneseq
  %v2359 = vshrl.u32 %v2358, 7
  %v2360 = vsub.s32 %v2357, %v2359
  %v2361 = vrot.slane %v2347, %v2360
  %v2362 = vcombine.high %v2354, %v2354
  %v2363 = vcombine.high %v2361, %v2361
  %v2365 = vunpack.c.l.s4 1966171168
  %v2366 = vunpack.c.0.s8 %v2365
  %v2367 = vlaneseq
  %v2368 = vshrl.u32 %v2367, 7
  %v2369 = vsub.s32 %v2366, %v2368
  %v2370 = vrot.slane %v2354, %v2369
  %v2372 = vunpack.c.l.s4 1966171168
  %v2373 = vunpack.c.0.s8 %v2372
  %v2374 = vlaneseq
  %v2375 = vshrl.u32 %v2374, 7
  %v2376 = vsub.s32 %v2373, %v2375
  %v2377 = vrot.slane %v2361, %v2376
  %v2379 = vunpack.c.l.s4 1966171168
  %v2380 = vunpack.c.0.s8 %v2379
  %v2381 = vlaneseq
  %v2382 = vshrl.u32 %v2381, 7
  %v2383 = vsub.s32 %v2380, %v2382
  %v2384 = vrot.slane %v2362, %v2383
  %v2386 = vunpack.c.l.s4 1966171168
  %v2387 = vunpack.c.0.s8 %v2386
  %v2388 = vlaneseq
  %v2389 = vshrl.u32 %v2388, 7
  %v2390 = vsub.s32 %v2387, %v2389
  %v2391 = vrot.slane %v2363, %v2390
  %v2392 = vcombine.high %v2370, %v2370
  %v2393 = vcombine.high %v2377, %v2377
  %v2394 = vcombine.high %v2384, %v2384
  %v2395 = vcombine.high %v2391, %v2391
  %v2396 = vcombine.high %v1256, %v1256
  %v2398 = vunpack.c.l.s4 1966171168
  %v2399 = vunpack.c.0.s8 %v2398
  %v2400 = vlaneseq
  %v2401 = vshrl.u32 %v2400, 7
  %v2402 = vsub.s32 %v2399, %v2401
  %v2403 = vrot.slane %v1256, %v2402
  %v2405 = vunpack.c.l.s4 1966171168
  %v2406 = vunpack.c.0.s8 %v2405
  %v2407 = vlaneseq
  %v2408 = vshrl.u32 %v2407, 7
  %v2409 = vsub.s32 %v2406, %v2408
  %v2410 = vrot.slane %v2396, %v2409
  %v2411 = vcombine.high %v2403, %v2403
  %v2412 = vcombine.high %v2410, %v2410
  %v2414 = vunpack.c.l.s4 1966171168
  %v2415 = vunpack.c.0.s8 %v2414
  %v2416 = vlaneseq
  %v2417 = vshrl.u32 %v2416, 7
  %v2418 = vsub.s32 %v2415, %v2417
  %v2419 = vrot.slane %v2403, %v2418
  %v2421 = vunpack.c.l.s4 1966171168
  %v2422 = vunpack.c.0.s8 %v2421
  %v2423 = vlaneseq
  %v2424 = vshrl.u32 %v2423, 7
  %v2425 = vsub.s32 %v2422, %v2424
  %v2426 = vrot.slane %v2410, %v2425
  %v2428 = vunpack.c.l.s4 1966171168
  %v2429 = vunpack.c.0.s8 %v2428
  %v2430 = vlaneseq
  %v2431 = vshrl.u32 %v2430, 7
  %v2432 = vsub.s32 %v2429, %v2431
  %v2433 = vrot.slane %v2411, %v2432
  %v2435 = vunpack.c.l.s4 1966171168
  %v2436 = vunpack.c.0.s8 %v2435
  %v2437 = vlaneseq
  %v2438 = vshrl.u32 %v2437, 7
  %v2439 = vsub.s32 %v2436, %v2438
  %v2440 = vrot.slane %v2412, %v2439
  %v2441 = vcombine.high %v2419, %v2419
  %v2442 = vcombine.high %v2426, %v2426
  %v2443 = vcombine.high %v2433, %v2433
  %v2444 = vcombine.high %v2440, %v2440
  %v2445 = vcombine.high %v1257, %v1257
  %v2447 = vunpack.c.l.s4 1966171168
  %v2448 = vunpack.c.0.s8 %v2447
  %v2449 = vlaneseq
  %v2450 = vshrl.u32 %v2449, 7
  %v2451 = vsub.s32 %v2448, %v2450
  %v2452 = vrot.slane %v1257, %v2451
  %v2454 = vunpack.c.l.s4 1966171168
  %v2455 = vunpack.c.0.s8 %v2454
  %v2456 = vlaneseq
  %v2457 = vshrl.u32 %v2456, 7
  %v2458 = vsub.s32 %v2455, %v2457
  %v2459 = vrot.slane %v2445, %v2458
  %v2460 = vcombine.high %v2452, %v2452
  %v2461 = vcombine.high %v2459, %v2459
  %v2463 = vunpack.c.l.s4 1966171168
  %v2464 = vunpack.c.0.s8 %v2463
  %v2465 = vlaneseq
  %v2466 = vshrl.u32 %v2465, 7
  %v2467 = vsub.s32 %v2464, %v2466
  %v2468 = vrot.slane %v2452, %v2467
  %v2470 = vunpack.c.l.s4 1966171168
  %v2471 = vunpack.c.0.s8 %v2470
  %v2472 = vlaneseq
  %v2473 = vshrl.u32 %v2472, 7
  %v2474 = vsub.s32 %v2471, %v2473
  %v2475 = vrot.slane %v2459, %v2474
  %v2477 = vunpack.c.l.s4 1966171168
  %v2478 = vunpack.c.0.s8 %v2477
  %v2479 = vlaneseq
  %v2480 = vshrl.u32 %v2479, 7
  %v2481 = vsub.s32 %v2478, %v2480
  %v2482 = vrot.slane %v2460, %v2481
  %v2484 = vunpack.c.l.s4 1966171168
  %v2485 = vunpack.c.0.s8 %v2484
  %v2486 = vlaneseq
  %v2487 = vshrl.u32 %v2486, 7
  %v2488 = vsub.s32 %v2485, %v2487
  %v2489 = vrot.slane %v2461, %v2488
  %v2490 = vcombine.high %v2468, %v2468
  %v2491 = vcombine.high %v2475, %v2475
  %v2492 = vcombine.high %v2482, %v2482
  %v2493 = vcombine.high %v2489, %v2489
  %v2494 = vcombine.high %v1258, %v1258
  %v2496 = vunpack.c.l.s4 1966171168
  %v2497 = vunpack.c.0.s8 %v2496
  %v2498 = vlaneseq
  %v2499 = vshrl.u32 %v2498, 7
  %v2500 = vsub.s32 %v2497, %v2499
  %v2501 = vrot.slane %v1258, %v2500
  %v2503 = vunpack.c.l.s4 1966171168
  %v2504 = vunpack.c.0.s8 %v2503
  %v2505 = vlaneseq
  %v2506 = vshrl.u32 %v2505, 7
  %v2507 = vsub.s32 %v2504, %v2506
  %v2508 = vrot.slane %v2494, %v2507
  %v2509 = vcombine.high %v2501, %v2501
  %v2510 = vcombine.high %v2508, %v2508
  %v2512 = vunpack.c.l.s4 1966171168
  %v2513 = vunpack.c.0.s8 %v2512
  %v2514 = vlaneseq
  %v2515 = vshrl.u32 %v2514, 7
  %v2516 = vsub.s32 %v2513, %v2515
  %v2517 = vrot.slane %v2501, %v2516
  %v2519 = vunpack.c.l.s4 1966171168
  %v2520 = vunpack.c.0.s8 %v2519
  %v2521 = vlaneseq
  %v2522 = vshrl.u32 %v2521, 7
  %v2523 = vsub.s32 %v2520, %v2522
  %v2524 = vrot.slane %v2508, %v2523
  %v2526 = vunpack.c.l.s4 1966171168
  %v2527 = vunpack.c.0.s8 %v2526
  %v2528 = vlaneseq
  %v2529 = vshrl.u32 %v2528, 7
  %v2530 = vsub.s32 %v2527, %v2529
  %v2531 = vrot.slane %v2509, %v2530
  %v2533 = vunpack.c.l.s4 1966171168
  %v2534 = vunpack.c.0.s8 %v2533
  %v2535 = vlaneseq
  %v2536 = vshrl.u32 %v2535, 7
  %v2537 = vsub.s32 %v2534, %v2536
  %v2538 = vrot.slane %v2510, %v2537
  %v2539 = vcombine.high %v2524, %v2524
  %v2540 = vcombine.high %v2531, %v2531
  %v2541 = vcombine.high %v2538, %v2538
  %v2542 = vcombine.high %v1259, %v1259
  %v2544 = vunpack.c.l.s4 1966171168
  %v2545 = vunpack.c.0.s8 %v2544
  %v2546 = vlaneseq
  %v2547 = vshrl.u32 %v2546, 7
  %v2548 = vsub.s32 %v2545, %v2547
  %v2549 = vrot.slane %v1259, %v2548
  %v2551 = vunpack.c.l.s4 1966171168
  %v2552 = vunpack.c.0.s8 %v2551
  %v2553 = vlaneseq
  %v2554 = vshrl.u32 %v2553, 7
  %v2555 = vsub.s32 %v2552, %v2554
  %v2556 = vrot.slane %v2542, %v2555
  %v2557 = vcombine.high %v2549, %v2549
  %v2558 = vcombine.high %v2556, %v2556
  %v2560 = vunpack.c.l.s4 1966171168
  %v2561 = vunpack.c.0.s8 %v2560
  %v2562 = vlaneseq
  %v2563 = vshrl.u32 %v2562, 7
  %v2564 = vsub.s32 %v2561, %v2563
  %v2565 = vrot.slane %v2549, %v2564
  %v2567 = vunpack.c.l.s4 1966171168
  %v2568 = vunpack.c.0.s8 %v2567
  %v2569 = vlaneseq
  %v2570 = vshrl.u32 %v2569, 7
  %v2571 = vsub.s32 %v2568, %v2570
  %v2572 = vrot.slane %v2556, %v2571
  %v2574 = vunpack.c.l.s4 1966171168
  %v2575 = vunpack.c.0.s8 %v2574
  %v2576 = vlaneseq
  %v2577 = vshrl.u32 %v2576, 7
  %v2578 = vsub.s32 %v2575, %v2577
  %v2579 = vrot.slane %v2557, %v2578
  %v2581 = vunpack.c.l.s4 1966171168
  %v2582 = vunpack.c.0.s8 %v2581
  %v2583 = vlaneseq
  %v2584 = vshrl.u32 %v2583, 7
  %v2585 = vsub.s32 %v2582, %v2584
  %v2586 = vrot.slane %v2558, %v2585
  %v2587 = vcombine.high %v2565, %v2565
  %v2588 = vcombine.high %v2572, %v2572
  %v2589 = vcombine.high %v2579, %v2579
  %v2590 = vcombine.high %v2586, %v2586
  %v2591 = vcombine.high %v1260, %v1260
  %v2593 = vunpack.c.l.s4 1966171168
  %v2594 = vunpack.c.0.s8 %v2593
  %v2595 = vlaneseq
  %v2596 = vshrl.u32 %v2595, 7
  %v2597 = vsub.s32 %v2594, %v2596
  %v2598 = vrot.slane %v1260, %v2597
  %v2600 = vunpack.c.l.s4 1966171168
  %v2601 = vunpack.c.0.s8 %v2600
  %v2602 = vlaneseq
  %v2603 = vshrl.u32 %v2602, 7
  %v2604 = vsub.s32 %v2601, %v2603
  %v2605 = vrot.slane %v2591, %v2604
  %v2606 = vcombine.high %v2598, %v2598
  %v2607 = vcombine.high %v2605, %v2605
  %v2609 = vunpack.c.l.s4 1966171168
  %v2610 = vunpack.c.0.s8 %v2609
  %v2611 = vlaneseq
  %v2612 = vshrl.u32 %v2611, 7
  %v2613 = vsub.s32 %v2610, %v2612
  %v2614 = vrot.slane %v2598, %v2613
  %v2616 = vunpack.c.l.s4 1966171168
  %v2617 = vunpack.c.0.s8 %v2616
  %v2618 = vlaneseq
  %v2619 = vshrl.u32 %v2618, 7
  %v2620 = vsub.s32 %v2617, %v2619
  %v2621 = vrot.slane %v2605, %v2620
  %v2623 = vunpack.c.l.s4 1966171168
  %v2624 = vunpack.c.0.s8 %v2623
  %v2625 = vlaneseq
  %v2626 = vshrl.u32 %v2625, 7
  %v2627 = vsub.s32 %v2624, %v2626
  %v2628 = vrot.slane %v2606, %v2627
  %v2630 = vunpack.c.l.s4 1966171168
  %v2631 = vunpack.c.0.s8 %v2630
  %v2632 = vlaneseq
  %v2633 = vshrl.u32 %v2632, 7
  %v2634 = vsub.s32 %v2631, %v2633
  %v2635 = vrot.slane %v2607, %v2634
  %v2636 = vcombine.high %v2614, %v2614
  %v2637 = vcombine.high %v2621, %v2621
  %v2638 = vcombine.high %v2635, %v2635
  %v2639 = vcombine.high %v1261, %v1261
  %v2641 = vunpack.c.l.s4 1966171168
  %v2642 = vunpack.c.0.s8 %v2641
  %v2643 = vlaneseq
  %v2644 = vshrl.u32 %v2643, 7
  %v2645 = vsub.s32 %v2642, %v2644
  %v2646 = vrot.slane %v1261, %v2645
  %v2648 = vunpack.c.l.s4 1966171168
  %v2649 = vunpack.c.0.s8 %v2648
  %v2650 = vlaneseq
  %v2651 = vshrl.u32 %v2650, 7
  %v2652 = vsub.s32 %v2649, %v2651
  %v2653 = vrot.slane %v2639, %v2652
  %v2654 = vcombine.high %v2646, %v2646
  %v2655 = vcombine.high %v2653, %v2653
  %v2657 = vunpack.c.l.s4 1966171168
  %v2658 = vunpack.c.0.s8 %v2657
  %v2659 = vlaneseq
  %v2660 = vshrl.u32 %v2659, 7
  %v2661 = vsub.s32 %v2658, %v2660
  %v2662 = vrot.slane %v2646, %v2661
  %v2664 = vunpack.c.l.s4 1966171168
  %v2665 = vunpack.c.0.s8 %v2664
  %v2666 = vlaneseq
  %v2667 = vshrl.u32 %v2666, 7
  %v2668 = vsub.s32 %v2665, %v2667
  %v2669 = vrot.slane %v2653, %v2668
  %v2671 = vunpack.c.l.s4 1966171168
  %v2672 = vunpack.c.0.s8 %v2671
  %v2673 = vlaneseq
  %v2674 = vshrl.u32 %v2673, 7
  %v2675 = vsub.s32 %v2672, %v2674
  %v2676 = vrot.slane %v2654, %v2675
  %v2678 = vunpack.c.l.s4 1966171168
  %v2679 = vunpack.c.0.s8 %v2678
  %v2680 = vlaneseq
  %v2681 = vshrl.u32 %v2680, 7
  %v2682 = vsub.s32 %v2679, %v2681
  %v2683 = vrot.slane %v2655, %v2682
  %v2684 = vcombine.high %v2662, %v2662
  %v2685 = vcombine.high %v2669, %v2669
  %v2686 = vcombine.high %v2676, %v2676
  %v2687 = vcombine.high %v2683, %v2683
  %v2688 = vcombine.high %v1262, %v1262
  %v2690 = vunpack.c.l.s4 1966171168
  %v2691 = vunpack.c.0.s8 %v2690
  %v2692 = vlaneseq
  %v2693 = vshrl.u32 %v2692, 7
  %v2694 = vsub.s32 %v2691, %v2693
  %v2695 = vrot.slane %v1262, %v2694
  %v2697 = vunpack.c.l.s4 1966171168
  %v2698 = vunpack.c.0.s8 %v2697
  %v2699 = vlaneseq
  %v2700 = vshrl.u32 %v2699, 7
  %v2701 = vsub.s32 %v2698, %v2700
  %v2702 = vrot.slane %v2688, %v2701
  %v2703 = vcombine.high %v2695, %v2695
  %v2704 = vcombine.high %v2702, %v2702
  %v2706 = vunpack.c.l.s4 1966171168
  %v2707 = vunpack.c.0.s8 %v2706
  %v2708 = vlaneseq
  %v2709 = vshrl.u32 %v2708, 7
  %v2710 = vsub.s32 %v2707, %v2709
  %v2711 = vrot.slane %v2695, %v2710
  %v2713 = vunpack.c.l.s4 1966171168
  %v2714 = vunpack.c.0.s8 %v2713
  %v2715 = vlaneseq
  %v2716 = vshrl.u32 %v2715, 7
  %v2717 = vsub.s32 %v2714, %v2716
  %v2718 = vrot.slane %v2702, %v2717
  %v2720 = vunpack.c.l.s4 1966171168
  %v2721 = vunpack.c.0.s8 %v2720
  %v2722 = vlaneseq
  %v2723 = vshrl.u32 %v2722, 7
  %v2724 = vsub.s32 %v2721, %v2723
  %v2725 = vrot.slane %v2703, %v2724
  %v2727 = vunpack.c.l.s4 1966171168
  %v2728 = vunpack.c.0.s8 %v2727
  %v2729 = vlaneseq
  %v2730 = vshrl.u32 %v2729, 7
  %v2731 = vsub.s32 %v2728, %v2730
  %v2732 = vrot.slane %v2704, %v2731
  %v2733 = vcombine.high %v2711, %v2711
  %v2734 = vcombine.high %v2718, %v2718
  %v2735 = vcombine.high %v2725, %v2725
  %v2736 = vcombine.high %v2732, %v2732
  %v2737 = vcombine.high %v1263, %v1263
  %v2739 = vunpack.c.l.s4 1966171168
  %v2740 = vunpack.c.0.s8 %v2739
  %v2741 = vlaneseq
  %v2742 = vshrl.u32 %v2741, 7
  %v2743 = vsub.s32 %v2740, %v2742
  %v2744 = vrot.slane %v1263, %v2743
  %v2746 = vunpack.c.l.s4 1966171168
  %v2747 = vunpack.c.0.s8 %v2746
  %v2748 = vlaneseq
  %v2749 = vshrl.u32 %v2748, 7
  %v2750 = vsub.s32 %v2747, %v2749
  %v2751 = vrot.slane %v2737, %v2750
  %v2752 = vcombine.high %v2744, %v2744
  %v2753 = vcombine.high %v2751, %v2751
  %v2755 = vunpack.c.l.s4 1966171168
  %v2756 = vunpack.c.0.s8 %v2755
  %v2757 = vlaneseq
  %v2758 = vshrl.u32 %v2757, 7
  %v2759 = vsub.s32 %v2756, %v2758
  %v2760 = vrot.slane %v2744, %v2759
  %v2762 = vunpack.c.l.s4 1966171168
  %v2763 = vunpack.c.0.s8 %v2762
  %v2764 = vlaneseq
  %v2765 = vshrl.u32 %v2764, 7
  %v2766 = vsub.s32 %v2763, %v2765
  %v2767 = vrot.slane %v2751, %v2766
  %v2769 = vunpack.c.l.s4 1966171168
  %v2770 = vunpack.c.0.s8 %v2769
  %v2771 = vlaneseq
  %v2772 = vshrl.u32 %v2771, 7
  %v2773 = vsub.s32 %v2770, %v2772
  %v2774 = vrot.slane %v2752, %v2773
  %v2776 = vunpack.c.l.s4 1966171168
  %v2777 = vunpack.c.0.s8 %v2776
  %v2778 = vlaneseq
  %v2779 = vshrl.u32 %v2778, 7
  %v2780 = vsub.s32 %v2777, %v2779
  %v2781 = vrot.slane %v2753, %v2780
  %v2782 = vcombine.high %v2760, %v2760
  %v2783 = vcombine.high %v2767, %v2767
  %v2784 = vcombine.high %v2774, %v2774
  %v2785 = vcombine.high %v2781, %v2781
  %v2786 = vcombine.high %v1264, %v1264
  %v2788 = vunpack.c.l.s4 1966171168
  %v2789 = vunpack.c.0.s8 %v2788
  %v2790 = vlaneseq
  %v2791 = vshrl.u32 %v2790, 7
  %v2792 = vsub.s32 %v2789, %v2791
  %v2793 = vrot.slane %v1264, %v2792
  %v2795 = vunpack.c.l.s4 1966171168
  %v2796 = vunpack.c.0.s8 %v2795
  %v2797 = vlaneseq
  %v2798 = vshrl.u32 %v2797, 7
  %v2799 = vsub.s32 %v2796, %v2798
  %v2800 = vrot.slane %v2786, %v2799
  %v2801 = vcombine.high %v2793, %v2793
  %v2802 = vcombine.high %v2800, %v2800
  %v2804 = vunpack.c.l.s4 1966171168
  %v2805 = vunpack.c.0.s8 %v2804
  %v2806 = vlaneseq
  %v2807 = vshrl.u32 %v2806, 7
  %v2808 = vsub.s32 %v2805, %v2807
  %v2809 = vrot.slane %v2793, %v2808
  %v2811 = vunpack.c.l.s4 1966171168
  %v2812 = vunpack.c.0.s8 %v2811
  %v2813 = vlaneseq
  %v2814 = vshrl.u32 %v2813, 7
  %v2815 = vsub.s32 %v2812, %v2814
  %v2816 = vrot.slane %v2800, %v2815
  %v2818 = vunpack.c.l.s4 1966171168
  %v2819 = vunpack.c.0.s8 %v2818
  %v2820 = vlaneseq
  %v2821 = vshrl.u32 %v2820, 7
  %v2822 = vsub.s32 %v2819, %v2821
  %v2823 = vrot.slane %v2801, %v2822
  %v2825 = vunpack.c.l.s4 1966171168
  %v2826 = vunpack.c.0.s8 %v2825
  %v2827 = vlaneseq
  %v2828 = vshrl.u32 %v2827, 7
  %v2829 = vsub.s32 %v2826, %v2828
  %v2830 = vrot.slane %v2802, %v2829
  %v2831 = vcombine.high %v2809, %v2809
  %v2832 = vcombine.high %v2816, %v2816
  %v2833 = vcombine.high %v2823, %v2823
  %v2834 = vcombine.high %v2830, %v2830
  %v2835 = vcombine.high %v1265, %v1265
  %v2837 = vunpack.c.l.s4 1966171168
  %v2838 = vunpack.c.0.s8 %v2837
  %v2839 = vlaneseq
  %v2840 = vshrl.u32 %v2839, 7
  %v2841 = vsub.s32 %v2838, %v2840
  %v2842 = vrot.slane %v1265, %v2841
  %v2844 = vunpack.c.l.s4 1966171168
  %v2845 = vunpack.c.0.s8 %v2844
  %v2846 = vlaneseq
  %v2847 = vshrl.u32 %v2846, 7
  %v2848 = vsub.s32 %v2845, %v2847
  %v2849 = vrot.slane %v2835, %v2848
  %v2850 = vcombine.high %v2842, %v2842
  %v2851 = vcombine.high %v2849, %v2849
  %v2853 = vunpack.c.l.s4 1966171168
  %v2854 = vunpack.c.0.s8 %v2853
  %v2855 = vlaneseq
  %v2856 = vshrl.u32 %v2855, 7
  %v2857 = vsub.s32 %v2854, %v2856
  %v2858 = vrot.slane %v2842, %v2857
  %v2860 = vunpack.c.l.s4 1966171168
  %v2861 = vunpack.c.0.s8 %v2860
  %v2862 = vlaneseq
  %v2863 = vshrl.u32 %v2862, 7
  %v2864 = vsub.s32 %v2861, %v2863
  %v2865 = vrot.slane %v2849, %v2864
  %v2867 = vunpack.c.l.s4 1966171168
  %v2868 = vunpack.c.0.s8 %v2867
  %v2869 = vlaneseq
  %v2870 = vshrl.u32 %v2869, 7
  %v2871 = vsub.s32 %v2868, %v2870
  %v2872 = vrot.slane %v2850, %v2871
  %v2874 = vunpack.c.l.s4 1966171168
  %v2875 = vunpack.c.0.s8 %v2874
  %v2876 = vlaneseq
  %v2877 = vshrl.u32 %v2876, 7
  %v2878 = vsub.s32 %v2875, %v2877
  %v2879 = vrot.slane %v2851, %v2878
  %v2880 = vcombine.high %v2858, %v2858
  %v2881 = vcombine.high %v2865, %v2865
  %v2882 = vcombine.high %v2872, %v2872
  %v2883 = vcombine.high %v2879, %v2879
  %v2884 = vcombine.high %v1266, %v1266
  %v2886 = vunpack.c.l.s4 1966171168
  %v2887 = vunpack.c.0.s8 %v2886
  %v2888 = vlaneseq
  %v2889 = vshrl.u32 %v2888, 7
  %v2890 = vsub.s32 %v2887, %v2889
  %v2891 = vrot.slane %v1266, %v2890
  %v2893 = vunpack.c.l.s4 1966171168
  %v2894 = vunpack.c.0.s8 %v2893
  %v2895 = vlaneseq
  %v2896 = vshrl.u32 %v2895, 7
  %v2897 = vsub.s32 %v2894, %v2896
  %v2898 = vrot.slane %v2884, %v2897
  %v2899 = vcombine.high %v2891, %v2891
  %v2900 = vcombine.high %v2898, %v2898
  %v2902 = vunpack.c.l.s4 1966171168
  %v2903 = vunpack.c.0.s8 %v2902
  %v2904 = vlaneseq
  %v2905 = vshrl.u32 %v2904, 7
  %v2906 = vsub.s32 %v2903, %v2905
  %v2907 = vrot.slane %v2891, %v2906
  %v2909 = vunpack.c.l.s4 1966171168
  %v2910 = vunpack.c.0.s8 %v2909
  %v2911 = vlaneseq
  %v2912 = vshrl.u32 %v2911, 7
  %v2913 = vsub.s32 %v2910, %v2912
  %v2914 = vrot.slane %v2898, %v2913
  %v2916 = vunpack.c.l.s4 1966171168
  %v2917 = vunpack.c.0.s8 %v2916
  %v2918 = vlaneseq
  %v2919 = vshrl.u32 %v2918, 7
  %v2920 = vsub.s32 %v2917, %v2919
  %v2921 = vrot.slane %v2899, %v2920
  %v2923 = vunpack.c.l.s4 1966171168
  %v2924 = vunpack.c.0.s8 %v2923
  %v2925 = vlaneseq
  %v2926 = vshrl.u32 %v2925, 7
  %v2927 = vsub.s32 %v2924, %v2926
  %v2928 = vrot.slane %v2900, %v2927
  %v2929 = vcombine.high %v2907, %v2907
  %v2930 = vcombine.high %v2921, %v2921
  %v2931 = vcombine.high %v2928, %v2928
  %v2932 = vcombine.high %v1267, %v1267
  %v2934 = vunpack.c.l.s4 1966171168
  %v2935 = vunpack.c.0.s8 %v2934
  %v2936 = vlaneseq
  %v2937 = vshrl.u32 %v2936, 7
  %v2938 = vsub.s32 %v2935, %v2937
  %v2939 = vrot.slane %v1267, %v2938
  %v2941 = vunpack.c.l.s4 1966171168
  %v2942 = vunpack.c.0.s8 %v2941
  %v2943 = vlaneseq
  %v2944 = vshrl.u32 %v2943, 7
  %v2945 = vsub.s32 %v2942, %v2944
  %v2946 = vrot.slane %v2932, %v2945
  %v2947 = vcombine.high %v2939, %v2939
  %v2948 = vcombine.high %v2946, %v2946
  %v2950 = vunpack.c.l.s4 1966171168
  %v2951 = vunpack.c.0.s8 %v2950
  %v2952 = vlaneseq
  %v2953 = vshrl.u32 %v2952, 7
  %v2954 = vsub.s32 %v2951, %v2953
  %v2955 = vrot.slane %v2939, %v2954
  %v2957 = vunpack.c.l.s4 1966171168
  %v2958 = vunpack.c.0.s8 %v2957
  %v2959 = vlaneseq
  %v2960 = vshrl.u32 %v2959, 7
  %v2961 = vsub.s32 %v2958, %v2960
  %v2962 = vrot.slane %v2946, %v2961
  %v2964 = vunpack.c.l.s4 1966171168
  %v2965 = vunpack.c.0.s8 %v2964
  %v2966 = vlaneseq
  %v2967 = vshrl.u32 %v2966, 7
  %v2968 = vsub.s32 %v2965, %v2967
  %v2969 = vrot.slane %v2947, %v2968
  %v2971 = vunpack.c.l.s4 1966171168
  %v2972 = vunpack.c.0.s8 %v2971
  %v2973 = vlaneseq
  %v2974 = vshrl.u32 %v2973, 7
  %v2975 = vsub.s32 %v2972, %v2974
  %v2976 = vrot.slane %v2948, %v2975
  %v2977 = vcombine.high %v2955, %v2955
  %v2978 = vcombine.high %v2962, %v2962
  %v2979 = vcombine.high %v2969, %v2969
  %v2980 = vcombine.high %v2976, %v2976
  %v2981 = vcombine.high %v1268, %v1268
  %v2983 = vunpack.c.l.s4 1966171168
  %v2984 = vunpack.c.0.s8 %v2983
  %v2985 = vlaneseq
  %v2986 = vshrl.u32 %v2985, 7
  %v2987 = vsub.s32 %v2984, %v2986
  %v2988 = vrot.slane %v1268, %v2987
  %v2990 = vunpack.c.l.s4 1966171168
  %v2991 = vunpack.c.0.s8 %v2990
  %v2992 = vlaneseq
  %v2993 = vshrl.u32 %v2992, 7
  %v2994 = vsub.s32 %v2991, %v2993
  %v2995 = vrot.slane %v2981, %v2994
  %v2996 = vcombine.high %v2988, %v2988
  %v2997 = vcombine.high %v2995, %v2995
  %v2999 = vunpack.c.l.s4 1966171168
  %v3000 = vunpack.c.0.s8 %v2999
  %v3001 = vlaneseq
  %v3002 = vshrl.u32 %v3001, 7
  %v3003 = vsub.s32 %v3000, %v3002
  %v3004 = vrot.slane %v2988, %v3003
  %v3006 = vunpack.c.l.s4 1966171168
  %v3007 = vunpack.c.0.s8 %v3006
  %v3008 = vlaneseq
  %v3009 = vshrl.u32 %v3008, 7
  %v3010 = vsub.s32 %v3007, %v3009
  %v3011 = vrot.slane %v2995, %v3010
  %v3013 = vunpack.c.l.s4 1966171168
  %v3014 = vunpack.c.0.s8 %v3013
  %v3015 = vlaneseq
  %v3016 = vshrl.u32 %v3015, 7
  %v3017 = vsub.s32 %v3014, %v3016
  %v3018 = vrot.slane %v2996, %v3017
  %v3020 = vunpack.c.l.s4 1966171168
  %v3021 = vunpack.c.0.s8 %v3020
  %v3022 = vlaneseq
  %v3023 = vshrl.u32 %v3022, 7
  %v3024 = vsub.s32 %v3021, %v3023
  %v3025 = vrot.slane %v2997, %v3024
  %v3026 = vcombine.high %v3004, %v3004
  %v3027 = vcombine.high %v3011, %v3011
  %v3028 = vcombine.high %v3018, %v3018
  %v3029 = vcombine.high %v1269, %v1269
  %v3031 = vunpack.c.l.s4 1966171168
  %v3032 = vunpack.c.0.s8 %v3031
  %v3033 = vlaneseq
  %v3034 = vshrl.u32 %v3033, 7
  %v3035 = vsub.s32 %v3032, %v3034
  %v3036 = vrot.slane %v1269, %v3035
  %v3038 = vunpack.c.l.s4 1966171168
  %v3039 = vunpack.c.0.s8 %v3038
  %v3040 = vlaneseq
  %v3041 = vshrl.u32 %v3040, 7
  %v3042 = vsub.s32 %v3039, %v3041
  %v3043 = vrot.slane %v3029, %v3042
  %v3044 = vcombine.high %v3036, %v3036
  %v3045 = vcombine.high %v3043, %v3043
  %v3047 = vunpack.c.l.s4 1966171168
  %v3048 = vunpack.c.0.s8 %v3047
  %v3049 = vlaneseq
  %v3050 = vshrl.u32 %v3049, 7
  %v3051 = vsub.s32 %v3048, %v3050
  %v3052 = vrot.slane %v3036, %v3051
  %v3054 = vunpack.c.l.s4 1966171168
  %v3055 = vunpack.c.0.s8 %v3054
  %v3056 = vlaneseq
  %v3057 = vshrl.u32 %v3056, 7
  %v3058 = vsub.s32 %v3055, %v3057
  %v3059 = vrot.slane %v3043, %v3058
  %v3061 = vunpack.c.l.s4 1966171168
  %v3062 = vunpack.c.0.s8 %v3061
  %v3063 = vlaneseq
  %v3064 = vshrl.u32 %v3063, 7
  %v3065 = vsub.s32 %v3062, %v3064
  %v3066 = vrot.slane %v3044, %v3065
  %v3068 = vunpack.c.l.s4 1966171168
  %v3069 = vunpack.c.0.s8 %v3068
  %v3070 = vlaneseq
  %v3071 = vshrl.u32 %v3070, 7
  %v3072 = vsub.s32 %v3069, %v3071
  %v3073 = vrot.slane %v3045, %v3072
  %v3074 = vcombine.high %v3052, %v3052
  %v3075 = vcombine.high %v3059, %v3059
  %v3076 = vcombine.high %v3066, %v3066
  %v3077 = vcombine.high %v3073, %v3073
  %v3078 = vcombine.high %v1270, %v1270
  %v3080 = vunpack.c.l.s4 1966171168
  %v3081 = vunpack.c.0.s8 %v3080
  %v3082 = vlaneseq
  %v3083 = vshrl.u32 %v3082, 7
  %v3084 = vsub.s32 %v3081, %v3083
  %v3085 = vrot.slane %v1270, %v3084
  %v3087 = vunpack.c.l.s4 1966171168
  %v3088 = vunpack.c.0.s8 %v3087
  %v3089 = vlaneseq
  %v3090 = vshrl.u32 %v3089, 7
  %v3091 = vsub.s32 %v3088, %v3090
  %v3092 = vrot.slane %v3078, %v3091
  %v3093 = vcombine.high %v3085, %v3085
  %v3094 = vcombine.high %v3092, %v3092
  %v3096 = vunpack.c.l.s4 1966171168
  %v3097 = vunpack.c.0.s8 %v3096
  %v3098 = vlaneseq
  %v3099 = vshrl.u32 %v3098, 7
  %v3100 = vsub.s32 %v3097, %v3099
  %v3101 = vrot.slane %v3085, %v3100
  %v3103 = vunpack.c.l.s4 1966171168
  %v3104 = vunpack.c.0.s8 %v3103
  %v3105 = vlaneseq
  %v3106 = vshrl.u32 %v3105, 7
  %v3107 = vsub.s32 %v3104, %v3106
  %v3108 = vrot.slane %v3092, %v3107
  %v3110 = vunpack.c.l.s4 1966171168
  %v3111 = vunpack.c.0.s8 %v3110
  %v3112 = vlaneseq
  %v3113 = vshrl.u32 %v3112, 7
  %v3114 = vsub.s32 %v3111, %v3113
  %v3115 = vrot.slane %v3093, %v3114
  %v3117 = vunpack.c.l.s4 1966171168
  %v3118 = vunpack.c.0.s8 %v3117
  %v3119 = vlaneseq
  %v3120 = vshrl.u32 %v3119, 7
  %v3121 = vsub.s32 %v3118, %v3120
  %v3122 = vrot.slane %v3094, %v3121
  %v3123 = vcombine.high %v3101, %v3101
  %v3124 = vcombine.high %v3108, %v3108
  %v3125 = vcombine.high %v3115, %v3115
  %v3126 = vcombine.high %v3122, %v3122
  %v3127 = vcombine.high %v1271, %v1271
  %v3129 = vunpack.c.l.s4 1966171168
  %v3130 = vunpack.c.0.s8 %v3129
  %v3131 = vlaneseq
  %v3132 = vshrl.u32 %v3131, 7
  %v3133 = vsub.s32 %v3130, %v3132
  %v3134 = vrot.slane %v1271, %v3133
  %v3136 = vunpack.c.l.s4 1966171168
  %v3137 = vunpack.c.0.s8 %v3136
  %v3138 = vlaneseq
  %v3139 = vshrl.u32 %v3138, 7
  %v3140 = vsub.s32 %v3137, %v3139
  %v3141 = vrot.slane %v3127, %v3140
  %v3142 = vcombine.high %v3134, %v3134
  %v3143 = vcombine.high %v3141, %v3141
  %v3145 = vunpack.c.l.s4 1966171168
  %v3146 = vunpack.c.0.s8 %v3145
  %v3147 = vlaneseq
  %v3148 = vshrl.u32 %v3147, 7
  %v3149 = vsub.s32 %v3146, %v3148
  %v3150 = vrot.slane %v3134, %v3149
  %v3152 = vunpack.c.l.s4 1966171168
  %v3153 = vunpack.c.0.s8 %v3152
  %v3154 = vlaneseq
  %v3155 = vshrl.u32 %v3154, 7
  %v3156 = vsub.s32 %v3153, %v3155
  %v3157 = vrot.slane %v3141, %v3156
  %v3159 = vunpack.c.l.s4 1966171168
  %v3160 = vunpack.c.0.s8 %v3159
  %v3161 = vlaneseq
  %v3162 = vshrl.u32 %v3161, 7
  %v3163 = vsub.s32 %v3160, %v3162
  %v3164 = vrot.slane %v3142, %v3163
  %v3166 = vunpack.c.l.s4 1966171168
  %v3167 = vunpack.c.0.s8 %v3166
  %v3168 = vlaneseq
  %v3169 = vshrl.u32 %v3168, 7
  %v3170 = vsub.s32 %v3167, %v3169
  %v3171 = vrot.slane %v3143, %v3170
  %v3172 = vcombine.high %v3150, %v3150
  %v3173 = vcombine.high %v3157, %v3157
  %v3174 = vcombine.high %v3164, %v3164
  %v3175 = vcombine.high %v3171, %v3171
  %v3176 = vcombine.high %v1272, %v1272
  %v3178 = vunpack.c.l.s4 1966171168
  %v3179 = vunpack.c.0.s8 %v3178
  %v3180 = vlaneseq
  %v3181 = vshrl.u32 %v3180, 7
  %v3182 = vsub.s32 %v3179, %v3181
  %v3183 = vrot.slane %v1272, %v3182
  %v3185 = vunpack.c.l.s4 1966171168
  %v3186 = vunpack.c.0.s8 %v3185
  %v3187 = vlaneseq
  %v3188 = vshrl.u32 %v3187, 7
  %v3189 = vsub.s32 %v3186, %v3188
  %v3190 = vrot.slane %v3176, %v3189
  %v3191 = vcombine.high %v3183, %v3183
  %v3192 = vcombine.high %v3190, %v3190
  %v3194 = vunpack.c.l.s4 1966171168
  %v3195 = vunpack.c.0.s8 %v3194
  %v3196 = vlaneseq
  %v3197 = vshrl.u32 %v3196, 7
  %v3198 = vsub.s32 %v3195, %v3197
  %v3199 = vrot.slane %v3183, %v3198
  %v3201 = vunpack.c.l.s4 1966171168
  %v3202 = vunpack.c.0.s8 %v3201
  %v3203 = vlaneseq
  %v3204 = vshrl.u32 %v3203, 7
  %v3205 = vsub.s32 %v3202, %v3204
  %v3206 = vrot.slane %v3190, %v3205
  %v3208 = vunpack.c.l.s4 1966171168
  %v3209 = vunpack.c.0.s8 %v3208
  %v3210 = vlaneseq
  %v3211 = vshrl.u32 %v3210, 7
  %v3212 = vsub.s32 %v3209, %v3211
  %v3213 = vrot.slane %v3191, %v3212
  %v3215 = vunpack.c.l.s4 1966171168
  %v3216 = vunpack.c.0.s8 %v3215
  %v3217 = vlaneseq
  %v3218 = vshrl.u32 %v3217, 7
  %v3219 = vsub.s32 %v3216, %v3218
  %v3220 = vrot.slane %v3192, %v3219
  %v3221 = vcombine.high %v3199, %v3199
  %v3222 = vcombine.high %v3206, %v3206
  %v3223 = vcombine.high %v3213, %v3213
  %v3224 = vcombine.high %v3220, %v3220
  %v3225 = vcombine.high %v1273, %v1273
  %v3227 = vunpack.c.l.s4 1966171168
  %v3228 = vunpack.c.0.s8 %v3227
  %v3229 = vlaneseq
  %v3230 = vshrl.u32 %v3229, 7
  %v3231 = vsub.s32 %v3228, %v3230
  %v3232 = vrot.slane %v1273, %v3231
  %v3234 = vunpack.c.l.s4 1966171168
  %v3235 = vunpack.c.0.s8 %v3234
  %v3236 = vlaneseq
  %v3237 = vshrl.u32 %v3236, 7
  %v3238 = vsub.s32 %v3235, %v3237
  %v3239 = vrot.slane %v3225, %v3238
  %v3240 = vcombine.high %v3232, %v3232
  %v3241 = vcombine.high %v3239, %v3239
  %v3243 = vunpack.c.l.s4 1966171168
  %v3244 = vunpack.c.0.s8 %v3243
  %v3245 = vlaneseq
  %v3246 = vshrl.u32 %v3245, 7
  %v3247 = vsub.s32 %v3244, %v3246
  %v3248 = vrot.slane %v3232, %v3247
  %v3250 = vunpack.c.l.s4 1966171168
  %v3251 = vunpack.c.0.s8 %v3250
  %v3252 = vlaneseq
  %v3253 = vshrl.u32 %v3252, 7
  %v3254 = vsub.s32 %v3251, %v3253
  %v3255 = vrot.slane %v3239, %v3254
  %v3257 = vunpack.c.l.s4 1966171168
  %v3258 = vunpack.c.0.s8 %v3257
  %v3259 = vlaneseq
  %v3260 = vshrl.u32 %v3259, 7
  %v3261 = vsub.s32 %v3258, %v3260
  %v3262 = vrot.slane %v3240, %v3261
  %v3264 = vunpack.c.l.s4 1966171168
  %v3265 = vunpack.c.0.s8 %v3264
  %v3266 = vlaneseq
  %v3267 = vshrl.u32 %v3266, 7
  %v3268 = vsub.s32 %v3265, %v3267
  %v3269 = vrot.slane %v3241, %v3268
  %v3270 = vcombine.high %v3255, %v3255
  %v3271 = vcombine.high %v3262, %v3262
  %v3272 = vcombine.high %v3269, %v3269
  %v3273 = vcombine.high %v1274, %v1274
  %v3275 = vunpack.c.l.s4 1966171168
  %v3276 = vunpack.c.0.s8 %v3275
  %v3277 = vlaneseq
  %v3278 = vshrl.u32 %v3277, 7
  %v3279 = vsub.s32 %v3276, %v3278
  %v3280 = vrot.slane %v1274, %v3279
  %v3282 = vunpack.c.l.s4 1966171168
  %v3283 = vunpack.c.0.s8 %v3282
  %v3284 = vlaneseq
  %v3285 = vshrl.u32 %v3284, 7
  %v3286 = vsub.s32 %v3283, %v3285
  %v3287 = vrot.slane %v3273, %v3286
  %v3288 = vcombine.high %v3280, %v3280
  %v3289 = vcombine.high %v3287, %v3287
  %v3291 = vunpack.c.l.s4 1966171168
  %v3292 = vunpack.c.0.s8 %v3291
  %v3293 = vlaneseq
  %v3294 = vshrl.u32 %v3293, 7
  %v3295 = vsub.s32 %v3292, %v3294
  %v3296 = vrot.slane %v3280, %v3295
  %v3298 = vunpack.c.l.s4 1966171168
  %v3299 = vunpack.c.0.s8 %v3298
  %v3300 = vlaneseq
  %v3301 = vshrl.u32 %v3300, 7
  %v3302 = vsub.s32 %v3299, %v3301
  %v3303 = vrot.slane %v3287, %v3302
  %v3305 = vunpack.c.l.s4 1966171168
  %v3306 = vunpack.c.0.s8 %v3305
  %v3307 = vlaneseq
  %v3308 = vshrl.u32 %v3307, 7
  %v3309 = vsub.s32 %v3306, %v3308
  %v3310 = vrot.slane %v3288, %v3309
  %v3312 = vunpack.c.l.s4 1966171168
  %v3313 = vunpack.c.0.s8 %v3312
  %v3314 = vlaneseq
  %v3315 = vshrl.u32 %v3314, 7
  %v3316 = vsub.s32 %v3313, %v3315
  %v3317 = vrot.slane %v3289, %v3316
  %v3318 = vcombine.high %v3296, %v3296
  %v3319 = vcombine.high %v3303, %v3303
  %v3320 = vcombine.high %v3310, %v3310
  %v3321 = vcombine.high %v3317, %v3317
  %v3322 = vcombine.high %v1275, %v1275
  %v3324 = vunpack.c.l.s4 1966171168
  %v3325 = vunpack.c.0.s8 %v3324
  %v3326 = vlaneseq
  %v3327 = vshrl.u32 %v3326, 7
  %v3328 = vsub.s32 %v3325, %v3327
  %v3329 = vrot.slane %v1275, %v3328
  %v3331 = vunpack.c.l.s4 1966171168
  %v3332 = vunpack.c.0.s8 %v3331
  %v3333 = vlaneseq
  %v3334 = vshrl.u32 %v3333, 7
  %v3335 = vsub.s32 %v3332, %v3334
  %v3336 = vrot.slane %v3322, %v3335
  %v3337 = vcombine.high %v3329, %v3329
  %v3338 = vcombine.high %v3336, %v3336
  %v3340 = vunpack.c.l.s4 1966171168
  %v3341 = vunpack.c.0.s8 %v3340
  %v3342 = vlaneseq
  %v3343 = vshrl.u32 %v3342, 7
  %v3344 = vsub.s32 %v3341, %v3343
  %v3345 = vrot.slane %v3329, %v3344
  %v3347 = vunpack.c.l.s4 1966171168
  %v3348 = vunpack.c.0.s8 %v3347
  %v3349 = vlaneseq
  %v3350 = vshrl.u32 %v3349, 7
  %v3351 = vsub.s32 %v3348, %v3350
  %v3352 = vrot.slane %v3336, %v3351
  %v3354 = vunpack.c.l.s4 1966171168
  %v3355 = vunpack.c.0.s8 %v3354
  %v3356 = vlaneseq
  %v3357 = vshrl.u32 %v3356, 7
  %v3358 = vsub.s32 %v3355, %v3357
  %v3359 = vrot.slane %v3337, %v3358
  %v3361 = vunpack.c.l.s4 1966171168
  %v3362 = vunpack.c.0.s8 %v3361
  %v3363 = vlaneseq
  %v3364 = vshrl.u32 %v3363, 7
  %v3365 = vsub.s32 %v3362, %v3364
  %v3366 = vrot.slane %v3338, %v3365
  %v3367 = vcombine.high %v3345, %v3345
  %v3368 = vcombine.high %v3352, %v3352
  %v3369 = vcombine.high %v3366, %v3366
  %v3370 = vcombine.high %v1276, %v1276
  %v3372 = vunpack.c.l.s4 1966171168
  %v3373 = vunpack.c.0.s8 %v3372
  %v3374 = vlaneseq
  %v3375 = vshrl.u32 %v3374, 7
  %v3376 = vsub.s32 %v3373, %v3375
  %v3377 = vrot.slane %v1276, %v3376
  %v3379 = vunpack.c.l.s4 1966171168
  %v3380 = vunpack.c.0.s8 %v3379
  %v3381 = vlaneseq
  %v3382 = vshrl.u32 %v3381, 7
  %v3383 = vsub.s32 %v3380, %v3382
  %v3384 = vrot.slane %v3370, %v3383
  %v3385 = vcombine.high %v3377, %v3377
  %v3386 = vcombine.high %v3384, %v3384
  %v3388 = vunpack.c.l.s4 1966171168
  %v3389 = vunpack.c.0.s8 %v3388
  %v3390 = vlaneseq
  %v3391 = vshrl.u32 %v3390, 7
  %v3392 = vsub.s32 %v3389, %v3391
  %v3393 = vrot.slane %v3377, %v3392
  %v3395 = vunpack.c.l.s4 1966171168
  %v3396 = vunpack.c.0.s8 %v3395
  %v3397 = vlaneseq
  %v3398 = vshrl.u32 %v3397, 7
  %v3399 = vsub.s32 %v3396, %v3398
  %v3400 = vrot.slane %v3384, %v3399
  %v3402 = vunpack.c.l.s4 1966171168
  %v3403 = vunpack.c.0.s8 %v3402
  %v3404 = vlaneseq
  %v3405 = vshrl.u32 %v3404, 7
  %v3406 = vsub.s32 %v3403, %v3405
  %v3407 = vrot.slane %v3385, %v3406
  %v3409 = vunpack.c.l.s4 1966171168
  %v3410 = vunpack.c.0.s8 %v3409
  %v3411 = vlaneseq
  %v3412 = vshrl.u32 %v3411, 7
  %v3413 = vsub.s32 %v3410, %v3412
  %v3414 = vrot.slane %v3386, %v3413
  %v3415 = vcombine.high %v3393, %v3393
  %v3416 = vcombine.high %v3400, %v3400
  %v3417 = vcombine.high %v3407, %v3407
  %v3418 = vcombine.high %v3414, %v3414
  %v3419 = vcombine.high %v1277, %v1277
  %v3421 = vunpack.c.l.s4 1966171168
  %v3422 = vunpack.c.0.s8 %v3421
  %v3423 = vlaneseq
  %v3424 = vshrl.u32 %v3423, 7
  %v3425 = vsub.s32 %v3422, %v3424
  %v3426 = vrot.slane %v1277, %v3425
  %v3428 = vunpack.c.l.s4 1966171168
  %v3429 = vunpack.c.0.s8 %v3428
  %v3430 = vlaneseq
  %v3431 = vshrl.u32 %v3430, 7
  %v3432 = vsub.s32 %v3429, %v3431
  %v3433 = vrot.slane %v3419, %v3432
  %v3434 = vcombine.high %v3426, %v3426
  %v3435 = vcombine.high %v3433, %v3433
  %v3437 = vunpack.c.l.s4 1966171168
  %v3438 = vunpack.c.0.s8 %v3437
  %v3439 = vlaneseq
  %v3440 = vshrl.u32 %v3439, 7
  %v3441 = vsub.s32 %v3438, %v3440
  %v3442 = vrot.slane %v3426, %v3441
  %v3444 = vunpack.c.l.s4 1966171168
  %v3445 = vunpack.c.0.s8 %v3444
  %v3446 = vlaneseq
  %v3447 = vshrl.u32 %v3446, 7
  %v3448 = vsub.s32 %v3445, %v3447
  %v3449 = vrot.slane %v3433, %v3448
  %v3451 = vunpack.c.l.s4 1966171168
  %v3452 = vunpack.c.0.s8 %v3451
  %v3453 = vlaneseq
  %v3454 = vshrl.u32 %v3453, 7
  %v3455 = vsub.s32 %v3452, %v3454
  %v3456 = vrot.slane %v3434, %v3455
  %v3458 = vunpack.c.l.s4 1966171168
  %v3459 = vunpack.c.0.s8 %v3458
  %v3460 = vlaneseq
  %v3461 = vshrl.u32 %v3460, 7
  %v3462 = vsub.s32 %v3459, %v3461
  %v3463 = vrot.slane %v3435, %v3462
  %v3464 = vcombine.high %v3442, %v3442
  %v3465 = vcombine.high %v3449, %v3449
  %v3466 = vcombine.high %v3456, %v3456
  %v3467 = vcombine.high %v3463, %v3463
  %v3468 = vcombine.high %v1278, %v1278
  %v3470 = vunpack.c.l.s4 1966171168
  %v3471 = vunpack.c.0.s8 %v3470
  %v3472 = vlaneseq
  %v3473 = vshrl.u32 %v3472, 7
  %v3474 = vsub.s32 %v3471, %v3473
  %v3475 = vrot.slane %v1278, %v3474
  %v3477 = vunpack.c.l.s4 1966171168
  %v3478 = vunpack.c.0.s8 %v3477
  %v3479 = vlaneseq
  %v3480 = vshrl.u32 %v3479, 7
  %v3481 = vsub.s32 %v3478, %v3480
  %v3482 = vrot.slane %v3468, %v3481
  %v3483 = vcombine.high %v3475, %v3475
  %v3484 = vcombine.high %v3482, %v3482
  %v3486 = vunpack.c.l.s4 1966171168
  %v3487 = vunpack.c.0.s8 %v3486
  %v3488 = vlaneseq
  %v3489 = vshrl.u32 %v3488, 7
  %v3490 = vsub.s32 %v3487, %v3489
  %v3491 = vrot.slane %v3475, %v3490
  %v3493 = vunpack.c.l.s4 1966171168
  %v3494 = vunpack.c.0.s8 %v3493
  %v3495 = vlaneseq
  %v3496 = vshrl.u32 %v3495, 7
  %v3497 = vsub.s32 %v3494, %v3496
  %v3498 = vrot.slane %v3482, %v3497
  %v3500 = vunpack.c.l.s4 1966171168
  %v3501 = vunpack.c.0.s8 %v3500
  %v3502 = vlaneseq
  %v3503 = vshrl.u32 %v3502, 7
  %v3504 = vsub.s32 %v3501, %v3503
  %v3505 = vrot.slane %v3483, %v3504
  %v3507 = vunpack.c.l.s4 1966171168
  %v3508 = vunpack.c.0.s8 %v3507
  %v3509 = vlaneseq
  %v3510 = vshrl.u32 %v3509, 7
  %v3511 = vsub.s32 %v3508, %v3510
  %v3512 = vrot.slane %v3484, %v3511
  %v3513 = vcombine.high %v3491, %v3491
  %v3514 = vcombine.high %v3498, %v3498
  %v3515 = vcombine.high %v3505, %v3505
  %v3516 = vcombine.high %v3512, %v3512
  %v3517 = vcombine.high %v1279, %v1279
  %v3519 = vunpack.c.l.s4 1966171168
  %v3520 = vunpack.c.0.s8 %v3519
  %v3521 = vlaneseq
  %v3522 = vshrl.u32 %v3521, 7
  %v3523 = vsub.s32 %v3520, %v3522
  %v3524 = vrot.slane %v1279, %v3523
  %v3526 = vunpack.c.l.s4 1966171168
  %v3527 = vunpack.c.0.s8 %v3526
  %v3528 = vlaneseq
  %v3529 = vshrl.u32 %v3528, 7
  %v3530 = vsub.s32 %v3527, %v3529
  %v3531 = vrot.slane %v3517, %v3530
  %v3532 = vcombine.high %v3524, %v3524
  %v3533 = vcombine.high %v3531, %v3531
  %v3535 = vunpack.c.l.s4 1966171168
  %v3536 = vunpack.c.0.s8 %v3535
  %v3537 = vlaneseq
  %v3538 = vshrl.u32 %v3537, 7
  %v3539 = vsub.s32 %v3536, %v3538
  %v3540 = vrot.slane %v3524, %v3539
  %v3542 = vunpack.c.l.s4 1966171168
  %v3543 = vunpack.c.0.s8 %v3542
  %v3544 = vlaneseq
  %v3545 = vshrl.u32 %v3544, 7
  %v3546 = vsub.s32 %v3543, %v3545
  %v3547 = vrot.slane %v3531, %v3546
  %v3549 = vunpack.c.l.s4 1966171168
  %v3550 = vunpack.c.0.s8 %v3549
  %v3551 = vlaneseq
  %v3552 = vshrl.u32 %v3551, 7
  %v3553 = vsub.s32 %v3550, %v3552
  %v3554 = vrot.slane %v3532, %v3553
  %v3556 = vunpack.c.l.s4 1966171168
  %v3557 = vunpack.c.0.s8 %v3556
  %v3558 = vlaneseq
  %v3559 = vshrl.u32 %v3558, 7
  %v3560 = vsub.s32 %v3557, %v3559
  %v3561 = vrot.slane %v3533, %v3560
  %v3562 = vcombine.high %v3540, %v3540
  %v3563 = vcombine.high %v3547, %v3547
  %v3564 = vcombine.high %v3554, %v3554
  %v3565 = vcombine.high %v3561, %v3561
  %v3566 = vcombine.high %v1280, %v1280
  %v3568 = vunpack.c.l.s4 1966171168
  %v3569 = vunpack.c.0.s8 %v3568
  %v3570 = vlaneseq
  %v3571 = vshrl.u32 %v3570, 7
  %v3572 = vsub.s32 %v3569, %v3571
  %v3573 = vrot.slane %v1280, %v3572
  %v3575 = vunpack.c.l.s4 1966171168
  %v3576 = vunpack.c.0.s8 %v3575
  %v3577 = vlaneseq
  %v3578 = vshrl.u32 %v3577, 7
  %v3579 = vsub.s32 %v3576, %v3578
  %v3580 = vrot.slane %v3566, %v3579
  %v3581 = vcombine.high %v3573, %v3573
  %v3582 = vcombine.high %v3580, %v3580
  %v3584 = vunpack.c.l.s4 1966171168
  %v3585 = vunpack.c.0.s8 %v3584
  %v3586 = vlaneseq
  %v3587 = vshrl.u32 %v3586, 7
  %v3588 = vsub.s32 %v3585, %v3587
  %v3589 = vrot.slane %v3573, %v3588
  %v3591 = vunpack.c.l.s4 1966171168
  %v3592 = vunpack.c.0.s8 %v3591
  %v3593 = vlaneseq
  %v3594 = vshrl.u32 %v3593, 7
  %v3595 = vsub.s32 %v3592, %v3594
  %v3596 = vrot.slane %v3580, %v3595
  %v3598 = vunpack.c.l.s4 1966171168
  %v3599 = vunpack.c.0.s8 %v3598
  %v3600 = vlaneseq
  %v3601 = vshrl.u32 %v3600, 7
  %v3602 = vsub.s32 %v3599, %v3601
  %v3603 = vrot.slane %v3581, %v3602
  %v3605 = vunpack.c.l.s4 1966171168
  %v3606 = vunpack.c.0.s8 %v3605
  %v3607 = vlaneseq
  %v3608 = vshrl.u32 %v3607, 7
  %v3609 = vsub.s32 %v3606, %v3608
  %v3610 = vrot.slane %v3582, %v3609
  %v3611 = vcombine.high %v3589, %v3589
  %v3612 = vcombine.high %v3596, %v3596
  %v3613 = vcombine.high %v3603, %v3603
  %v3614 = vcombine.high %v3610, %v3610
  %v3615 = vcombine.high %v1281, %v1281
  %v3617 = vunpack.c.l.s4 1966171168
  %v3618 = vunpack.c.0.s8 %v3617
  %v3619 = vlaneseq
  %v3620 = vshrl.u32 %v3619, 7
  %v3621 = vsub.s32 %v3618, %v3620
  %v3622 = vrot.slane %v1281, %v3621
  %v3624 = vunpack.c.l.s4 1966171168
  %v3625 = vunpack.c.0.s8 %v3624
  %v3626 = vlaneseq
  %v3627 = vshrl.u32 %v3626, 7
  %v3628 = vsub.s32 %v3625, %v3627
  %v3629 = vrot.slane %v3615, %v3628
  %v3630 = vcombine.high %v3622, %v3622
  %v3631 = vcombine.high %v3629, %v3629
  %v3633 = vunpack.c.l.s4 1966171168
  %v3634 = vunpack.c.0.s8 %v3633
  %v3635 = vlaneseq
  %v3636 = vshrl.u32 %v3635, 7
  %v3637 = vsub.s32 %v3634, %v3636
  %v3638 = vrot.slane %v3622, %v3637
  %v3640 = vunpack.c.l.s4 1966171168
  %v3641 = vunpack.c.0.s8 %v3640
  %v3642 = vlaneseq
  %v3643 = vshrl.u32 %v3642, 7
  %v3644 = vsub.s32 %v3641, %v3643
  %v3645 = vrot.slane %v3629, %v3644
  %v3647 = vunpack.c.l.s4 1966171168
  %v3648 = vunpack.c.0.s8 %v3647
  %v3649 = vlaneseq
  %v3650 = vshrl.u32 %v3649, 7
  %v3651 = vsub.s32 %v3648, %v3650
  %v3652 = vrot.slane %v3630, %v3651
  %v3654 = vunpack.c.l.s4 1966171168
  %v3655 = vunpack.c.0.s8 %v3654
  %v3656 = vlaneseq
  %v3657 = vshrl.u32 %v3656, 7
  %v3658 = vsub.s32 %v3655, %v3657
  %v3659 = vrot.slane %v3631, %v3658
  %v3660 = vcombine.high %v3638, %v3638
  %v3661 = vcombine.high %v3652, %v3652
  %v3662 = vcombine.high %v3659, %v3659
  %v3663 = vcombine.high %v1282, %v1282
  %v3665 = vunpack.c.l.s4 1966171168
  %v3666 = vunpack.c.0.s8 %v3665
  %v3667 = vlaneseq
  %v3668 = vshrl.u32 %v3667, 7
  %v3669 = vsub.s32 %v3666, %v3668
  %v3670 = vrot.slane %v1282, %v3669
  %v3672 = vunpack.c.l.s4 1966171168
  %v3673 = vunpack.c.0.s8 %v3672
  %v3674 = vlaneseq
  %v3675 = vshrl.u32 %v3674, 7
  %v3676 = vsub.s32 %v3673, %v3675
  %v3677 = vrot.slane %v3663, %v3676
  %v3678 = vcombine.high %v3670, %v3670
  %v3679 = vcombine.high %v3677, %v3677
  %v3681 = vunpack.c.l.s4 1966171168
  %v3682 = vunpack.c.0.s8 %v3681
  %v3683 = vlaneseq
  %v3684 = vshrl.u32 %v3683, 7
  %v3685 = vsub.s32 %v3682, %v3684
  %v3686 = vrot.slane %v3670, %v3685
  %v3688 = vunpack.c.l.s4 1966171168
  %v3689 = vunpack.c.0.s8 %v3688
  %v3690 = vlaneseq
  %v3691 = vshrl.u32 %v3690, 7
  %v3692 = vsub.s32 %v3689, %v3691
  %v3693 = vrot.slane %v3677, %v3692
  %v3695 = vunpack.c.l.s4 1966171168
  %v3696 = vunpack.c.0.s8 %v3695
  %v3697 = vlaneseq
  %v3698 = vshrl.u32 %v3697, 7
  %v3699 = vsub.s32 %v3696, %v3698
  %v3700 = vrot.slane %v3678, %v3699
  %v3702 = vunpack.c.l.s4 1966171168
  %v3703 = vunpack.c.0.s8 %v3702
  %v3704 = vlaneseq
  %v3705 = vshrl.u32 %v3704, 7
  %v3706 = vsub.s32 %v3703, %v3705
  %v3707 = vrot.slane %v3679, %v3706
  %v3708 = vcombine.high %v3686, %v3686
  %v3709 = vcombine.high %v3693, %v3693
  %v3710 = vcombine.high %v3700, %v3700
  %v3711 = vcombine.high %v3707, %v3707
  %v3712 = vcombine.high %v1283, %v1283
  %v3714 = vunpack.c.l.s4 1966171168
  %v3715 = vunpack.c.0.s8 %v3714
  %v3716 = vlaneseq
  %v3717 = vshrl.u32 %v3716, 7
  %v3718 = vsub.s32 %v3715, %v3717
  %v3719 = vrot.slane %v1283, %v3718
  %v3721 = vunpack.c.l.s4 1966171168
  %v3722 = vunpack.c.0.s8 %v3721
  %v3723 = vlaneseq
  %v3724 = vshrl.u32 %v3723, 7
  %v3725 = vsub.s32 %v3722, %v3724
  %v3726 = vrot.slane %v3712, %v3725
  %v3727 = vcombine.high %v3719, %v3719
  %v3728 = vcombine.high %v3726, %v3726
  %v3730 = vunpack.c.l.s4 1966171168
  %v3731 = vunpack.c.0.s8 %v3730
  %v3732 = vlaneseq
  %v3733 = vshrl.u32 %v3732, 7
  %v3734 = vsub.s32 %v3731, %v3733
  %v3735 = vrot.slane %v3719, %v3734
  %v3737 = vunpack.c.l.s4 1966171168
  %v3738 = vunpack.c.0.s8 %v3737
  %v3739 = vlaneseq
  %v3740 = vshrl.u32 %v3739, 7
  %v3741 = vsub.s32 %v3738, %v3740
  %v3742 = vrot.slane %v3726, %v3741
  %v3744 = vunpack.c.l.s4 1966171168
  %v3745 = vunpack.c.0.s8 %v3744
  %v3746 = vlaneseq
  %v3747 = vshrl.u32 %v3746, 7
  %v3748 = vsub.s32 %v3745, %v3747
  %v3749 = vrot.slane %v3727, %v3748
  %v3751 = vunpack.c.l.s4 1966171168
  %v3752 = vunpack.c.0.s8 %v3751
  %v3753 = vlaneseq
  %v3754 = vshrl.u32 %v3753, 7
  %v3755 = vsub.s32 %v3752, %v3754
  %v3756 = vrot.slane %v3728, %v3755
  %v3757 = vcombine.high %v3735, %v3735
  %v3758 = vcombine.high %v3742, %v3742
  %v3759 = vcombine.high %v3749, %v3749
  %v3760 = vcombine.high %v1284, %v1284
  %v3762 = vunpack.c.l.s4 1966171168
  %v3763 = vunpack.c.0.s8 %v3762
  %v3764 = vlaneseq
  %v3765 = vshrl.u32 %v3764, 7
  %v3766 = vsub.s32 %v3763, %v3765
  %v3767 = vrot.slane %v1284, %v3766
  %v3769 = vunpack.c.l.s4 1966171168
  %v3770 = vunpack.c.0.s8 %v3769
  %v3771 = vlaneseq
  %v3772 = vshrl.u32 %v3771, 7
  %v3773 = vsub.s32 %v3770, %v3772
  %v3774 = vrot.slane %v3760, %v3773
  %v3775 = vcombine.high %v3767, %v3767
  %v3776 = vcombine.high %v3774, %v3774
  %v3778 = vunpack.c.l.s4 1966171168
  %v3779 = vunpack.c.0.s8 %v3778
  %v3780 = vlaneseq
  %v3781 = vshrl.u32 %v3780, 7
  %v3782 = vsub.s32 %v3779, %v3781
  %v3783 = vrot.slane %v3767, %v3782
  %v3785 = vunpack.c.l.s4 1966171168
  %v3786 = vunpack.c.0.s8 %v3785
  %v3787 = vlaneseq
  %v3788 = vshrl.u32 %v3787, 7
  %v3789 = vsub.s32 %v3786, %v3788
  %v3790 = vrot.slane %v3774, %v3789
  %v3792 = vunpack.c.l.s4 1966171168
  %v3793 = vunpack.c.0.s8 %v3792
  %v3794 = vlaneseq
  %v3795 = vshrl.u32 %v3794, 7
  %v3796 = vsub.s32 %v3793, %v3795
  %v3797 = vrot.slane %v3775, %v3796
  %v3799 = vunpack.c.l.s4 1966171168
  %v3800 = vunpack.c.0.s8 %v3799
  %v3801 = vlaneseq
  %v3802 = vshrl.u32 %v3801, 7
  %v3803 = vsub.s32 %v3800, %v3802
  %v3804 = vrot.slane %v3776, %v3803
  %v3805 = vcombine.high %v3783, %v3783
  %v3806 = vcombine.high %v3790, %v3790
  %v3807 = vcombine.high %v3797, %v3797
  %v3808 = vcombine.high %v3804, %v3804
  %v3809 = vcombine.high %v1285, %v1285
  %v3811 = vunpack.c.l.s4 1966171168
  %v3812 = vunpack.c.0.s8 %v3811
  %v3813 = vlaneseq
  %v3814 = vshrl.u32 %v3813, 7
  %v3815 = vsub.s32 %v3812, %v3814
  %v3816 = vrot.slane %v1285, %v3815
  %v3818 = vunpack.c.l.s4 1966171168
  %v3819 = vunpack.c.0.s8 %v3818
  %v3820 = vlaneseq
  %v3821 = vshrl.u32 %v3820, 7
  %v3822 = vsub.s32 %v3819, %v3821
  %v3823 = vrot.slane %v3809, %v3822
  %v3824 = vcombine.high %v3816, %v3816
  %v3825 = vcombine.high %v3823, %v3823
  %v3827 = vunpack.c.l.s4 1966171168
  %v3828 = vunpack.c.0.s8 %v3827
  %v3829 = vlaneseq
  %v3830 = vshrl.u32 %v3829, 7
  %v3831 = vsub.s32 %v3828, %v3830
  %v3832 = vrot.slane %v3816, %v3831
  %v3834 = vunpack.c.l.s4 1966171168
  %v3835 = vunpack.c.0.s8 %v3834
  %v3836 = vlaneseq
  %v3837 = vshrl.u32 %v3836, 7
  %v3838 = vsub.s32 %v3835, %v3837
  %v3839 = vrot.slane %v3823, %v3838
  %v3841 = vunpack.c.l.s4 1966171168
  %v3842 = vunpack.c.0.s8 %v3841
  %v3843 = vlaneseq
  %v3844 = vshrl.u32 %v3843, 7
  %v3845 = vsub.s32 %v3842, %v3844
  %v3846 = vrot.slane %v3824, %v3845
  %v3848 = vunpack.c.l.s4 1966171168
  %v3849 = vunpack.c.0.s8 %v3848
  %v3850 = vlaneseq
  %v3851 = vshrl.u32 %v3850, 7
  %v3852 = vsub.s32 %v3849, %v3851
  %v3853 = vrot.slane %v3825, %v3852
  %v3854 = vcombine.high %v3832, %v3832
  %v3855 = vcombine.high %v3839, %v3839
  %v3856 = vcombine.high %v3846, %v3846
  %v3857 = vcombine.high %v3853, %v3853
  %v3858 = vcombine.high %v1286, %v1286
  %v3860 = vunpack.c.l.s4 1966171168
  %v3861 = vunpack.c.0.s8 %v3860
  %v3862 = vlaneseq
  %v3863 = vshrl.u32 %v3862, 7
  %v3864 = vsub.s32 %v3861, %v3863
  %v3865 = vrot.slane %v1286, %v3864
  %v3867 = vunpack.c.l.s4 1966171168
  %v3868 = vunpack.c.0.s8 %v3867
  %v3869 = vlaneseq
  %v3870 = vshrl.u32 %v3869, 7
  %v3871 = vsub.s32 %v3868, %v3870
  %v3872 = vrot.slane %v3858, %v3871
  %v3873 = vcombine.high %v3865, %v3865
  %v3874 = vcombine.high %v3872, %v3872
  %v3876 = vunpack.c.l.s4 1966171168
  %v3877 = vunpack.c.0.s8 %v3876
  %v3878 = vlaneseq
  %v3879 = vshrl.u32 %v3878, 7
  %v3880 = vsub.s32 %v3877, %v3879
  %v3881 = vrot.slane %v3865, %v3880
  %v3883 = vunpack.c.l.s4 1966171168
  %v3884 = vunpack.c.0.s8 %v3883
  %v3885 = vlaneseq
  %v3886 = vshrl.u32 %v3885, 7
  %v3887 = vsub.s32 %v3884, %v3886
  %v3888 = vrot.slane %v3872, %v3887
  %v3890 = vunpack.c.l.s4 1966171168
  %v3891 = vunpack.c.0.s8 %v3890
  %v3892 = vlaneseq
  %v3893 = vshrl.u32 %v3892, 7
  %v3894 = vsub.s32 %v3891, %v3893
  %v3895 = vrot.slane %v3873, %v3894
  %v3897 = vunpack.c.l.s4 1966171168
  %v3898 = vunpack.c.0.s8 %v3897
  %v3899 = vlaneseq
  %v3900 = vshrl.u32 %v3899, 7
  %v3901 = vsub.s32 %v3898, %v3900
  %v3902 = vrot.slane %v3874, %v3901
  %v3903 = vcombine.high %v3881, %v3881
  %v3904 = vcombine.high %v3888, %v3888
  %v3905 = vcombine.high %v3895, %v3895
  %v3906 = vcombine.high %v3902, %v3902
  %v3907 = vcombine.high %v1287, %v1287
  %v3909 = vunpack.c.l.s4 1966171168
  %v3910 = vunpack.c.0.s8 %v3909
  %v3911 = vlaneseq
  %v3912 = vshrl.u32 %v3911, 7
  %v3913 = vsub.s32 %v3910, %v3912
  %v3914 = vrot.slane %v1287, %v3913
  %v3916 = vunpack.c.l.s4 1966171168
  %v3917 = vunpack.c.0.s8 %v3916
  %v3918 = vlaneseq
  %v3919 = vshrl.u32 %v3918, 7
  %v3920 = vsub.s32 %v3917, %v3919
  %v3921 = vrot.slane %v3907, %v3920
  %v3922 = vcombine.high %v3914, %v3914
  %v3923 = vcombine.high %v3921, %v3921
  %v3925 = vunpack.c.l.s4 1966171168
  %v3926 = vunpack.c.0.s8 %v3925
  %v3927 = vlaneseq
  %v3928 = vshrl.u32 %v3927, 7
  %v3929 = vsub.s32 %v3926, %v3928
  %v3930 = vrot.slane %v3914, %v3929
  %v3932 = vunpack.c.l.s4 1966171168
  %v3933 = vunpack.c.0.s8 %v3932
  %v3934 = vlaneseq
  %v3935 = vshrl.u32 %v3934, 7
  %v3936 = vsub.s32 %v3933, %v3935
  %v3937 = vrot.slane %v3921, %v3936
  %v3939 = vunpack.c.l.s4 1966171168
  %v3940 = vunpack.c.0.s8 %v3939
  %v3941 = vlaneseq
  %v3942 = vshrl.u32 %v3941, 7
  %v3943 = vsub.s32 %v3940, %v3942
  %v3944 = vrot.slane %v3922, %v3943
  %v3946 = vunpack.c.l.s4 1966171168
  %v3947 = vunpack.c.0.s8 %v3946
  %v3948 = vlaneseq
  %v3949 = vshrl.u32 %v3948, 7
  %v3950 = vsub.s32 %v3947, %v3949
  %v3951 = vrot.slane %v3923, %v3950
  %v3952 = vcombine.high %v3930, %v3930
  %v3953 = vcombine.high %v3937, %v3937
  %v3954 = vcombine.high %v3944, %v3944
  %v3955 = vcombine.high %v3951, %v3951
  %v3956 = vcombine.high %v1288, %v1288
  %v3958 = vunpack.c.l.s4 1966171168
  %v3959 = vunpack.c.0.s8 %v3958
  %v3960 = vlaneseq
  %v3961 = vshrl.u32 %v3960, 7
  %v3962 = vsub.s32 %v3959, %v3961
  %v3963 = vrot.slane %v1288, %v3962
  %v3965 = vunpack.c.l.s4 1966171168
  %v3966 = vunpack.c.0.s8 %v3965
  %v3967 = vlaneseq
  %v3968 = vshrl.u32 %v3967, 7
  %v3969 = vsub.s32 %v3966, %v3968
  %v3970 = vrot.slane %v3956, %v3969
  %v3971 = vcombine.high %v3963, %v3963
  %v3972 = vcombine.high %v3970, %v3970
  %v3974 = vunpack.c.l.s4 1966171168
  %v3975 = vunpack.c.0.s8 %v3974
  %v3976 = vlaneseq
  %v3977 = vshrl.u32 %v3976, 7
  %v3978 = vsub.s32 %v3975, %v3977
  %v3979 = vrot.slane %v3963, %v3978
  %v3981 = vunpack.c.l.s4 1966171168
  %v3982 = vunpack.c.0.s8 %v3981
  %v3983 = vlaneseq
  %v3984 = vshrl.u32 %v3983, 7
  %v3985 = vsub.s32 %v3982, %v3984
  %v3986 = vrot.slane %v3970, %v3985
  %v3988 = vunpack.c.l.s4 1966171168
  %v3989 = vunpack.c.0.s8 %v3988
  %v3990 = vlaneseq
  %v3991 = vshrl.u32 %v3990, 7
  %v3992 = vsub.s32 %v3989, %v3991
  %v3993 = vrot.slane %v3971, %v3992
  %v3995 = vunpack.c.l.s4 1966171168
  %v3996 = vunpack.c.0.s8 %v3995
  %v3997 = vlaneseq
  %v3998 = vshrl.u32 %v3997, 7
  %v3999 = vsub.s32 %v3996, %v3998
  %v4000 = vrot.slane %v3972, %v3999
  %v4001 = vcombine.high %v3979, %v3979
  %v4002 = vcombine.high %v3986, %v3986
  %v4003 = vcombine.high %v3993, %v3993
  %v4004 = vcombine.high %v4000, %v4000
  %v4005 = vcombine.high %v1289, %v1289
  %v4007 = vunpack.c.l.s4 1966171168
  %v4008 = vunpack.c.0.s8 %v4007
  %v4009 = vlaneseq
  %v4010 = vshrl.u32 %v4009, 7
  %v4011 = vsub.s32 %v4008, %v4010
  %v4012 = vrot.slane %v1289, %v4011
  %v4014 = vunpack.c.l.s4 1966171168
  %v4015 = vunpack.c.0.s8 %v4014
  %v4016 = vlaneseq
  %v4017 = vshrl.u32 %v4016, 7
  %v4018 = vsub.s32 %v4015, %v4017
  %v4019 = vrot.slane %v4005, %v4018
  %v4020 = vcombine.high %v4012, %v4012
  %v4021 = vcombine.high %v4019, %v4019
  %v4023 = vunpack.c.l.s4 1966171168
  %v4024 = vunpack.c.0.s8 %v4023
  %v4025 = vlaneseq
  %v4026 = vshrl.u32 %v4025, 7
  %v4027 = vsub.s32 %v4024, %v4026
  %v4028 = vrot.slane %v4012, %v4027
  %v4030 = vunpack.c.l.s4 1966171168
  %v4031 = vunpack.c.0.s8 %v4030
  %v4032 = vlaneseq
  %v4033 = vshrl.u32 %v4032, 7
  %v4034 = vsub.s32 %v4031, %v4033
  %v4035 = vrot.slane %v4019, %v4034
  %v4037 = vunpack.c.l.s4 1966171168
  %v4038 = vunpack.c.0.s8 %v4037
  %v4039 = vlaneseq
  %v4040 = vshrl.u32 %v4039, 7
  %v4041 = vsub.s32 %v4038, %v4040
  %v4042 = vrot.slane %v4020, %v4041
  %v4044 = vunpack.c.l.s4 1966171168
  %v4045 = vunpack.c.0.s8 %v4044
  %v4046 = vlaneseq
  %v4047 = vshrl.u32 %v4046, 7
  %v4048 = vsub.s32 %v4045, %v4047
  %v4049 = vrot.slane %v4021, %v4048
  %v4050 = vcombine.high %v4028, %v4028
  %v4051 = vcombine.high %v4035, %v4035
  %v4052 = vcombine.high %v4042, %v4042
  %v4053 = vcombine.high %v4049, %v4049
  %v4054 = vcombine.high %v1290, %v1290
  %v4056 = vunpack.c.l.s4 1966171168
  %v4057 = vunpack.c.0.s8 %v4056
  %v4058 = vlaneseq
  %v4059 = vshrl.u32 %v4058, 7
  %v4060 = vsub.s32 %v4057, %v4059
  %v4061 = vrot.slane %v1290, %v4060
  %v4063 = vunpack.c.l.s4 1966171168
  %v4064 = vunpack.c.0.s8 %v4063
  %v4065 = vlaneseq
  %v4066 = vshrl.u32 %v4065, 7
  %v4067 = vsub.s32 %v4064, %v4066
  %v4068 = vrot.slane %v4054, %v4067
  %v4069 = vcombine.high %v4061, %v4061
  %v4070 = vcombine.high %v4068, %v4068
  %v4072 = vunpack.c.l.s4 1966171168
  %v4073 = vunpack.c.0.s8 %v4072
  %v4074 = vlaneseq
  %v4075 = vshrl.u32 %v4074, 7
  %v4076 = vsub.s32 %v4073, %v4075
  %v4077 = vrot.slane %v4061, %v4076
  %v4079 = vunpack.c.l.s4 1966171168
  %v4080 = vunpack.c.0.s8 %v4079
  %v4081 = vlaneseq
  %v4082 = vshrl.u32 %v4081, 7
  %v4083 = vsub.s32 %v4080, %v4082
  %v4084 = vrot.slane %v4068, %v4083
  %v4086 = vunpack.c.l.s4 1966171168
  %v4087 = vunpack.c.0.s8 %v4086
  %v4088 = vlaneseq
  %v4089 = vshrl.u32 %v4088, 7
  %v4090 = vsub.s32 %v4087, %v4089
  %v4091 = vrot.slane %v4069, %v4090
  %v4093 = vunpack.c.l.s4 1966171168
  %v4094 = vunpack.c.0.s8 %v4093
  %v4095 = vlaneseq
  %v4096 = vshrl.u32 %v4095, 7
  %v4097 = vsub.s32 %v4094, %v4096
  %v4098 = vrot.slane %v4070, %v4097
  %v4099 = vcombine.high %v4084, %v4084
  %v4100 = vcombine.high %v4091, %v4091
  %v4101 = vcombine.high %v4098, %v4098
  %v4102 = vcombine.high %v1291, %v1291
  %v4104 = vunpack.c.l.s4 1966171168
  %v4105 = vunpack.c.0.s8 %v4104
  %v4106 = vlaneseq
  %v4107 = vshrl.u32 %v4106, 7
  %v4108 = vsub.s32 %v4105, %v4107
  %v4109 = vrot.slane %v1291, %v4108
  %v4111 = vunpack.c.l.s4 1966171168
  %v4112 = vunpack.c.0.s8 %v4111
  %v4113 = vlaneseq
  %v4114 = vshrl.u32 %v4113, 7
  %v4115 = vsub.s32 %v4112, %v4114
  %v4116 = vrot.slane %v4102, %v4115
  %v4117 = vcombine.high %v4109, %v4109
  %v4118 = vcombine.high %v4116, %v4116
  %v4120 = vunpack.c.l.s4 1966171168
  %v4121 = vunpack.c.0.s8 %v4120
  %v4122 = vlaneseq
  %v4123 = vshrl.u32 %v4122, 7
  %v4124 = vsub.s32 %v4121, %v4123
  %v4125 = vrot.slane %v4109, %v4124
  %v4127 = vunpack.c.l.s4 1966171168
  %v4128 = vunpack.c.0.s8 %v4127
  %v4129 = vlaneseq
  %v4130 = vshrl.u32 %v4129, 7
  %v4131 = vsub.s32 %v4128, %v4130
  %v4132 = vrot.slane %v4116, %v4131
  %v4134 = vunpack.c.l.s4 1966171168
  %v4135 = vunpack.c.0.s8 %v4134
  %v4136 = vlaneseq
  %v4137 = vshrl.u32 %v4136, 7
  %v4138 = vsub.s32 %v4135, %v4137
  %v4139 = vrot.slane %v4117, %v4138
  %v4141 = vunpack.c.l.s4 1966171168
  %v4142 = vunpack.c.0.s8 %v4141
  %v4143 = vlaneseq
  %v4144 = vshrl.u32 %v4143, 7
  %v4145 = vsub.s32 %v4142, %v4144
  %v4146 = vrot.slane %v4118, %v4145
  %v4147 = vcombine.high %v4125, %v4125
  %v4148 = vcombine.high %v4132, %v4132
  %v4149 = vcombine.high %v4139, %v4139
  %v4150 = vcombine.high %v4146, %v4146
  %v4151 = vcombine.high %v1292, %v1292
  %v4153 = vunpack.c.l.s4 1966171168
  %v4154 = vunpack.c.0.s8 %v4153
  %v4155 = vlaneseq
  %v4156 = vshrl.u32 %v4155, 7
  %v4157 = vsub.s32 %v4154, %v4156
  %v4158 = vrot.slane %v1292, %v4157
  %v4160 = vunpack.c.l.s4 1966171168
  %v4161 = vunpack.c.0.s8 %v4160
  %v4162 = vlaneseq
  %v4163 = vshrl.u32 %v4162, 7
  %v4164 = vsub.s32 %v4161, %v4163
  %v4165 = vrot.slane %v4151, %v4164
  %v4166 = vcombine.high %v4158, %v4158
  %v4167 = vcombine.high %v4165, %v4165
  %v4169 = vunpack.c.l.s4 1966171168
  %v4170 = vunpack.c.0.s8 %v4169
  %v4171 = vlaneseq
  %v4172 = vshrl.u32 %v4171, 7
  %v4173 = vsub.s32 %v4170, %v4172
  %v4174 = vrot.slane %v4158, %v4173
  %v4176 = vunpack.c.l.s4 1966171168
  %v4177 = vunpack.c.0.s8 %v4176
  %v4178 = vlaneseq
  %v4179 = vshrl.u32 %v4178, 7
  %v4180 = vsub.s32 %v4177, %v4179
  %v4181 = vrot.slane %v4165, %v4180
  %v4183 = vunpack.c.l.s4 1966171168
  %v4184 = vunpack.c.0.s8 %v4183
  %v4185 = vlaneseq
  %v4186 = vshrl.u32 %v4185, 7
  %v4187 = vsub.s32 %v4184, %v4186
  %v4188 = vrot.slane %v4166, %v4187
  %v4190 = vunpack.c.l.s4 1966171168
  %v4191 = vunpack.c.0.s8 %v4190
  %v4192 = vlaneseq
  %v4193 = vshrl.u32 %v4192, 7
  %v4194 = vsub.s32 %v4191, %v4193
  %v4195 = vrot.slane %v4167, %v4194
  %v4196 = vcombine.high %v4174, %v4174
  %v4197 = vcombine.high %v4181, %v4181
  %v4198 = vcombine.high %v4195, %v4195
  %v4199 = vcombine.high %v1293, %v1293
  %v4201 = vunpack.c.l.s4 1966171168
  %v4202 = vunpack.c.0.s8 %v4201
  %v4203 = vlaneseq
  %v4204 = vshrl.u32 %v4203, 7
  %v4205 = vsub.s32 %v4202, %v4204
  %v4206 = vrot.slane %v1293, %v4205
  %v4208 = vunpack.c.l.s4 1966171168
  %v4209 = vunpack.c.0.s8 %v4208
  %v4210 = vlaneseq
  %v4211 = vshrl.u32 %v4210, 7
  %v4212 = vsub.s32 %v4209, %v4211
  %v4213 = vrot.slane %v4199, %v4212
  %v4214 = vcombine.high %v4206, %v4206
  %v4215 = vcombine.high %v4213, %v4213
  %v4217 = vunpack.c.l.s4 1966171168
  %v4218 = vunpack.c.0.s8 %v4217
  %v4219 = vlaneseq
  %v4220 = vshrl.u32 %v4219, 7
  %v4221 = vsub.s32 %v4218, %v4220
  %v4222 = vrot.slane %v4206, %v4221
  %v4224 = vunpack.c.l.s4 1966171168
  %v4225 = vunpack.c.0.s8 %v4224
  %v4226 = vlaneseq
  %v4227 = vshrl.u32 %v4226, 7
  %v4228 = vsub.s32 %v4225, %v4227
  %v4229 = vrot.slane %v4213, %v4228
  %v4231 = vunpack.c.l.s4 1966171168
  %v4232 = vunpack.c.0.s8 %v4231
  %v4233 = vlaneseq
  %v4234 = vshrl.u32 %v4233, 7
  %v4235 = vsub.s32 %v4232, %v4234
  %v4236 = vrot.slane %v4214, %v4235
  %v4238 = vunpack.c.l.s4 1966171168
  %v4239 = vunpack.c.0.s8 %v4238
  %v4240 = vlaneseq
  %v4241 = vshrl.u32 %v4240, 7
  %v4242 = vsub.s32 %v4239, %v4241
  %v4243 = vrot.slane %v4215, %v4242
  %v4244 = vcombine.high %v4222, %v4222
  %v4245 = vcombine.high %v4229, %v4229
  %v4246 = vcombine.high %v4236, %v4236
  %v4247 = vcombine.high %v4243, %v4243
  %v4248 = vcombine.high %v1294, %v1294
  %v4250 = vunpack.c.l.s4 1966171168
  %v4251 = vunpack.c.0.s8 %v4250
  %v4252 = vlaneseq
  %v4253 = vshrl.u32 %v4252, 7
  %v4254 = vsub.s32 %v4251, %v4253
  %v4255 = vrot.slane %v1294, %v4254
  %v4257 = vunpack.c.l.s4 1966171168
  %v4258 = vunpack.c.0.s8 %v4257
  %v4259 = vlaneseq
  %v4260 = vshrl.u32 %v4259, 7
  %v4261 = vsub.s32 %v4258, %v4260
  %v4262 = vrot.slane %v4248, %v4261
  %v4263 = vcombine.high %v4255, %v4255
  %v4264 = vcombine.high %v4262, %v4262
  %v4266 = vunpack.c.l.s4 1966171168
  %v4267 = vunpack.c.0.s8 %v4266
  %v4268 = vlaneseq
  %v4269 = vshrl.u32 %v4268, 7
  %v4270 = vsub.s32 %v4267, %v4269
  %v4271 = vrot.slane %v4255, %v4270
  %v4273 = vunpack.c.l.s4 1966171168
  %v4274 = vunpack.c.0.s8 %v4273
  %v4275 = vlaneseq
  %v4276 = vshrl.u32 %v4275, 7
  %v4277 = vsub.s32 %v4274, %v4276
  %v4278 = vrot.slane %v4262, %v4277
  %v4280 = vunpack.c.l.s4 1966171168
  %v4281 = vunpack.c.0.s8 %v4280
  %v4282 = vlaneseq
  %v4283 = vshrl.u32 %v4282, 7
  %v4284 = vsub.s32 %v4281, %v4283
  %v4285 = vrot.slane %v4263, %v4284
  %v4287 = vunpack.c.l.s4 1966171168
  %v4288 = vunpack.c.0.s8 %v4287
  %v4289 = vlaneseq
  %v4290 = vshrl.u32 %v4289, 7
  %v4291 = vsub.s32 %v4288, %v4290
  %v4292 = vrot.slane %v4264, %v4291
  %v4293 = vcombine.high %v4271, %v4271
  %v4294 = vcombine.high %v4278, %v4278
  %v4295 = vcombine.high %v4285, %v4285
  %v4296 = vcombine.high %v4292, %v4292
  %v4297 = vcombine.high %v1295, %v1295
  %v4299 = vunpack.c.l.s4 1966171168
  %v4300 = vunpack.c.0.s8 %v4299
  %v4301 = vlaneseq
  %v4302 = vshrl.u32 %v4301, 7
  %v4303 = vsub.s32 %v4300, %v4302
  %v4304 = vrot.slane %v1295, %v4303
  %v4306 = vunpack.c.l.s4 1966171168
  %v4307 = vunpack.c.0.s8 %v4306
  %v4308 = vlaneseq
  %v4309 = vshrl.u32 %v4308, 7
  %v4310 = vsub.s32 %v4307, %v4309
  %v4311 = vrot.slane %v4297, %v4310
  %v4312 = vcombine.high %v4304, %v4304
  %v4313 = vcombine.high %v4311, %v4311
  %v4315 = vunpack.c.l.s4 1966171168
  %v4316 = vunpack.c.0.s8 %v4315
  %v4317 = vlaneseq
  %v4318 = vshrl.u32 %v4317, 7
  %v4319 = vsub.s32 %v4316, %v4318
  %v4320 = vrot.slane %v4304, %v4319
  %v4322 = vunpack.c.l.s4 1966171168
  %v4323 = vunpack.c.0.s8 %v4322
  %v4324 = vlaneseq
  %v4325 = vshrl.u32 %v4324, 7
  %v4326 = vsub.s32 %v4323, %v4325
  %v4327 = vrot.slane %v4311, %v4326
  %v4329 = vunpack.c.l.s4 1966171168
  %v4330 = vunpack.c.0.s8 %v4329
  %v4331 = vlaneseq
  %v4332 = vshrl.u32 %v4331, 7
  %v4333 = vsub.s32 %v4330, %v4332
  %v4334 = vrot.slane %v4312, %v4333
  %v4336 = vunpack.c.l.s4 1966171168
  %v4337 = vunpack.c.0.s8 %v4336
  %v4338 = vlaneseq
  %v4339 = vshrl.u32 %v4338, 7
  %v4340 = vsub.s32 %v4337, %v4339
  %v4341 = vrot.slane %v4313, %v4340
  %v4342 = vcombine.high %v4320, %v4320
  %v4343 = vcombine.high %v4327, %v4327
  %v4344 = vcombine.high %v4334, %v4334
  %v4345 = vcombine.high %v4341, %v4341
  %v4346 = vcombine.high %v1296, %v1296
  %v4348 = vunpack.c.l.s4 1966171168
  %v4349 = vunpack.c.0.s8 %v4348
  %v4350 = vlaneseq
  %v4351 = vshrl.u32 %v4350, 7
  %v4352 = vsub.s32 %v4349, %v4351
  %v4353 = vrot.slane %v1296, %v4352
  %v4355 = vunpack.c.l.s4 1966171168
  %v4356 = vunpack.c.0.s8 %v4355
  %v4357 = vlaneseq
  %v4358 = vshrl.u32 %v4357, 7
  %v4359 = vsub.s32 %v4356, %v4358
  %v4360 = vrot.slane %v4346, %v4359
  %v4361 = vcombine.high %v4353, %v4353
  %v4362 = vcombine.high %v4360, %v4360
  %v4364 = vunpack.c.l.s4 1966171168
  %v4365 = vunpack.c.0.s8 %v4364
  %v4366 = vlaneseq
  %v4367 = vshrl.u32 %v4366, 7
  %v4368 = vsub.s32 %v4365, %v4367
  %v4369 = vrot.slane %v4353, %v4368
  %v4371 = vunpack.c.l.s4 1966171168
  %v4372 = vunpack.c.0.s8 %v4371
  %v4373 = vlaneseq
  %v4374 = vshrl.u32 %v4373, 7
  %v4375 = vsub.s32 %v4372, %v4374
  %v4376 = vrot.slane %v4360, %v4375
  %v4378 = vunpack.c.l.s4 1966171168
  %v4379 = vunpack.c.0.s8 %v4378
  %v4380 = vlaneseq
  %v4381 = vshrl.u32 %v4380, 7
  %v4382 = vsub.s32 %v4379, %v4381
  %v4383 = vrot.slane %v4361, %v4382
  %v4385 = vunpack.c.l.s4 1966171168
  %v4386 = vunpack.c.0.s8 %v4385
  %v4387 = vlaneseq
  %v4388 = vshrl.u32 %v4387, 7
  %v4389 = vsub.s32 %v4386, %v4388
  %v4390 = vrot.slane %v4362, %v4389
  %v4391 = vcombine.high %v4369, %v4369
  %v4392 = vcombine.high %v4376, %v4376
  %v4393 = vcombine.high %v4383, %v4383
  %v4394 = vcombine.high %v4390, %v4390
  %v4395 = vcombine.high %v1297, %v1297
  %v4397 = vunpack.c.l.s4 1966171168
  %v4398 = vunpack.c.0.s8 %v4397
  %v4399 = vlaneseq
  %v4400 = vshrl.u32 %v4399, 7
  %v4401 = vsub.s32 %v4398, %v4400
  %v4402 = vrot.slane %v1297, %v4401
  %v4404 = vunpack.c.l.s4 1966171168
  %v4405 = vunpack.c.0.s8 %v4404
  %v4406 = vlaneseq
  %v4407 = vshrl.u32 %v4406, 7
  %v4408 = vsub.s32 %v4405, %v4407
  %v4409 = vrot.slane %v4395, %v4408
  %v4410 = vcombine.high %v4402, %v4402
  %v4411 = vcombine.high %v4409, %v4409
  %v4413 = vunpack.c.l.s4 1966171168
  %v4414 = vunpack.c.0.s8 %v4413
  %v4415 = vlaneseq
  %v4416 = vshrl.u32 %v4415, 7
  %v4417 = vsub.s32 %v4414, %v4416
  %v4418 = vrot.slane %v4402, %v4417
  %v4420 = vunpack.c.l.s4 1966171168
  %v4421 = vunpack.c.0.s8 %v4420
  %v4422 = vlaneseq
  %v4423 = vshrl.u32 %v4422, 7
  %v4424 = vsub.s32 %v4421, %v4423
  %v4425 = vrot.slane %v4409, %v4424
  %v4427 = vunpack.c.l.s4 1966171168
  %v4428 = vunpack.c.0.s8 %v4427
  %v4429 = vlaneseq
  %v4430 = vshrl.u32 %v4429, 7
  %v4431 = vsub.s32 %v4428, %v4430
  %v4432 = vrot.slane %v4410, %v4431
  %v4434 = vunpack.c.l.s4 1966171168
  %v4435 = vunpack.c.0.s8 %v4434
  %v4436 = vlaneseq
  %v4437 = vshrl.u32 %v4436, 7
  %v4438 = vsub.s32 %v4435, %v4437
  %v4439 = vrot.slane %v4411, %v4438
  %v4440 = vcombine.high %v4418, %v4418
  %v4441 = vcombine.high %v4425, %v4425
  %v4442 = vcombine.high %v4432, %v4432
  %v4443 = vcombine.high %v4439, %v4439
  %v4444 = vcombine.high %v1298, %v1298
  %v4446 = vunpack.c.l.s4 1966171168
  %v4447 = vunpack.c.0.s8 %v4446
  %v4448 = vlaneseq
  %v4449 = vshrl.u32 %v4448, 7
  %v4450 = vsub.s32 %v4447, %v4449
  %v4451 = vrot.slane %v1298, %v4450
  %v4453 = vunpack.c.l.s4 1966171168
  %v4454 = vunpack.c.0.s8 %v4453
  %v4455 = vlaneseq
  %v4456 = vshrl.u32 %v4455, 7
  %v4457 = vsub.s32 %v4454, %v4456
  %v4458 = vrot.slane %v4444, %v4457
  %v4459 = vcombine.high %v4451, %v4451
  %v4460 = vcombine.high %v4458, %v4458
  %v4462 = vunpack.c.l.s4 1966171168
  %v4463 = vunpack.c.0.s8 %v4462
  %v4464 = vlaneseq
  %v4465 = vshrl.u32 %v4464, 7
  %v4466 = vsub.s32 %v4463, %v4465
  %v4467 = vrot.slane %v4451, %v4466
  %v4469 = vunpack.c.l.s4 1966171168
  %v4470 = vunpack.c.0.s8 %v4469
  %v4471 = vlaneseq
  %v4472 = vshrl.u32 %v4471, 7
  %v4473 = vsub.s32 %v4470, %v4472
  %v4474 = vrot.slane %v4458, %v4473
  %v4476 = vunpack.c.l.s4 1966171168
  %v4477 = vunpack.c.0.s8 %v4476
  %v4478 = vlaneseq
  %v4479 = vshrl.u32 %v4478, 7
  %v4480 = vsub.s32 %v4477, %v4479
  %v4481 = vrot.slane %v4459, %v4480
  %v4483 = vunpack.c.l.s4 1966171168
  %v4484 = vunpack.c.0.s8 %v4483
  %v4485 = vlaneseq
  %v4486 = vshrl.u32 %v4485, 7
  %v4487 = vsub.s32 %v4484, %v4486
  %v4488 = vrot.slane %v4460, %v4487
  %v4489 = vcombine.high %v4467, %v4467
  %v4490 = vcombine.high %v4481, %v4481
  %v4491 = vcombine.high %v4488, %v4488
  %v4492 = vcombine.high %v1299, %v1299
  %v4494 = vunpack.c.l.s4 1966171168
  %v4495 = vunpack.c.0.s8 %v4494
  %v4496 = vlaneseq
  %v4497 = vshrl.u32 %v4496, 7
  %v4498 = vsub.s32 %v4495, %v4497
  %v4499 = vrot.slane %v1299, %v4498
  %v4501 = vunpack.c.l.s4 1966171168
  %v4502 = vunpack.c.0.s8 %v4501
  %v4503 = vlaneseq
  %v4504 = vshrl.u32 %v4503, 7
  %v4505 = vsub.s32 %v4502, %v4504
  %v4506 = vrot.slane %v4492, %v4505
  %v4507 = vcombine.high %v4499, %v4499
  %v4508 = vcombine.high %v4506, %v4506
  %v4510 = vunpack.c.l.s4 1966171168
  %v4511 = vunpack.c.0.s8 %v4510
  %v4512 = vlaneseq
  %v4513 = vshrl.u32 %v4512, 7
  %v4514 = vsub.s32 %v4511, %v4513
  %v4515 = vrot.slane %v4499, %v4514
  %v4517 = vunpack.c.l.s4 1966171168
  %v4518 = vunpack.c.0.s8 %v4517
  %v4519 = vlaneseq
  %v4520 = vshrl.u32 %v4519, 7
  %v4521 = vsub.s32 %v4518, %v4520
  %v4522 = vrot.slane %v4506, %v4521
  %v4524 = vunpack.c.l.s4 1966171168
  %v4525 = vunpack.c.0.s8 %v4524
  %v4526 = vlaneseq
  %v4527 = vshrl.u32 %v4526, 7
  %v4528 = vsub.s32 %v4525, %v4527
  %v4529 = vrot.slane %v4507, %v4528
  %v4531 = vunpack.c.l.s4 1966171168
  %v4532 = vunpack.c.0.s8 %v4531
  %v4533 = vlaneseq
  %v4534 = vshrl.u32 %v4533, 7
  %v4535 = vsub.s32 %v4532, %v4534
  %v4536 = vrot.slane %v4508, %v4535
  %v4537 = vcombine.high %v4515, %v4515
  %v4538 = vcombine.high %v4522, %v4522
  %v4539 = vcombine.high %v4529, %v4529
  %v4540 = vcombine.high %v4536, %v4536
  %v4541 = vcombine.high %v1300, %v1300
  %v4543 = vunpack.c.l.s4 1966171168
  %v4544 = vunpack.c.0.s8 %v4543
  %v4545 = vlaneseq
  %v4546 = vshrl.u32 %v4545, 7
  %v4547 = vsub.s32 %v4544, %v4546
  %v4548 = vrot.slane %v1300, %v4547
  %v4550 = vunpack.c.l.s4 1966171168
  %v4551 = vunpack.c.0.s8 %v4550
  %v4552 = vlaneseq
  %v4553 = vshrl.u32 %v4552, 7
  %v4554 = vsub.s32 %v4551, %v4553
  %v4555 = vrot.slane %v4541, %v4554
  %v4556 = vcombine.high %v4548, %v4548
  %v4557 = vcombine.high %v4555, %v4555
  %v4559 = vunpack.c.l.s4 1966171168
  %v4560 = vunpack.c.0.s8 %v4559
  %v4561 = vlaneseq
  %v4562 = vshrl.u32 %v4561, 7
  %v4563 = vsub.s32 %v4560, %v4562
  %v4564 = vrot.slane %v4548, %v4563
  %v4566 = vunpack.c.l.s4 1966171168
  %v4567 = vunpack.c.0.s8 %v4566
  %v4568 = vlaneseq
  %v4569 = vshrl.u32 %v4568, 7
  %v4570 = vsub.s32 %v4567, %v4569
  %v4571 = vrot.slane %v4555, %v4570
  %v4573 = vunpack.c.l.s4 1966171168
  %v4574 = vunpack.c.0.s8 %v4573
  %v4575 = vlaneseq
  %v4576 = vshrl.u32 %v4575, 7
  %v4577 = vsub.s32 %v4574, %v4576
  %v4578 = vrot.slane %v4556, %v4577
  %v4580 = vunpack.c.l.s4 1966171168
  %v4581 = vunpack.c.0.s8 %v4580
  %v4582 = vlaneseq
  %v4583 = vshrl.u32 %v4582, 7
  %v4584 = vsub.s32 %v4581, %v4583
  %v4585 = vrot.slane %v4557, %v4584
  %v4586 = vcombine.high %v4564, %v4564
  %v4587 = vcombine.high %v4571, %v4571
  %v4588 = vcombine.high %v4578, %v4578
  %v4589 = vcombine.high %v1301, %v1301
  %v4591 = vunpack.c.l.s4 1966171168
  %v4592 = vunpack.c.0.s8 %v4591
  %v4593 = vlaneseq
  %v4594 = vshrl.u32 %v4593, 7
  %v4595 = vsub.s32 %v4592, %v4594
  %v4596 = vrot.slane %v1301, %v4595
  %v4598 = vunpack.c.l.s4 1966171168
  %v4599 = vunpack.c.0.s8 %v4598
  %v4600 = vlaneseq
  %v4601 = vshrl.u32 %v4600, 7
  %v4602 = vsub.s32 %v4599, %v4601
  %v4603 = vrot.slane %v4589, %v4602
  %v4604 = vcombine.high %v4596, %v4596
  %v4605 = vcombine.high %v4603, %v4603
  %v4607 = vunpack.c.l.s4 1966171168
  %v4608 = vunpack.c.0.s8 %v4607
  %v4609 = vlaneseq
  %v4610 = vshrl.u32 %v4609, 7
  %v4611 = vsub.s32 %v4608, %v4610
  %v4612 = vrot.slane %v4596, %v4611
  %v4614 = vunpack.c.l.s4 1966171168
  %v4615 = vunpack.c.0.s8 %v4614
  %v4616 = vlaneseq
  %v4617 = vshrl.u32 %v4616, 7
  %v4618 = vsub.s32 %v4615, %v4617
  %v4619 = vrot.slane %v4603, %v4618
  %v4621 = vunpack.c.l.s4 1966171168
  %v4622 = vunpack.c.0.s8 %v4621
  %v4623 = vlaneseq
  %v4624 = vshrl.u32 %v4623, 7
  %v4625 = vsub.s32 %v4622, %v4624
  %v4626 = vrot.slane %v4604, %v4625
  %v4628 = vunpack.c.l.s4 1966171168
  %v4629 = vunpack.c.0.s8 %v4628
  %v4630 = vlaneseq
  %v4631 = vshrl.u32 %v4630, 7
  %v4632 = vsub.s32 %v4629, %v4631
  %v4633 = vrot.slane %v4605, %v4632
  %v4634 = vcombine.high %v4612, %v4612
  %v4635 = vcombine.high %v4619, %v4619
  %v4636 = vcombine.high %v4626, %v4626
  %v4637 = vcombine.high %v4633, %v4633
  %v4638 = vcombine.high %v1302, %v1302
  %v4640 = vunpack.c.l.s4 1966171168
  %v4641 = vunpack.c.0.s8 %v4640
  %v4642 = vlaneseq
  %v4643 = vshrl.u32 %v4642, 7
  %v4644 = vsub.s32 %v4641, %v4643
  %v4645 = vrot.slane %v1302, %v4644
  %v4647 = vunpack.c.l.s4 1966171168
  %v4648 = vunpack.c.0.s8 %v4647
  %v4649 = vlaneseq
  %v4650 = vshrl.u32 %v4649, 7
  %v4651 = vsub.s32 %v4648, %v4650
  %v4652 = vrot.slane %v4638, %v4651
  %v4653 = vcombine.high %v4645, %v4645
  %v4654 = vcombine.high %v4652, %v4652
  %v4656 = vunpack.c.l.s4 1966171168
  %v4657 = vunpack.c.0.s8 %v4656
  %v4658 = vlaneseq
  %v4659 = vshrl.u32 %v4658, 7
  %v4660 = vsub.s32 %v4657, %v4659
  %v4661 = vrot.slane %v4645, %v4660
  %v4663 = vunpack.c.l.s4 1966171168
  %v4664 = vunpack.c.0.s8 %v4663
  %v4665 = vlaneseq
  %v4666 = vshrl.u32 %v4665, 7
  %v4667 = vsub.s32 %v4664, %v4666
  %v4668 = vrot.slane %v4652, %v4667
  %v4670 = vunpack.c.l.s4 1966171168
  %v4671 = vunpack.c.0.s8 %v4670
  %v4672 = vlaneseq
  %v4673 = vshrl.u32 %v4672, 7
  %v4674 = vsub.s32 %v4671, %v4673
  %v4675 = vrot.slane %v4653, %v4674
  %v4677 = vunpack.c.l.s4 1966171168
  %v4678 = vunpack.c.0.s8 %v4677
  %v4679 = vlaneseq
  %v4680 = vshrl.u32 %v4679, 7
  %v4681 = vsub.s32 %v4678, %v4680
  %v4682 = vrot.slane %v4654, %v4681
  %v4683 = vcombine.high %v4661, %v4661
  %v4684 = vcombine.high %v4668, %v4668
  %v4685 = vcombine.high %v4675, %v4675
  %v4686 = vcombine.high %v4682, %v4682
  %v5199 = vadd.f32 %v1394, %v1506
  %v5200 = vadd.f32 %v1408, %v1514
  %v5201 = vadd.f32 %v1416, %v1516
  %v5202 = vadd.f32 %v1418, %v1499
  %v5203 = vadd.f32 %v1401, %v1513
  %v5204 = vadd.f32 %v1415, %v1515
  %v5205 = vadd.f32 %v1417, %v1517
  %v5206 = vadd.f32 %v1419, %v1541
  %v5207 = vadd.f32 %v1443, %v1555
  %v5208 = vadd.f32 %v1457, %v1563
  %v5209 = vadd.f32 %v1465, %v1565
  %v5210 = vadd.f32 %v1467, %v1548
  %v5211 = vadd.f32 %v1450, %v1562
  %v5212 = vadd.f32 %v1464, %v1564
  %v5213 = vadd.f32 %v1466, %v1566
  %v5214 = vadd.f32 %v1468, %v1590
  %v5215 = vadd.f32 %v1612, %v1711
  %v5216 = vadd.f32 %v1614, %v1695
  %v5217 = vadd.f32 %v1597, %v1709
  %v5218 = vadd.f32 %v1611, %v1710
  %v5219 = vadd.f32 %v1613, %v1712
  %v5220 = vadd.f32 %v1615, %v1736
  %v5221 = vadd.f32 %v1639, %v1750
  %v5222 = vadd.f32 %v1653, %v1758
  %v5223 = vadd.f32 %v1661, %v1760
  %v5224 = vadd.f32 %v1663, %v1743
  %v5225 = vadd.f32 %v1646, %v1757
  %v5226 = vadd.f32 %v1660, %v1759
  %v5227 = vadd.f32 %v1662, %v1761
  %v5228 = vadd.f32 %v1664, %v1785
  %v5229 = vadd.f32 %v1688, %v1799
  %v5230 = vadd.f32 %v1702, %v1807
  %v5231 = vadd.f32 %v1792, %v1903
  %v5232 = vadd.f32 %v1806, %v1905
  %v5233 = vadd.f32 %v1808, %v1907
  %v5234 = vadd.f32 %v1809, %v1931
  %v5235 = vadd.f32 %v1833, %v1945
  %v5236 = vadd.f32 %v1847, %v1953
  %v5237 = vadd.f32 %v1855, %v1955
  %v5238 = vadd.f32 %v1857, %v1938
  %v5239 = vadd.f32 %v1840, %v1952
  %v5240 = vadd.f32 %v1854, %v1954
  %v5241 = vadd.f32 %v1856, %v1956
  %v5242 = vadd.f32 %v1858, %v1980
  %v5243 = vadd.f32 %v1882, %v1994
  %v5244 = vadd.f32 %v1896, %v2002
  %v5245 = vadd.f32 %v1904, %v2004
  %v5246 = vadd.f32 %v1906, %v1987
  %v5247 = vadd.f32 %v2003, %v2102
  %v5248 = vadd.f32 %v2005, %v2126
  %v5249 = vadd.f32 %v2029, %v2140
  %v5250 = vadd.f32 %v2043, %v2148
  %v5251 = vadd.f32 %v2051, %v2150
  %v5252 = vadd.f32 %v2053, %v2133
  %v5253 = vadd.f32 %v2036, %v2147
  %v5254 = vadd.f32 %v2050, %v2149
  %v5255 = vadd.f32 %v2052, %v2151
  %v5256 = vadd.f32 %v2054, %v2175
  %v5257 = vadd.f32 %v2078, %v2189
  %v5258 = vadd.f32 %v2092, %v2197
  %v5259 = vadd.f32 %v2100, %v2199
  %v5260 = vadd.f32 %v2101, %v2182
  %v5261 = vadd.f32 %v2085, %v2196
  %v5262 = vadd.f32 %v2099, %v2198
  %v5263 = vadd.f32 %v2223, %v2335
  %v5264 = vadd.f32 %v2237, %v2343
  %v5265 = vadd.f32 %v2245, %v2345
  %v5266 = vadd.f32 %v2247, %v2328
  %v5267 = vadd.f32 %v2230, %v2342
  %v5268 = vadd.f32 %v2244, %v2344
  %v5269 = vadd.f32 %v2246, %v2346
  %v5270 = vadd.f32 %v2248, %v2370
  %v5271 = vadd.f32 %v2272, %v2384
  %v5272 = vadd.f32 %v2286, %v2392
  %v5273 = vadd.f32 %v2294, %v2394
  %v5274 = vadd.f32 %v2296, %v2377
  %v5275 = vadd.f32 %v2279, %v2391
  %v5276 = vadd.f32 %v2293, %v2393
  %v5277 = vadd.f32 %v2295, %v2395
  %v5278 = vadd.f32 %v2297, %v2419
  %v5279 = vadd.f32 %v2441, %v2540
  %v5280 = vadd.f32 %v2443, %v2524
  %v5281 = vadd.f32 %v2426, %v2538
  %v5282 = vadd.f32 %v2440, %v2539
  %v5283 = vadd.f32 %v2442, %v2541
  %v5284 = vadd.f32 %v2444, %v2565
  %v5285 = vadd.f32 %v2468, %v2579
  %v5286 = vadd.f32 %v2482, %v2587
  %v5287 = vadd.f32 %v2490, %v2589
  %v5288 = vadd.f32 %v2492, %v2572
  %v5289 = vadd.f32 %v2475, %v2586
  %v5290 = vadd.f32 %v2489, %v2588
  %v5291 = vadd.f32 %v2491, %v2590
  %v5292 = vadd.f32 %v2493, %v2614
  %v5293 = vadd.f32 %v2517, %v2628
  %v5294 = vadd.f32 %v2531, %v2636
  %v5295 = vadd.f32 %v2621, %v2732
  %v5296 = vadd.f32 %v2635, %v2734
  %v5297 = vadd.f32 %v2637, %v2736
  %v5298 = vadd.f32 %v2638, %v2760
  %v5299 = vadd.f32 %v2662, %v2774
  %v5300 = vadd.f32 %v2676, %v2782
  %v5301 = vadd.f32 %v2684, %v2784
  %v5302 = vadd.f32 %v2686, %v2767
  %v5303 = vadd.f32 %v2669, %v2781
  %v5304 = vadd.f32 %v2683, %v2783
  %v5305 = vadd.f32 %v2685, %v2785
  %v5306 = vadd.f32 %v2687, %v2809
  %v5307 = vadd.f32 %v2711, %v2823
  %v5308 = vadd.f32 %v2725, %v2831
  %v5309 = vadd.f32 %v2733, %v2833
  %v5310 = vadd.f32 %v2735, %v2816
  %v5311 = vadd.f32 %v2832, %v2931
  %v5312 = vadd.f32 %v2834, %v2955
  %v5313 = vadd.f32 %v2858, %v2969
  %v5314 = vadd.f32 %v2872, %v2977
  %v5315 = vadd.f32 %v2880, %v2979
  %v5316 = vadd.f32 %v2882, %v2962
  %v5317 = vadd.f32 %v2865, %v2976
  %v5318 = vadd.f32 %v2879, %v2978
  %v5319 = vadd.f32 %v2881, %v2980
  %v5320 = vadd.f32 %v2883, %v3004
  %v5321 = vadd.f32 %v2907, %v3018
  %v5322 = vadd.f32 %v2921, %v3026
  %v5323 = vadd.f32 %v2929, %v3028
  %v5324 = vadd.f32 %v2930, %v3011
  %v5325 = vadd.f32 %v2914, %v3025
  %v5326 = vadd.f32 %v2928, %v3027
  %v5327 = vadd.f32 %v3066, %v3172
  %v5328 = vadd.f32 %v3074, %v3174
  %v5329 = vadd.f32 %v3076, %v3157
  %v5330 = vadd.f32 %v3059, %v3171
  %v5331 = vadd.f32 %v3073, %v3173
  %v5332 = vadd.f32 %v3075, %v3175
  %v5333 = vadd.f32 %v3077, %v3199
  %v5334 = vadd.f32 %v3101, %v3213
  %v5335 = vadd.f32 %v3115, %v3221
  %v5336 = vadd.f32 %v3123, %v3223
  %v5337 = vadd.f32 %v3125, %v3206
  %v5338 = vadd.f32 %v3108, %v3220
  %v5339 = vadd.f32 %v3122, %v3222
  %v5340 = vadd.f32 %v3124, %v3224
  %v5341 = vadd.f32 %v3126, %v3248
  %v5342 = vadd.f32 %v3150, %v3262
  %v5343 = vadd.f32 %v3271, %v3352
  %v5344 = vadd.f32 %v3255, %v3366
  %v5345 = vadd.f32 %v3269, %v3368
  %v5346 = vadd.f32 %v3270, %v3369
  %v5347 = vadd.f32 %v3272, %v3393
  %v5348 = vadd.f32 %v3296, %v3407
  %v5349 = vadd.f32 %v3310, %v3415
  %v5350 = vadd.f32 %v3318, %v3417
  %v5351 = vadd.f32 %v3320, %v3400
  %v5352 = vadd.f32 %v3303, %v3414
  %v5353 = vadd.f32 %v3317, %v3416
  %v5354 = vadd.f32 %v3319, %v3418
  %v5355 = vadd.f32 %v3321, %v3442
  %v5356 = vadd.f32 %v3345, %v3456
  %v5357 = vadd.f32 %v3359, %v3464
  %v5358 = vadd.f32 %v3367, %v3466
  %v5359 = vadd.f32 %v3463, %v3563
  %v5360 = vadd.f32 %v3465, %v3565
  %v5361 = vadd.f32 %v3467, %v3589
  %v5362 = vadd.f32 %v3491, %v3603
  %v5363 = vadd.f32 %v3505, %v3611
  %v5364 = vadd.f32 %v3513, %v3613
  %v5365 = vadd.f32 %v3515, %v3596
  %v5366 = vadd.f32 %v3498, %v3610
  %v5367 = vadd.f32 %v3512, %v3612
  %v5368 = vadd.f32 %v3514, %v3614
  %v5369 = vadd.f32 %v3516, %v3638
  %v5370 = vadd.f32 %v3540, %v3652
  %v5371 = vadd.f32 %v3554, %v3660
  %v5372 = vadd.f32 %v3562, %v3661
  %v5373 = vadd.f32 %v3564, %v3645
  %v5374 = vadd.f32 %v3547, %v3659
  %v5375 = vadd.f32 %v3662, %v3783
  %v5376 = vadd.f32 %v3686, %v3797
  %v5377 = vadd.f32 %v3700, %v3805
  %v5378 = vadd.f32 %v3708, %v3807
  %v5379 = vadd.f32 %v3710, %v3790
  %v5380 = vadd.f32 %v3693, %v3804
  %v5381 = vadd.f32 %v3707, %v3806
  %v5382 = vadd.f32 %v3709, %v3808
  %v5383 = vadd.f32 %v3711, %v3832
  %v5384 = vadd.f32 %v3735, %v3846
  %v5385 = vadd.f32 %v3749, %v3854
  %v5386 = vadd.f32 %v3757, %v3856
  %v5387 = vadd.f32 %v3759, %v3839
  %v5388 = vadd.f32 %v3742, %v3853
  %v5389 = vadd.f32 %v3756, %v3855
  %v5390 = vadd.f32 %v3758, %v3857
  %v5391 = vadd.f32 %v3895, %v4001
  %v5392 = vadd.f32 %v3903, %v4003
  %v5393 = vadd.f32 %v3905, %v3986
  %v5394 = vadd.f32 %v3888, %v4000
  %v5395 = vadd.f32 %v3902, %v4002
  %v5396 = vadd.f32 %v3904, %v4004
  %v5397 = vadd.f32 %v3906, %v4028
  %v5398 = vadd.f32 %v3930, %v4042
  %v5399 = vadd.f32 %v3944, %v4050
  %v5400 = vadd.f32 %v3952, %v4052
  %v5401 = vadd.f32 %v3954, %v4035
  %v5402 = vadd.f32 %v3937, %v4049
  %v5403 = vadd.f32 %v3951, %v4051
  %v5404 = vadd.f32 %v3953, %v4053
  %v5405 = vadd.f32 %v3955, %v4077
  %v5406 = vadd.f32 %v3979, %v4091
  %v5407 = vadd.f32 %v4100, %v4181
  %v5408 = vadd.f32 %v4084, %v4195
  %v5409 = vadd.f32 %v4098, %v4197
  %v5410 = vadd.f32 %v4099, %v4198
  %v5411 = vadd.f32 %v4101, %v4222
  %v5412 = vadd.f32 %v4125, %v4236
  %v5413 = vadd.f32 %v4139, %v4244
  %v5414 = vadd.f32 %v4147, %v4246
  %v5415 = vadd.f32 %v4149, %v4229
  %v5416 = vadd.f32 %v4132, %v4243
  %v5417 = vadd.f32 %v4146, %v4245
  %v5418 = vadd.f32 %v4148, %v4247
  %v5419 = vadd.f32 %v4150, %v4271
  %v5420 = vadd.f32 %v4174, %v4285
  %v5421 = vadd.f32 %v4188, %v4293
  %v5422 = vadd.f32 %v4196, %v4295
  %v5423 = vadd.f32 %v4292, %v4392
  %v5424 = vadd.f32 %v4294, %v4394
  %v5425 = vadd.f32 %v4296, %v4418
  %v5426 = vadd.f32 %v4320, %v4432
  %v5427 = vadd.f32 %v4334, %v4440
  %v5428 = vadd.f32 %v4342, %v4442
  %v5429 = vadd.f32 %v4344, %v4425
  %v5430 = vadd.f32 %v4327, %v4439
  %v5431 = vadd.f32 %v4341, %v4441
  %v5432 = vadd.f32 %v4343, %v4443
  %v5433 = vadd.f32 %v4345, %v4467
  %v5434 = vadd.f32 %v4369, %v4481
  %v5435 = vadd.f32 %v4383, %v4489
  %v5436 = vadd.f32 %v4391, %v4490
  %v5437 = vadd.f32 %v4393, %v4474
  %v5438 = vadd.f32 %v4376, %v4488
  %v5439 = vadd.f32 %v4491, %v4612
  %v5440 = vadd.f32 %v4515, %v4626
  %v5441 = vadd.f32 %v4529, %v4634
  %v5442 = vadd.f32 %v4537, %v4636
  %v5443 = vadd.f32 %v4539, %v4619
  %v5444 = vadd.f32 %v4522, %v4633
  %v5445 = vadd.f32 %v4536, %v4635
  %v5446 = vadd.f32 %v4538, %v4637
  %v5447 = vadd.f32 %v4540, %v4661
  %v5448 = vadd.f32 %v4564, %v4675
  %v5449 = vadd.f32 %v4578, %v4683
  %v5450 = vadd.f32 %v4586, %v4685
  %v5451 = vadd.f32 %v4588, %v4668
  %v5452 = vadd.f32 %v4571, %v4682
  %v5453 = vadd.f32 %v4585, %v4684
  %v5454 = vadd.f32 %v4587, %v4686
  %v5455 = vadd.f32 %v5199, %v5200
  %v5456 = vadd.f32 %v5201, %v5202
  %v5457 = vadd.f32 %v5203, %v5204
  %v5458 = vadd.f32 %v5205, %v5206
  %v5459 = vadd.f32 %v5207, %v5208
  %v5460 = vadd.f32 %v5209, %v5210
  %v5461 = vadd.f32 %v5211, %v5212
  %v5462 = vadd.f32 %v5213, %v5214
  %v5463 = vadd.f32 %v5215, %v5216
  %v5464 = vadd.f32 %v5217, %v5218
  %v5465 = vadd.f32 %v5219, %v5220
  %v5466 = vadd.f32 %v5221, %v5222
  %v5467 = vadd.f32 %v5223, %v5224
  %v5468 = vadd.f32 %v5225, %v5226
  %v5469 = vadd.f32 %v5227, %v5228
  %v5470 = vadd.f32 %v5229, %v5230
  %v5471 = vadd.f32 %v5231, %v5232
  %v5472 = vadd.f32 %v5233, %v5234
  %v5473 = vadd.f32 %v5235, %v5236
  %v5474 = vadd.f32 %v5237, %v5238
  %v5475 = vadd.f32 %v5239, %v5240
  %v5476 = vadd.f32 %v5241, %v5242
  %v5477 = vadd.f32 %v5243, %v5244
  %v5478 = vadd.f32 %v5245, %v5246
  %v5479 = vadd.f32 %v5247, %v5248
  %v5480 = vadd.f32 %v5249, %v5250
  %v5481 = vadd.f32 %v5251, %v5252
  %v5482 = vadd.f32 %v5253, %v5254
  %v5483 = vadd.f32 %v5255, %v5256
  %v5484 = vadd.f32 %v5257, %v5258
  %v5485 = vadd.f32 %v5259, %v5260
  %v5486 = vadd.f32 %v5261, %v5262
  %v5487 = vadd.f32 %v5263, %v5264
  %v5488 = vadd.f32 %v5265, %v5266
  %v5489 = vadd.f32 %v5267, %v5268
  %v5490 = vadd.f32 %v5269, %v5270
  %v5491 = vadd.f32 %v5271, %v5272
  %v5492 = vadd.f32 %v5273, %v5274
  %v5493 = vadd.f32 %v5275, %v5276
  %v5494 = vadd.f32 %v5277, %v5278
  %v5495 = vadd.f32 %v5279, %v5280
  %v5496 = vadd.f32 %v5281, %v5282
  %v5497 = vadd.f32 %v5283, %v5284
  %v5498 = vadd.f32 %v5285, %v5286
  %v5499 = vadd.f32 %v5287, %v5288
  %v5500 = vadd.f32 %v5289, %v5290
  %v5501 = vadd.f32 %v5291, %v5292
  %v5502 = vadd.f32 %v5293, %v5294
  %v5503 = vadd.f32 %v5295, %v5296
  %v5504 = vadd.f32 %v5297, %v5298
  %v5505 = vadd.f32 %v5299, %v5300
  %v5506 = vadd.f32 %v5301, %v5302
  %v5507 = vadd.f32 %v5303, %v5304
  %v5508 = vadd.f32 %v5305, %v5306
  %v5509 = vadd.f32 %v5307, %v5308
  %v5510 = vadd.f32 %v5309, %v5310
  %v5511 = vadd.f32 %v5311, %v5312
  %v5512 = vadd.f32 %v5313, %v5314
  %v5513 = vadd.f32 %v5315, %v5316
  %v5514 = vadd.f32 %v5317, %v5318
  %v5515 = vadd.f32 %v5319, %v5320
  %v5516 = vadd.f32 %v5321, %v5322
  %v5517 = vadd.f32 %v5323, %v5324
  %v5518 = vadd.f32 %v5325, %v5326
  %v5519 = vadd.f32 %v5327, %v5328
  %v5520 = vadd.f32 %v5329, %v5330
  %v5521 = vadd.f32 %v5331, %v5332
  %v5522 = vadd.f32 %v5333, %v5334
  %v5523 = vadd.f32 %v5335, %v5336
  %v5524 = vadd.f32 %v5337, %v5338
  %v5525 = vadd.f32 %v5339, %v5340
  %v5526 = vadd.f32 %v5341, %v5342
  %v5527 = vadd.f32 %v5343, %v5344
  %v5528 = vadd.f32 %v5345, %v5346
  %v5529 = vadd.f32 %v5347, %v5348
  %v5530 = vadd.f32 %v5349, %v5350
  %v5531 = vadd.f32 %v5351, %v5352
  %v5532 = vadd.f32 %v5353, %v5354
  %v5533 = vadd.f32 %v5355, %v5356
  %v5534 = vadd.f32 %v5357, %v5358
  %v5535 = vadd.f32 %v5359, %v5360
  %v5536 = vadd.f32 %v5361, %v5362
  %v5537 = vadd.f32 %v5363, %v5364
  %v5538 = vadd.f32 %v5365, %v5366
  %v5539 = vadd.f32 %v5367, %v5368
  %v5540 = vadd.f32 %v5369, %v5370
  %v5541 = vadd.f32 %v5371, %v5372
  %v5542 = vadd.f32 %v5373, %v5374
  %v5543 = vadd.f32 %v5375, %v5376
  %v5544 = vadd.f32 %v5377, %v5378
  %v5545 = vadd.f32 %v5379, %v5380
  %v5546 = vadd.f32 %v5381, %v5382
  %v5547 = vadd.f32 %v5383, %v5384
  %v5548 = vadd.f32 %v5385, %v5386
  %v5549 = vadd.f32 %v5387, %v5388
  %v5550 = vadd.f32 %v5389, %v5390
  %v5551 = vadd.f32 %v5391, %v5392
  %v5552 = vadd.f32 %v5393, %v5394
  %v5553 = vadd.f32 %v5395, %v5396
  %v5554 = vadd.f32 %v5397, %v5398
  %v5555 = vadd.f32 %v5399, %v5400
  %v5556 = vadd.f32 %v5401, %v5402
  %v5557 = vadd.f32 %v5403, %v5404
  %v5558 = vadd.f32 %v5405, %v5406
  %v5559 = vadd.f32 %v5407, %v5408
  %v5560 = vadd.f32 %v5409, %v5410
  %v5561 = vadd.f32 %v5411, %v5412
  %v5562 = vadd.f32 %v5413, %v5414
  %v5563 = vadd.f32 %v5415, %v5416
  %v5564 = vadd.f32 %v5417, %v5418
  %v5565 = vadd.f32 %v5419, %v5420
  %v5566 = vadd.f32 %v5421, %v5422
  %v5567 = vadd.f32 %v5423, %v5424
  %v5568 = vadd.f32 %v5425, %v5426
  %v5569 = vadd.f32 %v5427, %v5428
  %v5570 = vadd.f32 %v5429, %v5430
  %v5571 = vadd.f32 %v5431, %v5432
  %v5572 = vadd.f32 %v5433, %v5434
  %v5573 = vadd.f32 %v5435, %v5436
  %v5574 = vadd.f32 %v5437, %v5438
  %v5575 = vadd.f32 %v5439, %v5440
  %v5576 = vadd.f32 %v5441, %v5442
  %v5577 = vadd.f32 %v5443, %v5444
  %v5578 = vadd.f32 %v5445, %v5446
  %v5579 = vadd.f32 %v5447, %v5448
  %v5580 = vadd.f32 %v5449, %v5450
  %v5581 = vadd.f32 %v5451, %v5452
  %v5582 = vadd.f32 %v5453, %v5454
  %v5711 = vcombine.low %v5455, %v5456
  %v5712 = vcombine.low %v5457, %v5458
  %v5713 = vcombine.low %v5459, %v5460
  %v5714 = vcombine.low %v5461, %v5462
  %v5716 = vunpack.c.l.s4 1966171168
  %v5717 = vunpack.c.0.s8 %v5716
  %v5718 = vlaneseq
  %v5719 = vshrl.u32 %v5718, 7
  %v5720 = vsub.s32 %v5717, %v5719
  %v5721 = vrot.slane %v5711, %v5720
  %v5723 = vunpack.c.l.s4 1966171168
  %v5724 = vunpack.c.0.s8 %v5723
  %v5725 = vlaneseq
  %v5726 = vshrl.u32 %v5725, 7
  %v5727 = vsub.s32 %v5724, %v5726
  %v5728 = vrot.slane %v5712, %v5727
  %v5730 = vunpack.c.l.s4 1966171168
  %v5731 = vunpack.c.0.s8 %v5730
  %v5732 = vlaneseq
  %v5733 = vshrl.u32 %v5732, 7
  %v5734 = vsub.s32 %v5731, %v5733
  %v5735 = vrot.slane %v5713, %v5734
  %v5737 = vunpack.c.l.s4 1966171168
  %v5738 = vunpack.c.0.s8 %v5737
  %v5739 = vlaneseq
  %v5740 = vshrl.u32 %v5739, 7
  %v5741 = vsub.s32 %v5738, %v5740
  %v5742 = vrot.slane %v5714, %v5741
  %v5743 = vcombine.low %v5721, %v5728
  %v5744 = vcombine.low %v5735, %v5742
  %v5746 = vunpack.c.l.s4 1966171168
  %v5747 = vunpack.c.0.s8 %v5746
  %v5748 = vlaneseq
  %v5749 = vshrl.u32 %v5748, 7
  %v5750 = vsub.s32 %v5747, %v5749
  %v5751 = vrot.slane %v5743, %v5750
  %v5753 = vunpack.c.l.s4 1966171168
  %v5754 = vunpack.c.0.s8 %v5753
  %v5755 = vlaneseq
  %v5756 = vshrl.u32 %v5755, 7
  %v5757 = vsub.s32 %v5754, %v5756
  %v5758 = vrot.slane %v5744, %v5757
  %v5759 = vcombine.low %v5751, %v5758
  %v5760 = vcombine.low %v5463, %v5464
  %v5761 = vcombine.low %v5465, %v5466
  %v5762 = vcombine.low %v5467, %v5468
  %v5763 = vcombine.low %v5469, %v5470
  %v5765 = vunpack.c.l.s4 1966171168
  %v5766 = vunpack.c.0.s8 %v5765
  %v5767 = vlaneseq
  %v5768 = vshrl.u32 %v5767, 7
  %v5769 = vsub.s32 %v5766, %v5768
  %v5770 = vrot.slane %v5760, %v5769
  %v5772 = vunpack.c.l.s4 1966171168
  %v5773 = vunpack.c.0.s8 %v5772
  %v5774 = vlaneseq
  %v5775 = vshrl.u32 %v5774, 7
  %v5776 = vsub.s32 %v5773, %v5775
  %v5777 = vrot.slane %v5761, %v5776
  %v5779 = vunpack.c.l.s4 1966171168
  %v5780 = vunpack.c.0.s8 %v5779
  %v5781 = vlaneseq
  %v5782 = vshrl.u32 %v5781, 7
  %v5783 = vsub.s32 %v5780, %v5782
  %v5784 = vrot.slane %v5762, %v5783
  %v5786 = vunpack.c.l.s4 1966171168
  %v5787 = vunpack.c.0.s8 %v5786
  %v5788 = vlaneseq
  %v5789 = vshrl.u32 %v5788, 7
  %v5790 = vsub.s32 %v5787, %v5789
  %v5791 = vrot.slane %v5763, %v5790
  %v5792 = vcombine.low %v5770, %v5777
  %v5793 = vcombine.low %v5784, %v5791
  %v5795 = vunpack.c.l.s4 1966171168
  %v5796 = vunpack.c.0.s8 %v5795
  %v5797 = vlaneseq
  %v5798 = vshrl.u32 %v5797, 7
  %v5799 = vsub.s32 %v5796, %v5798
  %v5800 = vrot.slane %v5792, %v5799
  %v5802 = vunpack.c.l.s4 1966171168
  %v5803 = vunpack.c.0.s8 %v5802
  %v5804 = vlaneseq
  %v5805 = vshrl.u32 %v5804, 7
  %v5806 = vsub.s32 %v5803, %v5805
  %v5807 = vrot.slane %v5793, %v5806
  %v5808 = vcombine.low %v5800, %v5807
  %v5809 = vcombine.low %v5471, %v5472
  %v5810 = vcombine.low %v5473, %v5474
  %v5811 = vcombine.low %v5475, %v5476
  %v5812 = vcombine.low %v5477, %v5478
  %v5814 = vunpack.c.l.s4 1966171168
  %v5815 = vunpack.c.0.s8 %v5814
  %v5816 = vlaneseq
  %v5817 = vshrl.u32 %v5816, 7
  %v5818 = vsub.s32 %v5815, %v5817
  %v5819 = vrot.slane %v5809, %v5818
  %v5821 = vunpack.c.l.s4 1966171168
  %v5822 = vunpack.c.0.s8 %v5821
  %v5823 = vlaneseq
  %v5824 = vshrl.u32 %v5823, 7
  %v5825 = vsub.s32 %v5822, %v5824
  %v5826 = vrot.slane %v5810, %v5825
  %v5828 = vunpack.c.l.s4 1966171168
  %v5829 = vunpack.c.0.s8 %v5828
  %v5830 = vlaneseq
  %v5831 = vshrl.u32 %v5830, 7
  %v5832 = vsub.s32 %v5829, %v5831
  %v5833 = vrot.slane %v5811, %v5832
  %v5835 = vunpack.c.l.s4 1966171168
  %v5836 = vunpack.c.0.s8 %v5835
  %v5837 = vlaneseq
  %v5838 = vshrl.u32 %v5837, 7
  %v5839 = vsub.s32 %v5836, %v5838
  %v5840 = vrot.slane %v5812, %v5839
  %v5841 = vcombine.low %v5819, %v5826
  %v5842 = vcombine.low %v5833, %v5840
  %v5844 = vunpack.c.l.s4 1966171168
  %v5845 = vunpack.c.0.s8 %v5844
  %v5846 = vlaneseq
  %v5847 = vshrl.u32 %v5846, 7
  %v5848 = vsub.s32 %v5845, %v5847
  %v5849 = vrot.slane %v5841, %v5848
  %v5851 = vunpack.c.l.s4 1966171168
  %v5852 = vunpack.c.0.s8 %v5851
  %v5853 = vlaneseq
  %v5854 = vshrl.u32 %v5853, 7
  %v5855 = vsub.s32 %v5852, %v5854
  %v5856 = vrot.slane %v5842, %v5855
  %v5857 = vcombine.low %v5849, %v5856
  %v5858 = vcombine.low %v5479, %v5480
  %v5859 = vcombine.low %v5481, %v5482
  %v5860 = vcombine.low %v5483, %v5484
  %v5861 = vcombine.low %v5485, %v5486
  %v5863 = vunpack.c.l.s4 1966171168
  %v5864 = vunpack.c.0.s8 %v5863
  %v5865 = vlaneseq
  %v5866 = vshrl.u32 %v5865, 7
  %v5867 = vsub.s32 %v5864, %v5866
  %v5868 = vrot.slane %v5858, %v5867
  %v5870 = vunpack.c.l.s4 1966171168
  %v5871 = vunpack.c.0.s8 %v5870
  %v5872 = vlaneseq
  %v5873 = vshrl.u32 %v5872, 7
  %v5874 = vsub.s32 %v5871, %v5873
  %v5875 = vrot.slane %v5859, %v5874
  %v5877 = vunpack.c.l.s4 1966171168
  %v5878 = vunpack.c.0.s8 %v5877
  %v5879 = vlaneseq
  %v5880 = vshrl.u32 %v5879, 7
  %v5881 = vsub.s32 %v5878, %v5880
  %v5882 = vrot.slane %v5860, %v5881
  %v5884 = vunpack.c.l.s4 1966171168
  %v5885 = vunpack.c.0.s8 %v5884
  %v5886 = vlaneseq
  %v5887 = vshrl.u32 %v5886, 7
  %v5888 = vsub.s32 %v5885, %v5887
  %v5889 = vrot.slane %v5861, %v5888
  %v5890 = vcombine.low %v5868, %v5875
  %v5891 = vcombine.low %v5882, %v5889
  %v5893 = vunpack.c.l.s4 1966171168
  %v5894 = vunpack.c.0.s8 %v5893
  %v5895 = vlaneseq
  %v5896 = vshrl.u32 %v5895, 7
  %v5897 = vsub.s32 %v5894, %v5896
  %v5898 = vrot.slane %v5890, %v5897
  %v5900 = vunpack.c.l.s4 1966171168
  %v5901 = vunpack.c.0.s8 %v5900
  %v5902 = vlaneseq
  %v5903 = vshrl.u32 %v5902, 7
  %v5904 = vsub.s32 %v5901, %v5903
  %v5905 = vrot.slane %v5891, %v5904
  %v5906 = vcombine.low %v5898, %v5905
  %v5907 = vcombine.low %v5487, %v5488
  %v5908 = vcombine.low %v5489, %v5490
  %v5909 = vcombine.low %v5491, %v5492
  %v5910 = vcombine.low %v5493, %v5494
  %v5912 = vunpack.c.l.s4 1966171168
  %v5913 = vunpack.c.0.s8 %v5912
  %v5914 = vlaneseq
  %v5915 = vshrl.u32 %v5914, 7
  %v5916 = vsub.s32 %v5913, %v5915
  %v5917 = vrot.slane %v5907, %v5916
  %v5919 = vunpack.c.l.s4 1966171168
  %v5920 = vunpack.c.0.s8 %v5919
  %v5921 = vlaneseq
  %v5922 = vshrl.u32 %v5921, 7
  %v5923 = vsub.s32 %v5920, %v5922
  %v5924 = vrot.slane %v5908, %v5923
  %v5926 = vunpack.c.l.s4 1966171168
  %v5927 = vunpack.c.0.s8 %v5926
  %v5928 = vlaneseq
  %v5929 = vshrl.u32 %v5928, 7
  %v5930 = vsub.s32 %v5927, %v5929
  %v5931 = vrot.slane %v5909, %v5930
  %v5933 = vunpack.c.l.s4 1966171168
  %v5934 = vunpack.c.0.s8 %v5933
  %v5935 = vlaneseq
  %v5936 = vshrl.u32 %v5935, 7
  %v5937 = vsub.s32 %v5934, %v5936
  %v5938 = vrot.slane %v5910, %v5937
  %v5939 = vcombine.low %v5917, %v5924
  %v5940 = vcombine.low %v5931, %v5938
  %v5942 = vunpack.c.l.s4 1966171168
  %v5943 = vunpack.c.0.s8 %v5942
  %v5944 = vlaneseq
  %v5945 = vshrl.u32 %v5944, 7
  %v5946 = vsub.s32 %v5943, %v5945
  %v5947 = vrot.slane %v5939, %v5946
  %v5949 = vunpack.c.l.s4 1966171168
  %v5950 = vunpack.c.0.s8 %v5949
  %v5951 = vlaneseq
  %v5952 = vshrl.u32 %v5951, 7
  %v5953 = vsub.s32 %v5950, %v5952
  %v5954 = vrot.slane %v5940, %v5953
  %v5955 = vcombine.low %v5947, %v5954
  %v5956 = vcombine.low %v5495, %v5496
  %v5957 = vcombine.low %v5497, %v5498
  %v5958 = vcombine.low %v5499, %v5500
  %v5959 = vcombine.low %v5501, %v5502
  %v5961 = vunpack.c.l.s4 1966171168
  %v5962 = vunpack.c.0.s8 %v5961
  %v5963 = vlaneseq
  %v5964 = vshrl.u32 %v5963, 7
  %v5965 = vsub.s32 %v5962, %v5964
  %v5966 = vrot.slane %v5956, %v5965
  %v5968 = vunpack.c.l.s4 1966171168
  %v5969 = vunpack.c.0.s8 %v5968
  %v5970 = vlaneseq
  %v5971 = vshrl.u32 %v5970, 7
  %v5972 = vsub.s32 %v5969, %v5971
  %v5973 = vrot.slane %v5957, %v5972
  %v5975 = vunpack.c.l.s4 1966171168
  %v5976 = vunpack.c.0.s8 %v5975
  %v5977 = vlaneseq
  %v5978 = vshrl.u32 %v5977, 7
  %v5979 = vsub.s32 %v5976, %v5978
  %v5980 = vrot.slane %v5958, %v5979
  %v5982 = vunpack.c.l.s4 1966171168
  %v5983 = vunpack.c.0.s8 %v5982
  %v5984 = vlaneseq
  %v5985 = vshrl.u32 %v5984, 7
  %v5986 = vsub.s32 %v5983, %v5985
  %v5987 = vrot.slane %v5959, %v5986
  %v5988 = vcombine.low %v5966, %v5973
  %v5989 = vcombine.low %v5980, %v5987
  %v5991 = vunpack.c.l.s4 1966171168
  %v5992 = vunpack.c.0.s8 %v5991
  %v5993 = vlaneseq
  %v5994 = vshrl.u32 %v5993, 7
  %v5995 = vsub.s32 %v5992, %v5994
  %v5996 = vrot.slane %v5988, %v5995
  %v5998 = vunpack.c.l.s4 1966171168
  %v5999 = vunpack.c.0.s8 %v5998
  %v6000 = vlaneseq
  %v6001 = vshrl.u32 %v6000, 7
  %v6002 = vsub.s32 %v5999, %v6001
  %v6003 = vrot.slane %v5989, %v6002
  %v6004 = vcombine.low %v5996, %v6003
  %v6005 = vcombine.low %v5503, %v5504
  %v6006 = vcombine.low %v5505, %v5506
  %v6007 = vcombine.low %v5507, %v5508
  %v6008 = vcombine.low %v5509, %v5510
  %v6010 = vunpack.c.l.s4 1966171168
  %v6011 = vunpack.c.0.s8 %v6010
  %v6012 = vlaneseq
  %v6013 = vshrl.u32 %v6012, 7
  %v6014 = vsub.s32 %v6011, %v6013
  %v6015 = vrot.slane %v6005, %v6014
  %v6017 = vunpack.c.l.s4 1966171168
  %v6018 = vunpack.c.0.s8 %v6017
  %v6019 = vlaneseq
  %v6020 = vshrl.u32 %v6019, 7
  %v6021 = vsub.s32 %v6018, %v6020
  %v6022 = vrot.slane %v6006, %v6021
  %v6024 = vunpack.c.l.s4 1966171168
  %v6025 = vunpack.c.0.s8 %v6024
  %v6026 = vlaneseq
  %v6027 = vshrl.u32 %v6026, 7
  %v6028 = vsub.s32 %v6025, %v6027
  %v6029 = vrot.slane %v6007, %v6028
  %v6031 = vunpack.c.l.s4 1966171168
  %v6032 = vunpack.c.0.s8 %v6031
  %v6033 = vlaneseq
  %v6034 = vshrl.u32 %v6033, 7
  %v6035 = vsub.s32 %v6032, %v6034
  %v6036 = vrot.slane %v6008, %v6035
  %v6037 = vcombine.low %v6015, %v6022
  %v6038 = vcombine.low %v6029, %v6036
  %v6040 = vunpack.c.l.s4 1966171168
  %v6041 = vunpack.c.0.s8 %v6040
  %v6042 = vlaneseq
  %v6043 = vshrl.u32 %v6042, 7
  %v6044 = vsub.s32 %v6041, %v6043
  %v6045 = vrot.slane %v6037, %v6044
  %v6047 = vunpack.c.l.s4 1966171168
  %v6048 = vunpack.c.0.s8 %v6047
  %v6049 = vlaneseq
  %v6050 = vshrl.u32 %v6049, 7
  %v6051 = vsub.s32 %v6048, %v6050
  %v6052 = vrot.slane %v6038, %v6051
  %v6053 = vcombine.low %v6045, %v6052
  %v6054 = vcombine.low %v5511, %v5512
  %v6055 = vcombine.low %v5513, %v5514
  %v6056 = vcombine.low %v5515, %v5516
  %v6057 = vcombine.low %v5517, %v5518
  %v6059 = vunpack.c.l.s4 1966171168
  %v6060 = vunpack.c.0.s8 %v6059
  %v6061 = vlaneseq
  %v6062 = vshrl.u32 %v6061, 7
  %v6063 = vsub.s32 %v6060, %v6062
  %v6064 = vrot.slane %v6054, %v6063
  %v6066 = vunpack.c.l.s4 1966171168
  %v6067 = vunpack.c.0.s8 %v6066
  %v6068 = vlaneseq
  %v6069 = vshrl.u32 %v6068, 7
  %v6070 = vsub.s32 %v6067, %v6069
  %v6071 = vrot.slane %v6055, %v6070
  %v6073 = vunpack.c.l.s4 1966171168
  %v6074 = vunpack.c.0.s8 %v6073
  %v6075 = vlaneseq
  %v6076 = vshrl.u32 %v6075, 7
  %v6077 = vsub.s32 %v6074, %v6076
  %v6078 = vrot.slane %v6056, %v6077
  %v6080 = vunpack.c.l.s4 1966171168
  %v6081 = vunpack.c.0.s8 %v6080
  %v6082 = vlaneseq
  %v6083 = vshrl.u32 %v6082, 7
  %v6084 = vsub.s32 %v6081, %v6083
  %v6085 = vrot.slane %v6057, %v6084
  %v6086 = vcombine.low %v6064, %v6071
  %v6087 = vcombine.low %v6078, %v6085
  %v6089 = vunpack.c.l.s4 1966171168
  %v6090 = vunpack.c.0.s8 %v6089
  %v6091 = vlaneseq
  %v6092 = vshrl.u32 %v6091, 7
  %v6093 = vsub.s32 %v6090, %v6092
  %v6094 = vrot.slane %v6086, %v6093
  %v6096 = vunpack.c.l.s4 1966171168
  %v6097 = vunpack.c.0.s8 %v6096
  %v6098 = vlaneseq
  %v6099 = vshrl.u32 %v6098, 7
  %v6100 = vsub.s32 %v6097, %v6099
  %v6101 = vrot.slane %v6087, %v6100
  %v6102 = vcombine.low %v6094, %v6101
  %v6103 = vcombine.low %v5519, %v5520
  %v6104 = vcombine.low %v5521, %v5522
  %v6105 = vcombine.low %v5523, %v5524
  %v6106 = vcombine.low %v5525, %v5526
  %v6108 = vunpack.c.l.s4 1966171168
  %v6109 = vunpack.c.0.s8 %v6108
  %v6110 = vlaneseq
  %v6111 = vshrl.u32 %v6110, 7
  %v6112 = vsub.s32 %v6109, %v6111
  %v6113 = vrot.slane %v6103, %v6112
  %v6115 = vunpack.c.l.s4 1966171168
  %v6116 = vunpack.c.0.s8 %v6115
  %v6117 = vlaneseq
  %v6118 = vshrl.u32 %v6117, 7
  %v6119 = vsub.s32 %v6116, %v6118
  %v6120 = vrot.slane %v6104, %v6119
  %v6122 = vunpack.c.l.s4 1966171168
  %v6123 = vunpack.c.0.s8 %v6122
  %v6124 = vlaneseq
  %v6125 = vshrl.u32 %v6124, 7
  %v6126 = vsub.s32 %v6123, %v6125
  %v6127 = vrot.slane %v6105, %v6126
  %v6129 = vunpack.c.l.s4 1966171168
  %v6130 = vunpack.c.0.s8 %v6129
  %v6131 = vlaneseq
  %v6132 = vshrl.u32 %v6131, 7
  %v6133 = vsub.s32 %v6130, %v6132
  %v6134 = vrot.slane %v6106, %v6133
  %v6135 = vcombine.low %v6113, %v6120
  %v6136 = vcombine.low %v6127, %v6134
  %v6138 = vunpack.c.l.s4 1966171168
  %v6139 = vunpack.c.0.s8 %v6138
  %v6140 = vlaneseq
  %v6141 = vshrl.u32 %v6140, 7
  %v6142 = vsub.s32 %v6139, %v6141
  %v6143 = vrot.slane %v6135, %v6142
  %v6145 = vunpack.c.l.s4 1966171168
  %v6146 = vunpack.c.0.s8 %v6145
  %v6147 = vlaneseq
  %v6148 = vshrl.u32 %v6147, 7
  %v6149 = vsub.s32 %v6146, %v6148
  %v6150 = vrot.slane %v6136, %v6149
  %v6151 = vcombine.low %v6143, %v6150
  %v6152 = vcombine.low %v5527, %v5528
  %v6153 = vcombine.low %v5529, %v5530
  %v6154 = vcombine.low %v5531, %v5532
  %v6155 = vcombine.low %v5533, %v5534
  %v6157 = vunpack.c.l.s4 1966171168
  %v6158 = vunpack.c.0.s8 %v6157
  %v6159 = vlaneseq
  %v6160 = vshrl.u32 %v6159, 7
  %v6161 = vsub.s32 %v6158, %v6160
  %v6162 = vrot.slane %v6152, %v6161
  %v6164 = vunpack.c.l.s4 1966171168
  %v6165 = vunpack.c.0.s8 %v6164
  %v6166 = vlaneseq
  %v6167 = vshrl.u32 %v6166, 7
  %v6168 = vsub.s32 %v6165, %v6167
  %v6169 = vrot.slane %v6153, %v6168
  %v6171 = vunpack.c.l.s4 1966171168
  %v6172 = vunpack.c.0.s8 %v6171
  %v6173 = vlaneseq
  %v6174 = vshrl.u32 %v6173, 7
  %v6175 = vsub.s32 %v6172, %v6174
  %v6176 = vrot.slane %v6154, %v6175
  %v6178 = vunpack.c.l.s4 1966171168
  %v6179 = vunpack.c.0.s8 %v6178
  %v6180 = vlaneseq
  %v6181 = vshrl.u32 %v6180, 7
  %v6182 = vsub.s32 %v6179, %v6181
  %v6183 = vrot.slane %v6155, %v6182
  %v6184 = vcombine.low %v6162, %v6169
  %v6185 = vcombine.low %v6176, %v6183
  %v6187 = vunpack.c.l.s4 1966171168
  %v6188 = vunpack.c.0.s8 %v6187
  %v6189 = vlaneseq
  %v6190 = vshrl.u32 %v6189, 7
  %v6191 = vsub.s32 %v6188, %v6190
  %v6192 = vrot.slane %v6184, %v6191
  %v6194 = vunpack.c.l.s4 1966171168
  %v6195 = vunpack.c.0.s8 %v6194
  %v6196 = vlaneseq
  %v6197 = vshrl.u32 %v6196, 7
  %v6198 = vsub.s32 %v6195, %v6197
  %v6199 = vrot.slane %v6185, %v6198
  %v6200 = vcombine.low %v6192, %v6199
  %v6201 = vcombine.low %v5535, %v5536
  %v6202 = vcombine.low %v5537, %v5538
  %v6203 = vcombine.low %v5539, %v5540
  %v6204 = vcombine.low %v5541, %v5542
  %v6206 = vunpack.c.l.s4 1966171168
  %v6207 = vunpack.c.0.s8 %v6206
  %v6208 = vlaneseq
  %v6209 = vshrl.u32 %v6208, 7
  %v6210 = vsub.s32 %v6207, %v6209
  %v6211 = vrot.slane %v6201, %v6210
  %v6213 = vunpack.c.l.s4 1966171168
  %v6214 = vunpack.c.0.s8 %v6213
  %v6215 = vlaneseq
  %v6216 = vshrl.u32 %v6215, 7
  %v6217 = vsub.s32 %v6214, %v6216
  %v6218 = vrot.slane %v6202, %v6217
  %v6220 = vunpack.c.l.s4 1966171168
  %v6221 = vunpack.c.0.s8 %v6220
  %v6222 = vlaneseq
  %v6223 = vshrl.u32 %v6222, 7
  %v6224 = vsub.s32 %v6221, %v6223
  %v6225 = vrot.slane %v6203, %v6224
  %v6227 = vunpack.c.l.s4 1966171168
  %v6228 = vunpack.c.0.s8 %v6227
  %v6229 = vlaneseq
  %v6230 = vshrl.u32 %v6229, 7
  %v6231 = vsub.s32 %v6228, %v6230
  %v6232 = vrot.slane %v6204, %v6231
  %v6233 = vcombine.low %v6211, %v6218
  %v6234 = vcombine.low %v6225, %v6232
  %v6236 = vunpack.c.l.s4 1966171168
  %v6237 = vunpack.c.0.s8 %v6236
  %v6238 = vlaneseq
  %v6239 = vshrl.u32 %v6238, 7
  %v6240 = vsub.s32 %v6237, %v6239
  %v6241 = vrot.slane %v6233, %v6240
  %v6243 = vunpack.c.l.s4 1966171168
  %v6244 = vunpack.c.0.s8 %v6243
  %v6245 = vlaneseq
  %v6246 = vshrl.u32 %v6245, 7
  %v6247 = vsub.s32 %v6244, %v6246
  %v6248 = vrot.slane %v6234, %v6247
  %v6249 = vcombine.low %v6241, %v6248
  %v6250 = vcombine.low %v5543, %v5544
  %v6251 = vcombine.low %v5545, %v5546
  %v6252 = vcombine.low %v5547, %v5548
  %v6253 = vcombine.low %v5549, %v5550
  %v6255 = vunpack.c.l.s4 1966171168
  %v6256 = vunpack.c.0.s8 %v6255
  %v6257 = vlaneseq
  %v6258 = vshrl.u32 %v6257, 7
  %v6259 = vsub.s32 %v6256, %v6258
  %v6260 = vrot.slane %v6250, %v6259
  %v6262 = vunpack.c.l.s4 1966171168
  %v6263 = vunpack.c.0.s8 %v6262
  %v6264 = vlaneseq
  %v6265 = vshrl.u32 %v6264, 7
  %v6266 = vsub.s32 %v6263, %v6265
  %v6267 = vrot.slane %v6251, %v6266
  %v6269 = vunpack.c.l.s4 1966171168
  %v6270 = vunpack.c.0.s8 %v6269
  %v6271 = vlaneseq
  %v6272 = vshrl.u32 %v6271, 7
  %v6273 = vsub.s32 %v6270, %v6272
  %v6274 = vrot.slane %v6252, %v6273
  %v6276 = vunpack.c.l.s4 1966171168
  %v6277 = vunpack.c.0.s8 %v6276
  %v6278 = vlaneseq
  %v6279 = vshrl.u32 %v6278, 7
  %v6280 = vsub.s32 %v6277, %v6279
  %v6281 = vrot.slane %v6253, %v6280
  %v6282 = vcombine.low %v6260, %v6267
  %v6283 = vcombine.low %v6274, %v6281
  %v6285 = vunpack.c.l.s4 1966171168
  %v6286 = vunpack.c.0.s8 %v6285
  %v6287 = vlaneseq
  %v6288 = vshrl.u32 %v6287, 7
  %v6289 = vsub.s32 %v6286, %v6288
  %v6290 = vrot.slane %v6282, %v6289
  %v6292 = vunpack.c.l.s4 1966171168
  %v6293 = vunpack.c.0.s8 %v6292
  %v6294 = vlaneseq
  %v6295 = vshrl.u32 %v6294, 7
  %v6296 = vsub.s32 %v6293, %v6295
  %v6297 = vrot.slane %v6283, %v6296
  %v6298 = vcombine.low %v6290, %v6297
  %v6299 = vcombine.low %v5551, %v5552
  %v6300 = vcombine.low %v5553, %v5554
  %v6301 = vcombine.low %v5555, %v5556
  %v6302 = vcombine.low %v5557, %v5558
  %v6304 = vunpack.c.l.s4 1966171168
  %v6305 = vunpack.c.0.s8 %v6304
  %v6306 = vlaneseq
  %v6307 = vshrl.u32 %v6306, 7
  %v6308 = vsub.s32 %v6305, %v6307
  %v6309 = vrot.slane %v6299, %v6308
  %v6311 = vunpack.c.l.s4 1966171168
  %v6312 = vunpack.c.0.s8 %v6311
  %v6313 = vlaneseq
  %v6314 = vshrl.u32 %v6313, 7
  %v6315 = vsub.s32 %v6312, %v6314
  %v6316 = vrot.slane %v6300, %v6315
  %v6318 = vunpack.c.l.s4 1966171168
  %v6319 = vunpack.c.0.s8 %v6318
  %v6320 = vlaneseq
  %v6321 = vshrl.u32 %v6320, 7
  %v6322 = vsub.s32 %v6319, %v6321
  %v6323 = vrot.slane %v6301, %v6322
  %v6325 = vunpack.c.l.s4 1966171168
  %v6326 = vunpack.c.0.s8 %v6325
  %v6327 = vlaneseq
  %v6328 = vshrl.u32 %v6327, 7
  %v6329 = vsub.s32 %v6326, %v6328
  %v6330 = vrot.slane %v6302, %v6329
  %v6331 = vcombine.low %v6309, %v6316
  %v6332 = vcombine.low %v6323, %v6330
  %v6334 = vunpack.c.l.s4 1966171168
  %v6335 = vunpack.c.0.s8 %v6334
  %v6336 = vlaneseq
  %v6337 = vshrl.u32 %v6336, 7
  %v6338 = vsub.s32 %v6335, %v6337
  %v6339 = vrot.slane %v6331, %v6338
  %v6341 = vunpack.c.l.s4 1966171168
  %v6342 = vunpack.c.0.s8 %v6341
  %v6343 = vlaneseq
  %v6344 = vshrl.u32 %v6343, 7
  %v6345 = vsub.s32 %v6342, %v6344
  %v6346 = vrot.slane %v6332, %v6345
  %v6347 = vcombine.low %v6339, %v6346
  %v6348 = vcombine.low %v5559, %v5560
  %v6349 = vcombine.low %v5561, %v5562
  %v6350 = vcombine.low %v5563, %v5564
  %v6351 = vcombine.low %v5565, %v5566
  %v6353 = vunpack.c.l.s4 1966171168
  %v6354 = vunpack.c.0.s8 %v6353
  %v6355 = vlaneseq
  %v6356 = vshrl.u32 %v6355, 7
  %v6357 = vsub.s32 %v6354, %v6356
  %v6358 = vrot.slane %v6348, %v6357
  %v6360 = vunpack.c.l.s4 1966171168
  %v6361 = vunpack.c.0.s8 %v6360
  %v6362 = vlaneseq
  %v6363 = vshrl.u32 %v6362, 7
  %v6364 = vsub.s32 %v6361, %v6363
  %v6365 = vrot.slane %v6349, %v6364
  %v6367 = vunpack.c.l.s4 1966171168
  %v6368 = vunpack.c.0.s8 %v6367
  %v6369 = vlaneseq
  %v6370 = vshrl.u32 %v6369, 7
  %v6371 = vsub.s32 %v6368, %v6370
  %v6372 = vrot.slane %v6350, %v6371
  %v6374 = vunpack.c.l.s4 1966171168
  %v6375 = vunpack.c.0.s8 %v6374
  %v6376 = vlaneseq
  %v6377 = vshrl.u32 %v6376, 7
  %v6378 = vsub.s32 %v6375, %v6377
  %v6379 = vrot.slane %v6351, %v6378
  %v6380 = vcombine.low %v6358, %v6365
  %v6381 = vcombine.low %v6372, %v6379
  %v6383 = vunpack.c.l.s4 1966171168
  %v6384 = vunpack.c.0.s8 %v6383
  %v6385 = vlaneseq
  %v6386 = vshrl.u32 %v6385, 7
  %v6387 = vsub.s32 %v6384, %v6386
  %v6388 = vrot.slane %v6380, %v6387
  %v6390 = vunpack.c.l.s4 1966171168
  %v6391 = vunpack.c.0.s8 %v6390
  %v6392 = vlaneseq
  %v6393 = vshrl.u32 %v6392, 7
  %v6394 = vsub.s32 %v6391, %v6393
  %v6395 = vrot.slane %v6381, %v6394
  %v6396 = vcombine.low %v6388, %v6395
  %v6397 = vcombine.low %v5567, %v5568
  %v6398 = vcombine.low %v5569, %v5570
  %v6399 = vcombine.low %v5571, %v5572
  %v6400 = vcombine.low %v5573, %v5574
  %v6402 = vunpack.c.l.s4 1966171168
  %v6403 = vunpack.c.0.s8 %v6402
  %v6404 = vlaneseq
  %v6405 = vshrl.u32 %v6404, 7
  %v6406 = vsub.s32 %v6403, %v6405
  %v6407 = vrot.slane %v6397, %v6406
  %v6409 = vunpack.c.l.s4 1966171168
  %v6410 = vunpack.c.0.s8 %v6409
  %v6411 = vlaneseq
  %v6412 = vshrl.u32 %v6411, 7
  %v6413 = vsub.s32 %v6410, %v6412
  %v6414 = vrot.slane %v6398, %v6413
  %v6416 = vunpack.c.l.s4 1966171168
  %v6417 = vunpack.c.0.s8 %v6416
  %v6418 = vlaneseq
  %v6419 = vshrl.u32 %v6418, 7
  %v6420 = vsub.s32 %v6417, %v6419
  %v6421 = vrot.slane %v6399, %v6420
  %v6423 = vunpack.c.l.s4 1966171168
  %v6424 = vunpack.c.0.s8 %v6423
  %v6425 = vlaneseq
  %v6426 = vshrl.u32 %v6425, 7
  %v6427 = vsub.s32 %v6424, %v6426
  %v6428 = vrot.slane %v6400, %v6427
  %v6429 = vcombine.low %v6407, %v6414
  %v6430 = vcombine.low %v6421, %v6428
  %v6432 = vunpack.c.l.s4 1966171168
  %v6433 = vunpack.c.0.s8 %v6432
  %v6434 = vlaneseq
  %v6435 = vshrl.u32 %v6434, 7
  %v6436 = vsub.s32 %v6433, %v6435
  %v6437 = vrot.slane %v6429, %v6436
  %v6439 = vunpack.c.l.s4 1966171168
  %v6440 = vunpack.c.0.s8 %v6439
  %v6441 = vlaneseq
  %v6442 = vshrl.u32 %v6441, 7
  %v6443 = vsub.s32 %v6440, %v6442
  %v6444 = vrot.slane %v6430, %v6443
  %v6445 = vcombine.low %v6437, %v6444
  %v6446 = vcombine.low %v5575, %v5576
  %v6447 = vcombine.low %v5577, %v5578
  %v6448 = vcombine.low %v5579, %v5580
  %v6449 = vcombine.low %v5581, %v5582
  %v6451 = vunpack.c.l.s4 1966171168
  %v6452 = vunpack.c.0.s8 %v6451
  %v6453 = vlaneseq
  %v6454 = vshrl.u32 %v6453, 7
  %v6455 = vsub.s32 %v6452, %v6454
  %v6456 = vrot.slane %v6446, %v6455
  %v6458 = vunpack.c.l.s4 1966171168
  %v6459 = vunpack.c.0.s8 %v6458
  %v6460 = vlaneseq
  %v6461 = vshrl.u32 %v6460, 7
  %v6462 = vsub.s32 %v6459, %v6461
  %v6463 = vrot.slane %v6447, %v6462
  %v6465 = vunpack.c.l.s4 1966171168
  %v6466 = vunpack.c.0.s8 %v6465
  %v6467 = vlaneseq
  %v6468 = vshrl.u32 %v6467, 7
  %v6469 = vsub.s32 %v6466, %v6468
  %v6470 = vrot.slane %v6448, %v6469
  %v6472 = vunpack.c.l.s4 1966171168
  %v6473 = vunpack.c.0.s8 %v6472
  %v6474 = vlaneseq
  %v6475 = vshrl.u32 %v6474, 7
  %v6476 = vsub.s32 %v6473, %v6475
  %v6477 = vrot.slane %v6449, %v6476
  %v6478 = vcombine.low %v6456, %v6463
  %v6479 = vcombine.low %v6470, %v6477
  %v6481 = vunpack.c.l.s4 1966171168
  %v6482 = vunpack.c.0.s8 %v6481
  %v6483 = vlaneseq
  %v6484 = vshrl.u32 %v6483, 7
  %v6485 = vsub.s32 %v6482, %v6484
  %v6486 = vrot.slane %v6478, %v6485
  %v6488 = vunpack.c.l.s4 1966171168
  %v6489 = vunpack.c.0.s8 %v6488
  %v6490 = vlaneseq
  %v6491 = vshrl.u32 %v6490, 7
  %v6492 = vsub.s32 %v6489, %v6491
  %v6493 = vrot.slane %v6479, %v6492
  %v6494 = vcombine.low %v6486, %v6493
  %6511 = vst.msk [vmem:[%s3] sm:$0xff] %vm700, %v5759
  %6512 = vst.msk [vmem:[%s3 + $0x8] sm:$0xff] %vm700, %v5808
  %6513 = vst.msk [vmem:[%s3 + $0x10] sm:$0xff] %vm700, %v5857
  %6514 = vst.msk [vmem:[%s3 + $0x18] sm:$0xff] %vm700, %v5906
  %6515 = vst.msk [vmem:[%s3 + $0x20] sm:$0xff] %vm700, %v5955
  %6516 = vst.msk [vmem:[%s3 + $0x28] sm:$0xff] %vm700, %v6004
  %6517 = vst.msk [vmem:[%s3 + $0x30] sm:$0xff] %vm700, %v6053
  %6518 = vst.msk [vmem:[%s3 + $0x38] sm:$0xff] %vm700, %v6102
  %6519 = vst.msk [vmem:[%s3 + $0x40] sm:$0xff] %vm700, %v6151
  %6520 = vst.msk [vmem:[%s3 + $0x48] sm:$0xff] %vm700, %v6200
  %6521 = vst.msk [vmem:[%s3 + $0x50] sm:$0xff] %vm700, %v6249
  %6522 = vst.msk [vmem:[%s3 + $0x58] sm:$0xff] %vm700, %v6298
  %6523 = vst.msk [vmem:[%s3 + $0x60] sm:$0xff] %vm700, %v6347
  %6524 = vst.msk [vmem:[%s3 + $0x68] sm:$0xff] %vm700, %v6396
  %6525 = vst.msk [vmem:[%s3 + $0x70] sm:$0xff] %vm700, %v6445
  %6526 = vst.msk [vmem:[%s3 + $0x78] sm:$0xff] %vm700, %v6494
  // Predicated region
  $region14: #{encoder_forward.3} parent=0 // pred_check
    _
  $region15: #{encoder_forward.3} parent=0 // pred_check_branch
    %6528 = sbr.rel (0) target = $region17
  $region16: #{encoder_forward.3} parent=0 // pred_region
    _
  $region17: #{encoder_forward.3} parent=0 // pred_fallthru
    _
  // Predicated region
  $region18: #{encoder_forward.3} parent=0 // pred_check
    _
  $region19: #{encoder_forward.3} parent=0 // pred_check_branch
    %6530 = sbr.rel (0) target = $region21
  $region20: #{encoder_forward.3} parent=0 // pred_region
    _
  $region21: #{encoder_forward.3} parent=0 // pred_fallthru
    _

// kernel: encoder_forward.4
$region0: #{encoder_forward.4}
  #allocation0 [shape = 'u32[]', space=smem, size = 0x4, offset = 0x4, fixed_abs, tag = 'smem constant byte address 0x4 - core index']
  #allocation1 [shape = 'u32[144,128]{1,0:T(1,128)}', space=vmem, size = 0x12000, scoped, tag = 'internal scratch']
  %s0 = inlined_call_operand.vmem [shape: bf16[50,512], index: 0, kind: input, shape index: {}]
  %s1 = inlined_call_operand.vmem [shape: bf16[512,64], index: 1, kind: input, shape index: {}]
  %s2 = inlined_call_operand.vmem [shape: f32[2,64], index: 2, kind: input, shape index: {}]
  %s3 = inlined_call_operand.vmem [shape: f32[2,2,2,64], index: 3, kind: output, shape index: {}]
  %s4 = sld [smem:[#allocation0]]
  $region22: #{encoder_forward.4} parent=0
    _
  %s6 = ssub.s32 1, %s4
  %s7 = scalar_select 0, %s6, %s4
  // Predicated region
  $region2: #{encoder_forward.4} parent=0 // pred_check
    _
  $region3: #{encoder_forward.4} parent=0 // pred_check_branch
    %9 = sbr.rel (0) target = $region5
  $region4: #{encoder_forward.4} parent=0 // pred_region
    _
  $region5: #{encoder_forward.4} parent=0 // pred_fallthru
    _
  // Predicated region
  $region6: #{encoder_forward.4} parent=0 // pred_check
    _
  $region7: #{encoder_forward.4} parent=0 // pred_check_branch
    %11 = sbr.rel (0) target = $region9
  $region8: #{encoder_forward.4} parent=0 // pred_region
    _
  $region9: #{encoder_forward.4} parent=0 // pred_fallthru
    _
  // Predicated region
  $region10: #{encoder_forward.4} parent=0 // pred_check
    _
  $region11: #{encoder_forward.4} parent=0 // pred_check_branch
    %13 = sbr.rel (0) target = $region13
  $region12: #{encoder_forward.4} parent=0 // pred_region
    _
  $region13: #{encoder_forward.4} parent=0 // pred_fallthru
    _
  %v15 = vld [vmem:[%s0] sm:$0xff]
  %v16 = vld [vmem:[%s0 + $0x8] sm:$0xff]
  %v17 = vld [vmem:[%s0 + $0x10] sm:$0xff]
  %v18 = vld [vmem:[%s0 + $0x18] sm:$0xff]
  %v19 = vld [vmem:[%s0 + $0x20] sm:$0xff]
  %v20 = vld [vmem:[%s0 + $0x28] sm:$0xff]
  %v21 = vld [vmem:[%s0 + $0x30] sm:$0xff]
  %v22 = vld [vmem:[%s0 + $0x38] sm:$0xff]
  %v23 = vld [vmem:[%s0 + $0x40] sm:$0xff]
  %v24 = vld [vmem:[%s0 + $0x48] sm:$0xff]
  %v25 = vld [vmem:[%s0 + $0x50] sm:$0xff]
  %v26 = vld [vmem:[%s0 + $0x58] sm:$0xff]
  %v27 = vld [vmem:[%s0 + $0x60] sm:$0x11]
  %v28 = vld [vmem:[%s0 + $0x68] sm:$0x11]
  %v29 = vld [vmem:[%s1] sm:$0xf]
  %v30 = vld [vmem:[%s1 + $0x4] sm:$0xf]
  %v31 = vld [vmem:[%s1 + $0x8] sm:$0xf]
  %v32 = vld [vmem:[%s1 + $0xc] sm:$0xf]
  %v33 = vld [vmem:[%s1 + $0x10] sm:$0xf]
  %v34 = vld [vmem:[%s1 + $0x14] sm:$0xf]
  %v35 = vld [vmem:[%s1 + $0x18] sm:$0xf]
  %v36 = vld [vmem:[%s1 + $0x1c] sm:$0xf]
  %v37 = vld [vmem:[%s1 + $0x20] sm:$0xf]
  %v38 = vld [vmem:[%s1 + $0x24] sm:$0xf]
  %v39 = vld [vmem:[%s1 + $0x28] sm:$0xf]
  %v40 = vld [vmem:[%s1 + $0x2c] sm:$0xf]
  %v41 = vld [vmem:[%s1 + $0x30] sm:$0xf]
  %v42 = vld [vmem:[%s1 + $0x34] sm:$0xf]
  %v43 = vld [vmem:[%s1 + $0x38] sm:$0xf]
  %v44 = vld [vmem:[%s1 + $0x3c] sm:$0xf]
  %v45 = vld [vmem:[%s1 + $0x40] sm:$0xf]
  %v46 = vld [vmem:[%s1 + $0x44] sm:$0xf]
  %v47 = vld [vmem:[%s1 + $0x48] sm:$0xf]
  %v48 = vld [vmem:[%s1 + $0x4c] sm:$0xf]
  %v49 = vld [vmem:[%s1 + $0x50] sm:$0xf]
  %v50 = vld [vmem:[%s1 + $0x54] sm:$0xf]
  %v51 = vld [vmem:[%s1 + $0x58] sm:$0xf]
  %v52 = vld [vmem:[%s1 + $0x5c] sm:$0xf]
  %v53 = vld [vmem:[%s1 + $0x60] sm:$0xf]
  %v54 = vld [vmem:[%s1 + $0x64] sm:$0xf]
  %v55 = vld [vmem:[%s1 + $0x68] sm:$0xf]
  %v56 = vld [vmem:[%s1 + $0x6c] sm:$0xf]
  %v57 = vld [vmem:[%s1 + $0x70] sm:$0xf]
  %v58 = vld [vmem:[%s1 + $0x74] sm:$0xf]
  %v59 = vld [vmem:[%s1 + $0x78] sm:$0xf]
  %v60 = vld [vmem:[%s1 + $0x7c] sm:$0xf]
  %v61 = vld [vmem:[%s1 + $0x80] sm:$0xf]
  %v62 = vld [vmem:[%s1 + $0x84] sm:$0xf]
  %v63 = vld [vmem:[%s1 + $0x88] sm:$0xf]
  %v64 = vld [vmem:[%s1 + $0x8c] sm:$0xf]
  %v65 = vld [vmem:[%s1 + $0x90] sm:$0xf]
  %v66 = vld [vmem:[%s1 + $0x94] sm:$0xf]
  %v67 = vld [vmem:[%s1 + $0x98] sm:$0xf]
  %v68 = vld [vmem:[%s1 + $0x9c] sm:$0xf]
  %v69 = vld [vmem:[%s1 + $0xa0] sm:$0xf]
  %v70 = vld [vmem:[%s1 + $0xa4] sm:$0xf]
  %v71 = vld [vmem:[%s1 + $0xa8] sm:$0xf]
  %v72 = vld [vmem:[%s1 + $0xac] sm:$0xf]
  %v73 = vld [vmem:[%s1 + $0xb0] sm:$0xf]
  %v74 = vld [vmem:[%s1 + $0xb4] sm:$0xf]
  %v75 = vld [vmem:[%s1 + $0xb8] sm:$0xf]
  %v76 = vld [vmem:[%s1 + $0xbc] sm:$0xf]
  %v77 = vld [vmem:[%s1 + $0xc0] sm:$0xf]
  %v78 = vld [vmem:[%s1 + $0xc4] sm:$0xf]
  %v79 = vld [vmem:[%s1 + $0xc8] sm:$0xf]
  %v80 = vld [vmem:[%s1 + $0xcc] sm:$0xf]
  %v81 = vld [vmem:[%s1 + $0xd0] sm:$0xf]
  %v82 = vld [vmem:[%s1 + $0xd4] sm:$0xf]
  %v83 = vld [vmem:[%s1 + $0xd8] sm:$0xf]
  %v84 = vld [vmem:[%s1 + $0xdc] sm:$0xf]
  %v85 = vld [vmem:[%s1 + $0xe0] sm:$0xf]
  %v86 = vld [vmem:[%s1 + $0xe4] sm:$0xf]
  %v87 = vld [vmem:[%s1 + $0xe8] sm:$0xf]
  %v88 = vld [vmem:[%s1 + $0xec] sm:$0xf]
  %v89 = vld [vmem:[%s1 + $0xf0] sm:$0xf]
  %v90 = vld [vmem:[%s1 + $0xf4] sm:$0xf]
  %v91 = vld [vmem:[%s1 + $0xf8] sm:$0xf]
  %v92 = vld [vmem:[%s1 + $0xfc] sm:$0xf]
  %v107 = vunpack.c.l.b16 %v15
  %v108 = vunpack.c.h.b16 %v15
  %v109 = vunpack.c.l.b16 %v16
  %v110 = vunpack.c.h.b16 %v16
  %v111 = vunpack.c.l.b16 %v17
  %v112 = vunpack.c.h.b16 %v17
  %v113 = vunpack.c.l.b16 %v18
  %v114 = vunpack.c.h.b16 %v18
  %v115 = vunpack.c.l.b16 %v19
  %v116 = vunpack.c.h.b16 %v19
  %v117 = vunpack.c.l.b16 %v20
  %v118 = vunpack.c.h.b16 %v20
  %v119 = vunpack.c.l.b16 %v21
  %v120 = vunpack.c.h.b16 %v21
  %v121 = vunpack.c.l.b16 %v22
  %v122 = vunpack.c.h.b16 %v22
  %v123 = vunpack.c.l.b16 %v23
  %v124 = vunpack.c.h.b16 %v23
  %v125 = vunpack.c.l.b16 %v24
  %v126 = vunpack.c.h.b16 %v24
  %v127 = vunpack.c.l.b16 %v25
  %v128 = vunpack.c.h.b16 %v25
  %v129 = vunpack.c.l.b16 %v26
  %v130 = vunpack.c.h.b16 %v26
  %v131 = vunpack.c.l.b16 %v27
  %v132 = vunpack.c.h.b16 %v27
  %v133 = vunpack.c.l.b16 %v28
  %v134 = vunpack.c.h.b16 %v28
  %v135 = vpack.c.b16 %v111, %v107
  %v136 = vpack.c.b16 %v112, %v108
  %v137 = vpack.c.b16 %v113, %v109
  %v138 = vpack.c.b16 %v114, %v110
  %v139 = vpack.c.b16 %v119, %v115
  %v140 = vpack.c.b16 %v120, %v116
  %v141 = vpack.c.b16 %v121, %v117
  %v142 = vpack.c.b16 %v122, %v118
  %v143 = vpack.c.b16 %v127, %v123
  %v144 = vpack.c.b16 %v128, %v124
  %v145 = vpack.c.b16 %v129, %v125
  %v146 = vpack.c.b16 %v130, %v126
  %v147 = vpack.c.b16 %v131, %v131
  %v148 = vpack.c.b16 %v132, %v132
  %v149 = vpack.c.b16 %v133, %v133
  %v150 = vpack.c.b16 %v134, %v134
  %v231 = vunpack.c.l.b16 %v29
  %v232 = vunpack.c.l.b16 %v30
  %v233 = vunpack.c.l.b16 %v31
  %v234 = vunpack.c.l.b16 %v32
  %v235 = vunpack.c.l.b16 %v33
  %v236 = vunpack.c.l.b16 %v34
  %v237 = vunpack.c.l.b16 %v35
  %v238 = vunpack.c.l.b16 %v36
  %v239 = vunpack.c.l.b16 %v37
  %v240 = vunpack.c.l.b16 %v38
  %v241 = vunpack.c.l.b16 %v39
  %v242 = vunpack.c.l.b16 %v40
  %v243 = vunpack.c.l.b16 %v41
  %v244 = vunpack.c.l.b16 %v42
  %v245 = vunpack.c.l.b16 %v43
  %v246 = vunpack.c.l.b16 %v44
  %v247 = vunpack.c.l.b16 %v45
  %v248 = vunpack.c.l.b16 %v46
  %v249 = vunpack.c.l.b16 %v47
  %v250 = vunpack.c.l.b16 %v48
  %v251 = vunpack.c.l.b16 %v49
  %v252 = vunpack.c.l.b16 %v50
  %v253 = vunpack.c.l.b16 %v51
  %v254 = vunpack.c.l.b16 %v52
  %v255 = vunpack.c.l.b16 %v53
  %v256 = vunpack.c.l.b16 %v54
  %v257 = vunpack.c.l.b16 %v55
  %v258 = vunpack.c.l.b16 %v56
  %v259 = vunpack.c.l.b16 %v57
  %v260 = vunpack.c.l.b16 %v58
  %v261 = vunpack.c.l.b16 %v59
  %v262 = vunpack.c.l.b16 %v60
  %v263 = vunpack.c.l.b16 %v61
  %v264 = vunpack.c.l.b16 %v62
  %v265 = vunpack.c.l.b16 %v63
  %v266 = vunpack.c.l.b16 %v64
  %v267 = vunpack.c.l.b16 %v65
  %v268 = vunpack.c.l.b16 %v66
  %v269 = vunpack.c.l.b16 %v67
  %v270 = vunpack.c.l.b16 %v68
  %v271 = vunpack.c.l.b16 %v69
  %v272 = vunpack.c.l.b16 %v70
  %v273 = vunpack.c.l.b16 %v71
  %v274 = vunpack.c.l.b16 %v72
  %v275 = vunpack.c.l.b16 %v73
  %v276 = vunpack.c.l.b16 %v74
  %v277 = vunpack.c.l.b16 %v75
  %v278 = vunpack.c.l.b16 %v76
  %v279 = vunpack.c.l.b16 %v77
  %v280 = vunpack.c.l.b16 %v78
  %v281 = vunpack.c.l.b16 %v79
  %v282 = vunpack.c.l.b16 %v80
  %v283 = vunpack.c.l.b16 %v81
  %v284 = vunpack.c.l.b16 %v82
  %v285 = vunpack.c.l.b16 %v83
  %v286 = vunpack.c.l.b16 %v84
  %v287 = vunpack.c.l.b16 %v85
  %v288 = vunpack.c.l.b16 %v86
  %v289 = vunpack.c.l.b16 %v87
  %v290 = vunpack.c.l.b16 %v88
  %v291 = vunpack.c.l.b16 %v89
  %v292 = vunpack.c.l.b16 %v90
  %v293 = vunpack.c.l.b16 %v91
  %v294 = vunpack.c.l.b16 %v92
  %v295 = vpack.c.b16 %v232, %v231
  %v296 = vpack.c.b16 %v234, %v233
  %v297 = vpack.c.b16 %v236, %v235
  %v298 = vpack.c.b16 %v238, %v237
  %v299 = vpack.c.b16 %v240, %v239
  %v300 = vpack.c.b16 %v242, %v241
  %v301 = vpack.c.b16 %v244, %v243
  %v302 = vpack.c.b16 %v246, %v245
  %v303 = vpack.c.b16 %v248, %v247
  %v304 = vpack.c.b16 %v250, %v249
  %v305 = vpack.c.b16 %v252, %v251
  %v306 = vpack.c.b16 %v254, %v253
  %v307 = vpack.c.b16 %v256, %v255
  %v308 = vpack.c.b16 %v258, %v257
  %v309 = vpack.c.b16 %v260, %v259
  %v310 = vpack.c.b16 %v262, %v261
  %v311 = vpack.c.b16 %v264, %v263
  %v312 = vpack.c.b16 %v266, %v265
  %v313 = vpack.c.b16 %v268, %v267
  %v314 = vpack.c.b16 %v270, %v269
  %v315 = vpack.c.b16 %v272, %v271
  %v316 = vpack.c.b16 %v274, %v273
  %v317 = vpack.c.b16 %v276, %v275
  %v318 = vpack.c.b16 %v278, %v277
  %v319 = vpack.c.b16 %v280, %v279
  %v320 = vpack.c.b16 %v282, %v281
  %v321 = vpack.c.b16 %v284, %v283
  %v322 = vpack.c.b16 %v286, %v285
  %v323 = vpack.c.b16 %v288, %v287
  %v324 = vpack.c.b16 %v290, %v289
  %v325 = vpack.c.b16 %v292, %v291
  %v326 = vpack.c.b16 %v294, %v293
  %359 = vmatprep.subr.bf16.mxu0 0
  %360 = vmatpush1.bf16.msra.mxu0 %v295
  %361 = vmatprep.subr.bf16.mxu0 0
  %362 = vmatpush1.bf16.msra.mxu0 %v296
  %363 = vmatprep.subr.bf16.mxu0 0
  %364 = vmatpush1.bf16.msra.mxu0 %v297
  %365 = vmatprep.subr.bf16.mxu0 0
  %366 = vmatpush1.bf16.msra.mxu0 %v298
  %367 = vmatprep.subr.bf16.mxu0 0
  %368 = vmatpush1.bf16.msra.mxu0 %v299
  %369 = vmatprep.subr.bf16.mxu0 0
  %370 = vmatpush1.bf16.msra.mxu0 %v300
  %371 = vmatprep.subr.bf16.mxu0 0
  %372 = vmatpush1.bf16.msra.mxu0 %v301
  %373 = vmatprep.subr.bf16.mxu0 0
  %374 = vmatpush1.bf16.msra.mxu0 %v302
  %375 = vmatprep.subr.bf16.mxu0 0
  %376 = vmatpush1.bf16.msra.mxu0 %v303
  %377 = vmatprep.subr.bf16.mxu0 0
  %378 = vmatpush1.bf16.msra.mxu0 %v304
  %379 = vmatprep.subr.bf16.mxu0 0
  %380 = vmatpush1.bf16.msra.mxu0 %v305
  %381 = vmatprep.subr.bf16.mxu0 0
  %382 = vmatpush1.bf16.msra.mxu0 %v306
  %383 = vmatprep.subr.bf16.mxu0 0
  %384 = vmatpush1.bf16.msra.mxu0 %v307
  %385 = vmatprep.subr.bf16.mxu0 0
  %386 = vmatpush1.bf16.msra.mxu0 %v308
  %387 = vmatprep.subr.bf16.mxu0 0
  %388 = vmatpush1.bf16.msra.mxu0 %v309
  %389 = vmatprep.subr.bf16.mxu0 0
  %390 = vmatpush1.bf16.msra.mxu0 %v310
  %391 = vmatprep.mubr.bf16.mxu0 %v136
  %392 = vmatmul.mubr.bf16.gmra.mrb[0].mxu0 %v135
  %v393 = vpop.f32.mrb[0].mxu0
  %v394 = vadd.f32 0.0, %v393
  %v395 = vpop.f32.mrb[0].mxu0
  %v396 = vpop.f32.mrb[0].mxu0
  %v397 = vadd.f32 0.0, %v396
  %v398 = vpop.f32.mrb[0].mxu0
  %399 = vmatprep.mubr.bf16.mxu0 %v140
  %400 = vmatmul.mubr.bf16.gmra.mrb[0].mxu0 %v139
  %v401 = vpop.f32.mrb[0].mxu0
  %v402 = vadd.f32 0.0, %v401
  %v403 = vpop.f32.mrb[0].mxu0
  %v404 = vpop.f32.mrb[0].mxu0
  %v405 = vadd.f32 0.0, %v404
  %v406 = vpop.f32.mrb[0].mxu0
  %407 = vmatprep.mubr.bf16.mxu0 %v144
  %408 = vmatmul.mubr.bf16.gmra.mrb[0].mxu0 %v143
  %v409 = vpop.f32.mrb[0].mxu0
  %v410 = vadd.f32 0.0, %v409
  %v411 = vpop.f32.mrb[0].mxu0
  %v412 = vpop.f32.mrb[0].mxu0
  %v413 = vadd.f32 0.0, %v412
  %v414 = vpop.f32.mrb[0].mxu0
  %415 = vmatprep.mubr.bf16.mxu0 %v148
  %416 = vmatmul.mubr.bf16.gmra.mrb[0].mxu0 %v147
  %v417 = vpop.f32.mrb[0].mxu0
  %v418 = vadd.f32 0.0, %v417
  %v419 = vpop.f32.mrb[0].mxu0
  %v420 = vpop.f32.mrb[0].mxu0
  %v421 = vpop.f32.mrb[0].mxu0
  %422 = vdwg.mxu0
  %423 = vmatprep.subr.bf16.mxu0 0
  %424 = vmatpush1.bf16.msra.mxu0 %v311
  %425 = vmatprep.subr.bf16.mxu0 0
  %426 = vmatpush1.bf16.msra.mxu0 %v312
  %427 = vmatprep.subr.bf16.mxu0 0
  %428 = vmatpush1.bf16.msra.mxu0 %v313
  %429 = vmatprep.subr.bf16.mxu0 0
  %430 = vmatpush1.bf16.msra.mxu0 %v314
  %431 = vmatprep.subr.bf16.mxu0 0
  %432 = vmatpush1.bf16.msra.mxu0 %v315
  %433 = vmatprep.subr.bf16.mxu0 0
  %434 = vmatpush1.bf16.msra.mxu0 %v316
  %435 = vmatprep.subr.bf16.mxu0 0
  %436 = vmatpush1.bf16.msra.mxu0 %v317
  %437 = vmatprep.subr.bf16.mxu0 0
  %438 = vmatpush1.bf16.msra.mxu0 %v318
  %439 = vmatprep.subr.bf16.mxu0 0
  %440 = vmatpush1.bf16.msra.mxu0 %v319
  %441 = vmatprep.subr.bf16.mxu0 0
  %442 = vmatpush1.bf16.msra.mxu0 %v320
  %443 = vmatprep.subr.bf16.mxu0 0
  %444 = vmatpush1.bf16.msra.mxu0 %v321
  %445 = vmatprep.subr.bf16.mxu0 0
  %446 = vmatpush1.bf16.msra.mxu0 %v322
  %447 = vmatprep.subr.bf16.mxu0 0
  %448 = vmatpush1.bf16.msra.mxu0 %v323
  %449 = vmatprep.subr.bf16.mxu0 0
  %450 = vmatpush1.bf16.msra.mxu0 %v324
  %451 = vmatprep.subr.bf16.mxu0 0
  %452 = vmatpush1.bf16.msra.mxu0 %v325
  %453 = vmatprep.subr.bf16.mxu0 0
  %454 = vmatpush1.bf16.msra.mxu0 %v326
  %455 = vmatprep.mubr.bf16.mxu0 %v138
  %456 = vmatmul.mubr.bf16.gmra.mrb[0].mxu0 %v137
  %v457 = vpop.f32.mrb[0].mxu0
  %v458 = vadd.f32 %v394, %v457
  %v459 = vpop.f32.mrb[0].mxu0
  %v460 = vpop.f32.mrb[0].mxu0
  %v461 = vadd.f32 %v397, %v460
  %v462 = vpop.f32.mrb[0].mxu0
  %463 = vmatprep.mubr.bf16.mxu0 %v142
  %464 = vmatmul.mubr.bf16.gmra.mrb[0].mxu0 %v141
  %v465 = vpop.f32.mrb[0].mxu0
  %v466 = vadd.f32 %v402, %v465
  %v467 = vpop.f32.mrb[0].mxu0
  %v468 = vpop.f32.mrb[0].mxu0
  %v469 = vadd.f32 %v405, %v468
  %v470 = vpop.f32.mrb[0].mxu0
  %471 = vmatprep.mubr.bf16.mxu0 %v146
  %472 = vmatmul.mubr.bf16.gmra.mrb[0].mxu0 %v145
  %v473 = vpop.f32.mrb[0].mxu0
  %v474 = vadd.f32 %v410, %v473
  %v475 = vpop.f32.mrb[0].mxu0
  %v476 = vpop.f32.mrb[0].mxu0
  %v477 = vadd.f32 %v413, %v476
  %v478 = vpop.f32.mrb[0].mxu0
  %479 = vmatprep.mubr.bf16.mxu0 %v150
  %480 = vmatmul.mubr.bf16.gmra.mrb[0].mxu0 %v149
  %v481 = vpop.f32.mrb[0].mxu0
  %v482 = vadd.f32 %v418, %v481
  %v483 = vpop.f32.mrb[0].mxu0
  %v484 = vpop.f32.mrb[0].mxu0
  %v485 = vpop.f32.mrb[0].mxu0
  %486 = vdwg.mxu0
  %vm487 = vcmask 523264
  %v488 = vsel %vm487, %v458, 0.0
  %v489 = vsel %vm487, %v461, 0.0
  %v490 = vadd.f32 %v488, %v489
  %v491 = vsel %vm487, %v466, 0.0
  %v492 = vadd.f32 %v490, %v491
  %v493 = vsel %vm487, %v469, 0.0
  %v494 = vadd.f32 %v492, %v493
  %v495 = vsel %vm487, %v474, 0.0
  %v496 = vadd.f32 %v494, %v495
  %v497 = vsel %vm487, %v477, 0.0
  %v498 = vadd.f32 %v496, %v497
  %vm499 = vcmask 517120
  %v500 = vsel %vm499, %v482, 0.0
  %v501 = vadd.f32 %v498, %v500
  %v502 = vrot.slane %v501, 4
  %v503 = vadd.f32 %v501, %v502
  %v504 = vrot.slane %v503, 2
  %v505 = vadd.f32 %v503, %v504
  %v506 = vrot.slane %v505, 1
  %v507 = vadd.f32 %v505, %v506
  %v508 = vmul.f32 %v507, 0.02
  %v509 = vmul.f32 %v458, %v458
  %v510 = vmul.f32 %v461, %v461
  %v511 = vmul.f32 %v466, %v466
  %v512 = vmul.f32 %v469, %v469
  %v513 = vmul.f32 %v474, %v474
  %v514 = vmul.f32 %v477, %v477
  %v515 = vmul.f32 %v482, %v482
  %v516 = vsel %vm487, %v509, 0.0
  %v517 = vsel %vm487, %v510, 0.0
  %v518 = vadd.f32 %v516, %v517
  %v519 = vsel %vm487, %v511, 0.0
  %v520 = vadd.f32 %v518, %v519
  %v521 = vsel %vm487, %v512, 0.0
  %v522 = vadd.f32 %v520, %v521
  %v523 = vsel %vm487, %v513, 0.0
  %v524 = vadd.f32 %v522, %v523
  %v525 = vsel %vm487, %v514, 0.0
  %v526 = vadd.f32 %v524, %v525
  %v527 = vsel %vm499, %v515, 0.0
  %v528 = vadd.f32 %v526, %v527
  %v529 = vrot.slane %v528, 4
  %v530 = vadd.f32 %v528, %v529
  %v531 = vrot.slane %v530, 2
  %v532 = vadd.f32 %v530, %v531
  %v533 = vrot.slane %v532, 1
  %v534 = vadd.f32 %v532, %v533
  %v535 = vmul.f32 %v534, 0.02
  %v536 = vmul.f32 %v508, %v508
  %v537 = vsub.f32 %v535, %v536
  %v538 = vmax.f32 %v537, 0.0
  %v539 = vadd.f32 %v538, 1e-05
  %v540 = vrsqrt.pop %v539
  %v541 = vld [vmem:[%s2] sm:$0x1]
  %v542 = vmul.f32 %v541, %v540
  %v543 = vmul.f32 %v542, 0.25
  %v544 = vld [vmem:[%s2 + $0x1] sm:$0x1]
  %v545 = vmul.f32 %v544, 0.25
  %v546 = vmul.f32 %v508, %v543
  %v547 = vsub.f32 %v545, %v546
  %v548 = vlaneseq
  %v549 = vshrl.u32 %v548, 7
  %v550 = vsub.s32 0, %v549
  %v551 = vrot.slane %v543, %v550
  %v552 = vmul.f32 %v458, %v551
  %v553 = vmul.f32 %v461, %v551
  %v554 = vmul.f32 %v466, %v551
  %v555 = vmul.f32 %v469, %v551
  %v556 = vmul.f32 %v474, %v551
  %v557 = vmul.f32 %v477, %v551
  %v558 = vlaneseq
  %v559 = vshrl.u32 %v558, 7
  %v560 = vsub.s32 0, %v559
  %v561 = vrot.slane %v547, %v560
  %v562 = vadd.f32 %v552, %v561
  %v563 = vadd.f32 %v553, %v561
  %v564 = vadd.f32 %v554, %v561
  %v565 = vadd.f32 %v555, %v561
  %v566 = vadd.f32 %v556, %v561
  %v567 = vadd.f32 %v557, %v561
  %v568 = vmax.f32 %v562, 0.0
  %v569 = vmax.f32 %v563, 0.0
  %v570 = vmax.f32 %v564, 0.0
  %v571 = vmax.f32 %v565, 0.0
  %v572 = vmax.f32 %v566, 0.0
  %v573 = vmax.f32 %v567, 0.0
  %v580 = vcombine.high %v568, %v568
  %v582 = vunpack.c.l.s4 1966171168
  %v583 = vunpack.c.0.s8 %v582
  %v584 = vlaneseq
  %v585 = vshrl.u32 %v584, 7
  %v586 = vsub.s32 %v583, %v585
  %v587 = vrot.slane %v568, %v586
  %v589 = vunpack.c.l.s4 1966171168
  %v590 = vunpack.c.0.s8 %v589
  %v591 = vlaneseq
  %v592 = vshrl.u32 %v591, 7
  %v593 = vsub.s32 %v590, %v592
  %v594 = vrot.slane %v580, %v593
  %v595 = vcombine.high %v587, %v587
  %v596 = vcombine.high %v594, %v594
  %v598 = vunpack.c.l.s4 1966171168
  %v599 = vunpack.c.0.s8 %v598
  %v600 = vlaneseq
  %v601 = vshrl.u32 %v600, 7
  %v602 = vsub.s32 %v599, %v601
  %v603 = vrot.slane %v587, %v602
  %v605 = vunpack.c.l.s4 1966171168
  %v606 = vunpack.c.0.s8 %v605
  %v607 = vlaneseq
  %v608 = vshrl.u32 %v607, 7
  %v609 = vsub.s32 %v606, %v608
  %v610 = vrot.slane %v594, %v609
  %v612 = vunpack.c.l.s4 1966171168
  %v613 = vunpack.c.0.s8 %v612
  %v614 = vlaneseq
  %v615 = vshrl.u32 %v614, 7
  %v616 = vsub.s32 %v613, %v615
  %v617 = vrot.slane %v595, %v616
  %v619 = vunpack.c.l.s4 1966171168
  %v620 = vunpack.c.0.s8 %v619
  %v621 = vlaneseq
  %v622 = vshrl.u32 %v621, 7
  %v623 = vsub.s32 %v620, %v622
  %v624 = vrot.slane %v596, %v623
  %v625 = vcombine.high %v603, %v603
  %v626 = vcombine.high %v610, %v610
  %v627 = vcombine.high %v617, %v617
  %v628 = vcombine.high %v624, %v624
  %v629 = vcombine.high %v569, %v569
  %v631 = vunpack.c.l.s4 1966171168
  %v632 = vunpack.c.0.s8 %v631
  %v633 = vlaneseq
  %v634 = vshrl.u32 %v633, 7
  %v635 = vsub.s32 %v632, %v634
  %v636 = vrot.slane %v569, %v635
  %v638 = vunpack.c.l.s4 1966171168
  %v639 = vunpack.c.0.s8 %v638
  %v640 = vlaneseq
  %v641 = vshrl.u32 %v640, 7
  %v642 = vsub.s32 %v639, %v641
  %v643 = vrot.slane %v629, %v642
  %v644 = vcombine.high %v636, %v636
  %v645 = vcombine.high %v643, %v643
  %v647 = vunpack.c.l.s4 1966171168
  %v648 = vunpack.c.0.s8 %v647
  %v649 = vlaneseq
  %v650 = vshrl.u32 %v649, 7
  %v651 = vsub.s32 %v648, %v650
  %v652 = vrot.slane %v636, %v651
  %v654 = vunpack.c.l.s4 1966171168
  %v655 = vunpack.c.0.s8 %v654
  %v656 = vlaneseq
  %v657 = vshrl.u32 %v656, 7
  %v658 = vsub.s32 %v655, %v657
  %v659 = vrot.slane %v643, %v658
  %v661 = vunpack.c.l.s4 1966171168
  %v662 = vunpack.c.0.s8 %v661
  %v663 = vlaneseq
  %v664 = vshrl.u32 %v663, 7
  %v665 = vsub.s32 %v662, %v664
  %v666 = vrot.slane %v644, %v665
  %v668 = vunpack.c.l.s4 1966171168
  %v669 = vunpack.c.0.s8 %v668
  %v670 = vlaneseq
  %v671 = vshrl.u32 %v670, 7
  %v672 = vsub.s32 %v669, %v671
  %v673 = vrot.slane %v645, %v672
  %v674 = vcombine.high %v652, %v652
  %v675 = vcombine.high %v666, %v666
  %v676 = vcombine.high %v673, %v673
  %v678 = vunpack.c.l.s4 1966171168
  %v679 = vunpack.c.0.s8 %v678
  %v680 = vlaneseq
  %v681 = vshrl.u32 %v680, 7
  %v682 = vsub.s32 %v679, %v681
  %v683 = vrot.slane %v570, %v682
  %v684 = vcombine.high %v683, %v683
  %v686 = vunpack.c.l.s4 1966171168
  %v687 = vunpack.c.0.s8 %v686
  %v688 = vlaneseq
  %v689 = vshrl.u32 %v688, 7
  %v690 = vsub.s32 %v687, %v689
  %v691 = vrot.slane %v683, %v690
  %v693 = vunpack.c.l.s4 1966171168
  %v694 = vunpack.c.0.s8 %v693
  %v695 = vlaneseq
  %v696 = vshrl.u32 %v695, 7
  %v697 = vsub.s32 %v694, %v696
  %v698 = vrot.slane %v684, %v697
  %v699 = vcombine.high %v691, %v691
  %v700 = vcombine.high %v571, %v571
  %v702 = vunpack.c.l.s4 1966171168
  %v703 = vunpack.c.0.s8 %v702
  %v704 = vlaneseq
  %v705 = vshrl.u32 %v704, 7
  %v706 = vsub.s32 %v703, %v705
  %v707 = vrot.slane %v571, %v706
  %v709 = vunpack.c.l.s4 1966171168
  %v710 = vunpack.c.0.s8 %v709
  %v711 = vlaneseq
  %v712 = vshrl.u32 %v711, 7
  %v713 = vsub.s32 %v710, %v712
  %v714 = vrot.slane %v700, %v713
  %v715 = vcombine.high %v707, %v707
  %v716 = vcombine.high %v714, %v714
  %v718 = vunpack.c.l.s4 1966171168
  %v719 = vunpack.c.0.s8 %v718
  %v720 = vlaneseq
  %v721 = vshrl.u32 %v720, 7
  %v722 = vsub.s32 %v719, %v721
  %v723 = vrot.slane %v707, %v722
  %v725 = vunpack.c.l.s4 1966171168
  %v726 = vunpack.c.0.s8 %v725
  %v727 = vlaneseq
  %v728 = vshrl.u32 %v727, 7
  %v729 = vsub.s32 %v726, %v728
  %v730 = vrot.slane %v714, %v729
  %v732 = vunpack.c.l.s4 1966171168
  %v733 = vunpack.c.0.s8 %v732
  %v734 = vlaneseq
  %v735 = vshrl.u32 %v734, 7
  %v736 = vsub.s32 %v733, %v735
  %v737 = vrot.slane %v715, %v736
  %v739 = vunpack.c.l.s4 1966171168
  %v740 = vunpack.c.0.s8 %v739
  %v741 = vlaneseq
  %v742 = vshrl.u32 %v741, 7
  %v743 = vsub.s32 %v740, %v742
  %v744 = vrot.slane %v716, %v743
  %v745 = vcombine.high %v723, %v723
  %v746 = vcombine.high %v730, %v730
  %v747 = vcombine.high %v737, %v737
  %v748 = vcombine.high %v744, %v744
  %v749 = vcombine.high %v572, %v572
  %v751 = vunpack.c.l.s4 1966171168
  %v752 = vunpack.c.0.s8 %v751
  %v753 = vlaneseq
  %v754 = vshrl.u32 %v753, 7
  %v755 = vsub.s32 %v752, %v754
  %v756 = vrot.slane %v572, %v755
  %v758 = vunpack.c.l.s4 1966171168
  %v759 = vunpack.c.0.s8 %v758
  %v760 = vlaneseq
  %v761 = vshrl.u32 %v760, 7
  %v762 = vsub.s32 %v759, %v761
  %v763 = vrot.slane %v749, %v762
  %v764 = vcombine.high %v756, %v756
  %v765 = vcombine.high %v763, %v763
  %v767 = vunpack.c.l.s4 1966171168
  %v768 = vunpack.c.0.s8 %v767
  %v769 = vlaneseq
  %v770 = vshrl.u32 %v769, 7
  %v771 = vsub.s32 %v768, %v770
  %v772 = vrot.slane %v756, %v771
  %v774 = vunpack.c.l.s4 1966171168
  %v775 = vunpack.c.0.s8 %v774
  %v776 = vlaneseq
  %v777 = vshrl.u32 %v776, 7
  %v778 = vsub.s32 %v775, %v777
  %v779 = vrot.slane %v763, %v778
  %v781 = vunpack.c.l.s4 1966171168
  %v782 = vunpack.c.0.s8 %v781
  %v783 = vlaneseq
  %v784 = vshrl.u32 %v783, 7
  %v785 = vsub.s32 %v782, %v784
  %v786 = vrot.slane %v764, %v785
  %v788 = vunpack.c.l.s4 1966171168
  %v789 = vunpack.c.0.s8 %v788
  %v790 = vlaneseq
  %v791 = vshrl.u32 %v790, 7
  %v792 = vsub.s32 %v789, %v791
  %v793 = vrot.slane %v765, %v792
  %v794 = vcombine.high %v779, %v779
  %v795 = vcombine.high %v786, %v786
  %v797 = vunpack.c.l.s4 1966171168
  %v798 = vunpack.c.0.s8 %v797
  %v799 = vlaneseq
  %v800 = vshrl.u32 %v799, 7
  %v801 = vsub.s32 %v798, %v800
  %v802 = vrot.slane %v573, %v801
  %v803 = vcombine.high %v802, %v802
  %v805 = vunpack.c.l.s4 1966171168
  %v806 = vunpack.c.0.s8 %v805
  %v807 = vlaneseq
  %v808 = vshrl.u32 %v807, 7
  %v809 = vsub.s32 %v806, %v808
  %v810 = vrot.slane %v802, %v809
  %v812 = vunpack.c.l.s4 1966171168
  %v813 = vunpack.c.0.s8 %v812
  %v814 = vlaneseq
  %v815 = vshrl.u32 %v814, 7
  %v816 = vsub.s32 %v813, %v815
  %v817 = vrot.slane %v803, %v816
  %v818 = vcombine.high %v810, %v810
  %v819 = vcombine.high %v817, %v817
  %v852 = vadd.f32 %v603, %v624
  %v853 = vadd.f32 %v617, %v626
  %v854 = vadd.f32 %v625, %v628
  %v855 = vadd.f32 %v627, %v652
  %v856 = vadd.f32 %v674, %v676
  %v857 = vadd.f32 %v675, %v691
  %v858 = vadd.f32 %v659, %v698
  %v859 = vadd.f32 %v673, %v699
  %v860 = vadd.f32 %v737, %v746
  %v861 = vadd.f32 %v745, %v748
  %v862 = vadd.f32 %v747, %v772
  %v863 = vadd.f32 %v730, %v786
  %v864 = vadd.f32 %v795, %v810
  %v865 = vadd.f32 %v779, %v817
  %v866 = vadd.f32 %v793, %v818
  %v867 = vadd.f32 %v794, %v819
  %v868 = vadd.f32 %v852, %v853
  %v869 = vadd.f32 %v854, %v855
  %v870 = vadd.f32 %v856, %v857
  %v871 = vadd.f32 %v858, %v859
  %v872 = vadd.f32 %v860, %v861
  %v873 = vadd.f32 %v862, %v863
  %v874 = vadd.f32 %v864, %v865
  %v875 = vadd.f32 %v866, %v867
  %v884 = vcombine.low %v868, %v869
  %v886 = vunpack.c.l.s4 1966171168
  %v887 = vunpack.c.0.s8 %v886
  %v888 = vlaneseq
  %v889 = vshrl.u32 %v888, 7
  %v890 = vsub.s32 %v887, %v889
  %v891 = vrot.slane %v884, %v890
  %v893 = vunpack.c.l.s4 1966171168
  %v894 = vunpack.c.0.s8 %v893
  %v895 = vlaneseq
  %v896 = vshrl.u32 %v895, 7
  %v897 = vsub.s32 %v894, %v896
  %v898 = vrot.slane %v891, %v897
  %v899 = vcombine.low %v870, %v871
  %v901 = vunpack.c.l.s4 1966171168
  %v902 = vunpack.c.0.s8 %v901
  %v903 = vlaneseq
  %v904 = vshrl.u32 %v903, 7
  %v905 = vsub.s32 %v902, %v904
  %v906 = vrot.slane %v899, %v905
  %v908 = vunpack.c.l.s4 1966171168
  %v909 = vunpack.c.0.s8 %v908
  %v910 = vlaneseq
  %v911 = vshrl.u32 %v910, 7
  %v912 = vsub.s32 %v909, %v911
  %v913 = vrot.slane %v906, %v912
  %v914 = vcombine.low %v872, %v873
  %v916 = vunpack.c.l.s4 1966171168
  %v917 = vunpack.c.0.s8 %v916
  %v918 = vlaneseq
  %v919 = vshrl.u32 %v918, 7
  %v920 = vsub.s32 %v917, %v919
  %v921 = vrot.slane %v914, %v920
  %v923 = vunpack.c.l.s4 1966171168
  %v924 = vunpack.c.0.s8 %v923
  %v925 = vlaneseq
  %v926 = vshrl.u32 %v925, 7
  %v927 = vsub.s32 %v924, %v926
  %v928 = vrot.slane %v921, %v927
  %v929 = vcombine.low %v874, %v875
  %v931 = vunpack.c.l.s4 1966171168
  %v932 = vunpack.c.0.s8 %v931
  %v933 = vlaneseq
  %v934 = vshrl.u32 %v933, 7
  %v935 = vsub.s32 %v932, %v934
  %v936 = vrot.slane %v929, %v935
  %v938 = vunpack.c.l.s4 1966171168
  %v939 = vunpack.c.0.s8 %v938
  %v940 = vlaneseq
  %v941 = vshrl.u32 %v940, 7
  %v942 = vsub.s32 %v939, %v941
  %v943 = vrot.slane %v936, %v942
  %948 = vst.msk [vmem:[%s3] sm:$0x3] %vm499, %v898
  %949 = vst.msk [vmem:[%s3 + $0x2] sm:$0x3] %vm499, %v913
  %950 = vst.msk [vmem:[%s3 + $0x4] sm:$0x3] %vm499, %v928
  %951 = vst.msk [vmem:[%s3 + $0x6] sm:$0x3] %vm499, %v943
  // Predicated region
  $region14: #{encoder_forward.4} parent=0 // pred_check
    _
  $region15: #{encoder_forward.4} parent=0 // pred_check_branch
    %953 = sbr.rel (0) target = $region17
  $region16: #{encoder_forward.4} parent=0 // pred_region
    _
  $region17: #{encoder_forward.4} parent=0 // pred_fallthru
    _
  // Predicated region
  $region18: #{encoder_forward.4} parent=0 // pred_check
    _
  $region19: #{encoder_forward.4} parent=0 // pred_check_branch
    %955 = sbr.rel (0) target = $region21
  $region20: #{encoder_forward.4} parent=0 // pred_region
    _
  $region21: #{encoder_forward.4} parent=0 // pred_fallthru
    _

// kernel: encoder_forward.5
$region0: #{encoder_forward.5}
  #allocation0 [shape = 'u32[]', space=smem, size = 0x4, offset = 0x4, fixed_abs, tag = 'smem constant byte address 0x4 - core index']
  #allocation1 [shape = 'u32[144,128]{1,0:T(1,128)}', space=vmem, size = 0x12000, scoped, tag = 'internal scratch']
  %s0 = inlined_call_operand.vmem [shape: bf16[8,1024], index: 0, kind: input, shape index: {}]
  %s1 = inlined_call_operand.vmem [shape: bf16[1024,128], index: 1, kind: input, shape index: {}]
  %s2 = inlined_call_operand.vmem [shape: f32[2,128], index: 2, kind: input, shape index: {}]
  %s3 = inlined_call_operand.hbm [shape: f32[2,1,1,128], index: 3, kind: output, shape index: {}]
  %s4 = sld [smem:[#allocation0]]
  $region22: #{encoder_forward.5} parent=0
    _
  %s6 = ssub.s32 1, %s4
  %s7 = scalar_select 0, %s6, %s4
  $region1: #{encoder_forward.5} parent=0
    #allocation2 [shape = 'u8[1024]{0}', space=vmem, size = 0x400, scoped, tag = 'output window, operand 0, single buffered']
    #allocation3 [shape = 's32[1]{0}', space=sflag, size = 0x4, scoped, tag = 'scoped memory for encoder_forward.5']
    %8 = vsyncpa [#allocation3], 0
    // Predicated region
    $region2: #{encoder_forward.5} parent=1 // pred_check
      _
    $region3: #{encoder_forward.5} parent=1 // pred_check_branch
      %10 = sbr.rel (0) target = $region5
    $region4: #{encoder_forward.5} parent=1 // pred_region
      _
    $region5: #{encoder_forward.5} parent=1 // pred_fallthru
      _
    // Predicated region
    $region6: #{encoder_forward.5} parent=1 // pred_check
      _
    $region7: #{encoder_forward.5} parent=1 // pred_check_branch
      %12 = sbr.rel (0) target = $region9
    $region8: #{encoder_forward.5} parent=1 // pred_region
      _
    $region9: #{encoder_forward.5} parent=1 // pred_fallthru
      _
    // Predicated region
    $region10: #{encoder_forward.5} parent=1 // pred_check
      _
    $region11: #{encoder_forward.5} parent=1 // pred_check_branch
      %14 = sbr.rel (0) target = $region13
    $region12: #{encoder_forward.5} parent=1 // pred_region
      _
    $region13: #{encoder_forward.5} parent=1 // pred_fallthru
      _
    %v16 = vld [vmem:[%s0] sm:$0xff]
    %v17 = vld [vmem:[%s0 + $0x8] sm:$0xff]
    %v18 = vld [vmem:[%s0 + $0x10] sm:$0xff]
    %v19 = vld [vmem:[%s0 + $0x18] sm:$0xff]
    %v20 = vld [vmem:[%s1] sm:$0xf]
    %v21 = vld [vmem:[%s1 + $0x4] sm:$0xf]
    %v22 = vld [vmem:[%s1 + $0x8] sm:$0xf]
    %v23 = vld [vmem:[%s1 + $0xc] sm:$0xf]
    %v24 = vld [vmem:[%s1 + $0x10] sm:$0xf]
    %v25 = vld [vmem:[%s1 + $0x14] sm:$0xf]
    %v26 = vld [vmem:[%s1 + $0x18] sm:$0xf]
    %v27 = vld [vmem:[%s1 + $0x1c] sm:$0xf]
    %v28 = vld [vmem:[%s1 + $0x20] sm:$0xf]
    %v29 = vld [vmem:[%s1 + $0x24] sm:$0xf]
    %v30 = vld [vmem:[%s1 + $0x28] sm:$0xf]
    %v31 = vld [vmem:[%s1 + $0x2c] sm:$0xf]
    %v32 = vld [vmem:[%s1 + $0x30] sm:$0xf]
    %v33 = vld [vmem:[%s1 + $0x34] sm:$0xf]
    %v34 = vld [vmem:[%s1 + $0x38] sm:$0xf]
    %v35 = vld [vmem:[%s1 + $0x3c] sm:$0xf]
    %v36 = vld [vmem:[%s1 + $0x40] sm:$0xf]
    %v37 = vld [vmem:[%s1 + $0x44] sm:$0xf]
    %v38 = vld [vmem:[%s1 + $0x48] sm:$0xf]
    %v39 = vld [vmem:[%s1 + $0x4c] sm:$0xf]
    %v40 = vld [vmem:[%s1 + $0x50] sm:$0xf]
    %v41 = vld [vmem:[%s1 + $0x54] sm:$0xf]
    %v42 = vld [vmem:[%s1 + $0x58] sm:$0xf]
    %v43 = vld [vmem:[%s1 + $0x5c] sm:$0xf]
    %v44 = vld [vmem:[%s1 + $0x60] sm:$0xf]
    %v45 = vld [vmem:[%s1 + $0x64] sm:$0xf]
    %v46 = vld [vmem:[%s1 + $0x68] sm:$0xf]
    %v47 = vld [vmem:[%s1 + $0x6c] sm:$0xf]
    %v48 = vld [vmem:[%s1 + $0x70] sm:$0xf]
    %v49 = vld [vmem:[%s1 + $0x74] sm:$0xf]
    %v50 = vld [vmem:[%s1 + $0x78] sm:$0xf]
    %v51 = vld [vmem:[%s1 + $0x7c] sm:$0xf]
    %v52 = vld [vmem:[%s1 + $0x80] sm:$0xf]
    %v53 = vld [vmem:[%s1 + $0x84] sm:$0xf]
    %v54 = vld [vmem:[%s1 + $0x88] sm:$0xf]
    %v55 = vld [vmem:[%s1 + $0x8c] sm:$0xf]
    %v56 = vld [vmem:[%s1 + $0x90] sm:$0xf]
    %v57 = vld [vmem:[%s1 + $0x94] sm:$0xf]
    %v58 = vld [vmem:[%s1 + $0x98] sm:$0xf]
    %v59 = vld [vmem:[%s1 + $0x9c] sm:$0xf]
    %v60 = vld [vmem:[%s1 + $0xa0] sm:$0xf]
    %v61 = vld [vmem:[%s1 + $0xa4] sm:$0xf]
    %v62 = vld [vmem:[%s1 + $0xa8] sm:$0xf]
    %v63 = vld [vmem:[%s1 + $0xac] sm:$0xf]
    %v64 = vld [vmem:[%s1 + $0xb0] sm:$0xf]
    %v65 = vld [vmem:[%s1 + $0xb4] sm:$0xf]
    %v66 = vld [vmem:[%s1 + $0xb8] sm:$0xf]
    %v67 = vld [vmem:[%s1 + $0xbc] sm:$0xf]
    %v68 = vld [vmem:[%s1 + $0xc0] sm:$0xf]
    %v69 = vld [vmem:[%s1 + $0xc4] sm:$0xf]
    %v70 = vld [vmem:[%s1 + $0xc8] sm:$0xf]
    %v71 = vld [vmem:[%s1 + $0xcc] sm:$0xf]
    %v72 = vld [vmem:[%s1 + $0xd0] sm:$0xf]
    %v73 = vld [vmem:[%s1 + $0xd4] sm:$0xf]
    %v74 = vld [vmem:[%s1 + $0xd8] sm:$0xf]
    %v75 = vld [vmem:[%s1 + $0xdc] sm:$0xf]
    %v76 = vld [vmem:[%s1 + $0xe0] sm:$0xf]
    %v77 = vld [vmem:[%s1 + $0xe4] sm:$0xf]
    %v78 = vld [vmem:[%s1 + $0xe8] sm:$0xf]
    %v79 = vld [vmem:[%s1 + $0xec] sm:$0xf]
    %v80 = vld [vmem:[%s1 + $0xf0] sm:$0xf]
    %v81 = vld [vmem:[%s1 + $0xf4] sm:$0xf]
    %v82 = vld [vmem:[%s1 + $0xf8] sm:$0xf]
    %v83 = vld [vmem:[%s1 + $0xfc] sm:$0xf]
    %v84 = vld [vmem:[%s1 + $0x100] sm:$0xf]
    %v85 = vld [vmem:[%s1 + $0x104] sm:$0xf]
    %v86 = vld [vmem:[%s1 + $0x108] sm:$0xf]
    %v87 = vld [vmem:[%s1 + $0x10c] sm:$0xf]
    %v88 = vld [vmem:[%s1 + $0x110] sm:$0xf]
    %v89 = vld [vmem:[%s1 + $0x114] sm:$0xf]
    %v90 = vld [vmem:[%s1 + $0x118] sm:$0xf]
    %v91 = vld [vmem:[%s1 + $0x11c] sm:$0xf]
    %v92 = vld [vmem:[%s1 + $0x120] sm:$0xf]
    %v93 = vld [vmem:[%s1 + $0x124] sm:$0xf]
    %v94 = vld [vmem:[%s1 + $0x128] sm:$0xf]
    %v95 = vld [vmem:[%s1 + $0x12c] sm:$0xf]
    %v96 = vld [vmem:[%s1 + $0x130] sm:$0xf]
    %v97 = vld [vmem:[%s1 + $0x134] sm:$0xf]
    %v98 = vld [vmem:[%s1 + $0x138] sm:$0xf]
    %v99 = vld [vmem:[%s1 + $0x13c] sm:$0xf]
    %v100 = vld [vmem:[%s1 + $0x140] sm:$0xf]
    %v101 = vld [vmem:[%s1 + $0x144] sm:$0xf]
    %v102 = vld [vmem:[%s1 + $0x148] sm:$0xf]
    %v103 = vld [vmem:[%s1 + $0x14c] sm:$0xf]
    %v104 = vld [vmem:[%s1 + $0x150] sm:$0xf]
    %v105 = vld [vmem:[%s1 + $0x154] sm:$0xf]
    %v106 = vld [vmem:[%s1 + $0x158] sm:$0xf]
    %v107 = vld [vmem:[%s1 + $0x15c] sm:$0xf]
    %v108 = vld [vmem:[%s1 + $0x160] sm:$0xf]
    %v109 = vld [vmem:[%s1 + $0x164] sm:$0xf]
    %v110 = vld [vmem:[%s1 + $0x168] sm:$0xf]
    %v111 = vld [vmem:[%s1 + $0x16c] sm:$0xf]
    %v112 = vld [vmem:[%s1 + $0x170] sm:$0xf]
    %v113 = vld [vmem:[%s1 + $0x174] sm:$0xf]
    %v114 = vld [vmem:[%s1 + $0x178] sm:$0xf]
    %v115 = vld [vmem:[%s1 + $0x17c] sm:$0xf]
    %v116 = vld [vmem:[%s1 + $0x180] sm:$0xf]
    %v117 = vld [vmem:[%s1 + $0x184] sm:$0xf]
    %v118 = vld [vmem:[%s1 + $0x188] sm:$0xf]
    %v119 = vld [vmem:[%s1 + $0x18c] sm:$0xf]
    %v120 = vld [vmem:[%s1 + $0x190] sm:$0xf]
    %v121 = vld [vmem:[%s1 + $0x194] sm:$0xf]
    %v122 = vld [vmem:[%s1 + $0x198] sm:$0xf]
    %v123 = vld [vmem:[%s1 + $0x19c] sm:$0xf]
    %v124 = vld [vmem:[%s1 + $0x1a0] sm:$0xf]
    %v125 = vld [vmem:[%s1 + $0x1a4] sm:$0xf]
    %v126 = vld [vmem:[%s1 + $0x1a8] sm:$0xf]
    %v127 = vld [vmem:[%s1 + $0x1ac] sm:$0xf]
    %v128 = vld [vmem:[%s1 + $0x1b0] sm:$0xf]
    %v129 = vld [vmem:[%s1 + $0x1b4] sm:$0xf]
    %v130 = vld [vmem:[%s1 + $0x1b8] sm:$0xf]
    %v131 = vld [vmem:[%s1 + $0x1bc] sm:$0xf]
    %v132 = vld [vmem:[%s1 + $0x1c0] sm:$0xf]
    %v133 = vld [vmem:[%s1 + $0x1c4] sm:$0xf]
    %v134 = vld [vmem:[%s1 + $0x1c8] sm:$0xf]
    %v135 = vld [vmem:[%s1 + $0x1cc] sm:$0xf]
    %v136 = vld [vmem:[%s1 + $0x1d0] sm:$0xf]
    %v137 = vld [vmem:[%s1 + $0x1d4] sm:$0xf]
    %v138 = vld [vmem:[%s1 + $0x1d8] sm:$0xf]
    %v139 = vld [vmem:[%s1 + $0x1dc] sm:$0xf]
    %v140 = vld [vmem:[%s1 + $0x1e0] sm:$0xf]
    %v141 = vld [vmem:[%s1 + $0x1e4] sm:$0xf]
    %v142 = vld [vmem:[%s1 + $0x1e8] sm:$0xf]
    %v143 = vld [vmem:[%s1 + $0x1ec] sm:$0xf]
    %v144 = vld [vmem:[%s1 + $0x1f0] sm:$0xf]
    %v145 = vld [vmem:[%s1 + $0x1f4] sm:$0xf]
    %v146 = vld [vmem:[%s1 + $0x1f8] sm:$0xf]
    %v147 = vld [vmem:[%s1 + $0x1fc] sm:$0xf]
    %v152 = vunpack.c.l.b16 %v16
    %v153 = vunpack.c.h.b16 %v16
    %v154 = vunpack.c.l.b16 %v17
    %v155 = vunpack.c.h.b16 %v17
    %v156 = vunpack.c.l.b16 %v18
    %v157 = vunpack.c.h.b16 %v18
    %v158 = vunpack.c.l.b16 %v19
    %v159 = vunpack.c.h.b16 %v19
    %v160 = vpack.c.b16 %v152, %v152
    %v161 = vpack.c.b16 %v153, %v153
    %v162 = vpack.c.b16 %v154, %v154
    %v163 = vpack.c.b16 %v155, %v155
    %v164 = vpack.c.b16 %v156, %v156
    %v165 = vpack.c.b16 %v157, %v157
    %v166 = vpack.c.b16 %v158, %v158
    %v167 = vpack.c.b16 %v159, %v159
    %v304 = vunpack.c.l.b16 %v20
    %v305 = vunpack.c.l.b16 %v21
    %v306 = vunpack.c.l.b16 %v22
    %v307 = vunpack.c.l.b16 %v23
    %v308 = vunpack.c.l.b16 %v24
    %v309 = vunpack.c.l.b16 %v25
    %v310 = vunpack.c.l.b16 %v26
    %v311 = vunpack.c.l.b16 %v27
    %v312 = vunpack.c.l.b16 %v28
    %v313 = vunpack.c.l.b16 %v29
    %v314 = vunpack.c.l.b16 %v30
    %v315 = vunpack.c.l.b16 %v31
    %v316 = vunpack.c.l.b16 %v32
    %v317 = vunpack.c.l.b16 %v33
    %v318 = vunpack.c.l.b16 %v34
    %v319 = vunpack.c.l.b16 %v35
    %v320 = vunpack.c.l.b16 %v36
    %v321 = vunpack.c.l.b16 %v37
    %v322 = vunpack.c.l.b16 %v38
    %v323 = vunpack.c.l.b16 %v39
    %v324 = vunpack.c.l.b16 %v40
    %v325 = vunpack.c.l.b16 %v41
    %v326 = vunpack.c.l.b16 %v42
    %v327 = vunpack.c.l.b16 %v43
    %v328 = vunpack.c.l.b16 %v44
    %v329 = vunpack.c.l.b16 %v45
    %v330 = vunpack.c.l.b16 %v46
    %v331 = vunpack.c.l.b16 %v47
    %v332 = vunpack.c.l.b16 %v48
    %v333 = vunpack.c.l.b16 %v49
    %v334 = vunpack.c.l.b16 %v50
    %v335 = vunpack.c.l.b16 %v51
    %v336 = vunpack.c.l.b16 %v52
    %v337 = vunpack.c.l.b16 %v53
    %v338 = vunpack.c.l.b16 %v54
    %v339 = vunpack.c.l.b16 %v55
    %v340 = vunpack.c.l.b16 %v56
    %v341 = vunpack.c.l.b16 %v57
    %v342 = vunpack.c.l.b16 %v58
    %v343 = vunpack.c.l.b16 %v59
    %v344 = vunpack.c.l.b16 %v60
    %v345 = vunpack.c.l.b16 %v61
    %v346 = vunpack.c.l.b16 %v62
    %v347 = vunpack.c.l.b16 %v63
    %v348 = vunpack.c.l.b16 %v64
    %v349 = vunpack.c.l.b16 %v65
    %v350 = vunpack.c.l.b16 %v66
    %v351 = vunpack.c.l.b16 %v67
    %v352 = vunpack.c.l.b16 %v68
    %v353 = vunpack.c.l.b16 %v69
    %v354 = vunpack.c.l.b16 %v70
    %v355 = vunpack.c.l.b16 %v71
    %v356 = vunpack.c.l.b16 %v72
    %v357 = vunpack.c.l.b16 %v73
    %v358 = vunpack.c.l.b16 %v74
    %v359 = vunpack.c.l.b16 %v75
    %v360 = vunpack.c.l.b16 %v76
    %v361 = vunpack.c.l.b16 %v77
    %v362 = vunpack.c.l.b16 %v78
    %v363 = vunpack.c.l.b16 %v79
    %v364 = vunpack.c.l.b16 %v80
    %v365 = vunpack.c.l.b16 %v81
    %v366 = vunpack.c.l.b16 %v82
    %v367 = vunpack.c.l.b16 %v83
    %v368 = vunpack.c.l.b16 %v84
    %v369 = vunpack.c.l.b16 %v85
    %v370 = vunpack.c.l.b16 %v86
    %v371 = vunpack.c.l.b16 %v87
    %v372 = vunpack.c.l.b16 %v88
    %v373 = vunpack.c.l.b16 %v89
    %v374 = vunpack.c.l.b16 %v90
    %v375 = vunpack.c.l.b16 %v91
    %v376 = vunpack.c.l.b16 %v92
    %v377 = vunpack.c.l.b16 %v93
    %v378 = vunpack.c.l.b16 %v94
    %v379 = vunpack.c.l.b16 %v95
    %v380 = vunpack.c.l.b16 %v96
    %v381 = vunpack.c.l.b16 %v97
    %v382 = vunpack.c.l.b16 %v98
    %v383 = vunpack.c.l.b16 %v99
    %v384 = vunpack.c.l.b16 %v100
    %v385 = vunpack.c.l.b16 %v101
    %v386 = vunpack.c.l.b16 %v102
    %v387 = vunpack.c.l.b16 %v103
    %v388 = vunpack.c.l.b16 %v104
    %v389 = vunpack.c.l.b16 %v105
    %v390 = vunpack.c.l.b16 %v106
    %v391 = vunpack.c.l.b16 %v107
    %v392 = vunpack.c.l.b16 %v108
    %v393 = vunpack.c.l.b16 %v109
    %v394 = vunpack.c.l.b16 %v110
    %v395 = vunpack.c.l.b16 %v111
    %v396 = vunpack.c.l.b16 %v112
    %v397 = vunpack.c.l.b16 %v113
    %v398 = vunpack.c.l.b16 %v114
    %v399 = vunpack.c.l.b16 %v115
    %v400 = vunpack.c.l.b16 %v116
    %v401 = vunpack.c.l.b16 %v117
    %v402 = vunpack.c.l.b16 %v118
    %v403 = vunpack.c.l.b16 %v119
    %v404 = vunpack.c.l.b16 %v120
    %v405 = vunpack.c.l.b16 %v121
    %v406 = vunpack.c.l.b16 %v122
    %v407 = vunpack.c.l.b16 %v123
    %v408 = vunpack.c.l.b16 %v124
    %v409 = vunpack.c.l.b16 %v125
    %v410 = vunpack.c.l.b16 %v126
    %v411 = vunpack.c.l.b16 %v127
    %v412 = vunpack.c.l.b16 %v128
    %v413 = vunpack.c.l.b16 %v129
    %v414 = vunpack.c.l.b16 %v130
    %v415 = vunpack.c.l.b16 %v131
    %v416 = vunpack.c.l.b16 %v132
    %v417 = vunpack.c.l.b16 %v133
    %v418 = vunpack.c.l.b16 %v134
    %v419 = vunpack.c.l.b16 %v135
    %v420 = vunpack.c.l.b16 %v136
    %v421 = vunpack.c.l.b16 %v137
    %v422 = vunpack.c.l.b16 %v138
    %v423 = vunpack.c.l.b16 %v139
    %v424 = vunpack.c.l.b16 %v140
    %v425 = vunpack.c.l.b16 %v141
    %v426 = vunpack.c.l.b16 %v142
    %v427 = vunpack.c.l.b16 %v143
    %v428 = vunpack.c.l.b16 %v144
    %v429 = vunpack.c.l.b16 %v145
    %v430 = vunpack.c.l.b16 %v146
    %v431 = vunpack.c.l.b16 %v147
    %v432 = vpack.c.b16 %v305, %v304
    %v433 = vpack.c.b16 %v307, %v306
    %v434 = vpack.c.b16 %v309, %v308
    %v435 = vpack.c.b16 %v311, %v310
    %v436 = vpack.c.b16 %v313, %v312
    %v437 = vpack.c.b16 %v315, %v314
    %v438 = vpack.c.b16 %v317, %v316
    %v439 = vpack.c.b16 %v319, %v318
    %v440 = vpack.c.b16 %v321, %v320
    %v441 = vpack.c.b16 %v323, %v322
    %v442 = vpack.c.b16 %v325, %v324
    %v443 = vpack.c.b16 %v327, %v326
    %v444 = vpack.c.b16 %v329, %v328
    %v445 = vpack.c.b16 %v331, %v330
    %v446 = vpack.c.b16 %v333, %v332
    %v447 = vpack.c.b16 %v335, %v334
    %v448 = vpack.c.b16 %v337, %v336
    %v449 = vpack.c.b16 %v339, %v338
    %v450 = vpack.c.b16 %v341, %v340
    %v451 = vpack.c.b16 %v343, %v342
    %v452 = vpack.c.b16 %v345, %v344
    %v453 = vpack.c.b16 %v347, %v346
    %v454 = vpack.c.b16 %v349, %v348
    %v455 = vpack.c.b16 %v351, %v350
    %v456 = vpack.c.b16 %v353, %v352
    %v457 = vpack.c.b16 %v355, %v354
    %v458 = vpack.c.b16 %v357, %v356
    %v459 = vpack.c.b16 %v359, %v358
    %v460 = vpack.c.b16 %v361, %v360
    %v461 = vpack.c.b16 %v363, %v362
    %v462 = vpack.c.b16 %v365, %v364
    %v463 = vpack.c.b16 %v367, %v366
    %v464 = vpack.c.b16 %v369, %v368
    %v465 = vpack.c.b16 %v371, %v370
    %v466 = vpack.c.b16 %v373, %v372
    %v467 = vpack.c.b16 %v375, %v374
    %v468 = vpack.c.b16 %v377, %v376
    %v469 = vpack.c.b16 %v379, %v378
    %v470 = vpack.c.b16 %v381, %v380
    %v471 = vpack.c.b16 %v383, %v382
    %v472 = vpack.c.b16 %v385, %v384
    %v473 = vpack.c.b16 %v387, %v386
    %v474 = vpack.c.b16 %v389, %v388
    %v475 = vpack.c.b16 %v391, %v390
    %v476 = vpack.c.b16 %v393, %v392
    %v477 = vpack.c.b16 %v395, %v394
    %v478 = vpack.c.b16 %v397, %v396
    %v479 = vpack.c.b16 %v399, %v398
    %v480 = vpack.c.b16 %v401, %v400
    %v481 = vpack.c.b16 %v403, %v402
    %v482 = vpack.c.b16 %v405, %v404
    %v483 = vpack.c.b16 %v407, %v406
    %v484 = vpack.c.b16 %v409, %v408
    %v485 = vpack.c.b16 %v411, %v410
    %v486 = vpack.c.b16 %v413, %v412
    %v487 = vpack.c.b16 %v415, %v414
    %v488 = vpack.c.b16 %v417, %v416
    %v489 = vpack.c.b16 %v419, %v418
    %v490 = vpack.c.b16 %v421, %v420
    %v491 = vpack.c.b16 %v423, %v422
    %v492 = vpack.c.b16 %v425, %v424
    %v493 = vpack.c.b16 %v427, %v426
    %v494 = vpack.c.b16 %v429, %v428
    %v495 = vpack.c.b16 %v431, %v430
    %560 = vmatprep.subr.bf16.mxu0 0
    %561 = vmatpush1.bf16.msra.mxu0 %v432
    %562 = vmatprep.subr.bf16.mxu0 0
    %563 = vmatpush1.bf16.msra.mxu0 %v433
    %564 = vmatprep.subr.bf16.mxu0 0
    %565 = vmatpush1.bf16.msra.mxu0 %v434
    %566 = vmatprep.subr.bf16.mxu0 0
    %567 = vmatpush1.bf16.msra.mxu0 %v435
    %568 = vmatprep.subr.bf16.mxu0 0
    %569 = vmatpush1.bf16.msra.mxu0 %v436
    %570 = vmatprep.subr.bf16.mxu0 0
    %571 = vmatpush1.bf16.msra.mxu0 %v437
    %572 = vmatprep.subr.bf16.mxu0 0
    %573 = vmatpush1.bf16.msra.mxu0 %v438
    %574 = vmatprep.subr.bf16.mxu0 0
    %575 = vmatpush1.bf16.msra.mxu0 %v439
    %576 = vmatprep.subr.bf16.mxu0 0
    %577 = vmatpush1.bf16.msra.mxu0 %v440
    %578 = vmatprep.subr.bf16.mxu0 0
    %579 = vmatpush1.bf16.msra.mxu0 %v441
    %580 = vmatprep.subr.bf16.mxu0 0
    %581 = vmatpush1.bf16.msra.mxu0 %v442
    %582 = vmatprep.subr.bf16.mxu0 0
    %583 = vmatpush1.bf16.msra.mxu0 %v443
    %584 = vmatprep.subr.bf16.mxu0 0
    %585 = vmatpush1.bf16.msra.mxu0 %v444
    %586 = vmatprep.subr.bf16.mxu0 0
    %587 = vmatpush1.bf16.msra.mxu0 %v445
    %588 = vmatprep.subr.bf16.mxu0 0
    %589 = vmatpush1.bf16.msra.mxu0 %v446
    %590 = vmatprep.subr.bf16.mxu0 0
    %591 = vmatpush1.bf16.msra.mxu0 %v447
    %592 = vmatprep.mubr.bf16.mxu0 %v161
    %593 = vmatmul.mubr.bf16.gmra.mrb[0].mxu0 %v160
    %v594 = vpop.f32.mrb[0].mxu0
    %v595 = vadd.f32 0.0, %v594
    %v596 = vpop.f32.mrb[0].mxu0
    %v597 = vpop.f32.mrb[0].mxu0
    %v598 = vpop.f32.mrb[0].mxu0
    %599 = vdwg.mxu0
    %600 = vmatprep.subr.bf16.mxu0 0
    %601 = vmatpush1.bf16.msra.mxu0 %v448
    %602 = vmatprep.subr.bf16.mxu0 0
    %603 = vmatpush1.bf16.msra.mxu0 %v449
    %604 = vmatprep.subr.bf16.mxu0 0
    %605 = vmatpush1.bf16.msra.mxu0 %v450
    %606 = vmatprep.subr.bf16.mxu0 0
    %607 = vmatpush1.bf16.msra.mxu0 %v451
    %608 = vmatprep.subr.bf16.mxu0 0
    %609 = vmatpush1.bf16.msra.mxu0 %v452
    %610 = vmatprep.subr.bf16.mxu0 0
    %611 = vmatpush1.bf16.msra.mxu0 %v453
    %612 = vmatprep.subr.bf16.mxu0 0
    %613 = vmatpush1.bf16.msra.mxu0 %v454
    %614 = vmatprep.subr.bf16.mxu0 0
    %615 = vmatpush1.bf16.msra.mxu0 %v455
    %616 = vmatprep.subr.bf16.mxu0 0
    %617 = vmatpush1.bf16.msra.mxu0 %v456
    %618 = vmatprep.subr.bf16.mxu0 0
    %619 = vmatpush1.bf16.msra.mxu0 %v457
    %620 = vmatprep.subr.bf16.mxu0 0
    %621 = vmatpush1.bf16.msra.mxu0 %v458
    %622 = vmatprep.subr.bf16.mxu0 0
    %623 = vmatpush1.bf16.msra.mxu0 %v459
    %624 = vmatprep.subr.bf16.mxu0 0
    %625 = vmatpush1.bf16.msra.mxu0 %v460
    %626 = vmatprep.subr.bf16.mxu0 0
    %627 = vmatpush1.bf16.msra.mxu0 %v461
    %628 = vmatprep.subr.bf16.mxu0 0
    %629 = vmatpush1.bf16.msra.mxu0 %v462
    %630 = vmatprep.subr.bf16.mxu0 0
    %631 = vmatpush1.bf16.msra.mxu0 %v463
    %632 = vmatprep.mubr.bf16.mxu0 %v163
    %633 = vmatmul.mubr.bf16.gmra.mrb[0].mxu0 %v162
    %v634 = vpop.f32.mrb[0].mxu0
    %v635 = vadd.f32 %v595, %v634
    %v636 = vpop.f32.mrb[0].mxu0
    %v637 = vpop.f32.mrb[0].mxu0
    %v638 = vpop.f32.mrb[0].mxu0
    %639 = vdwg.mxu0
    %640 = vmatprep.subr.bf16.mxu0 0
    %641 = vmatpush1.bf16.msra.mxu0 %v464
    %642 = vmatprep.subr.bf16.mxu0 0
    %643 = vmatpush1.bf16.msra.mxu0 %v465
    %644 = vmatprep.subr.bf16.mxu0 0
    %645 = vmatpush1.bf16.msra.mxu0 %v466
    %646 = vmatprep.subr.bf16.mxu0 0
    %647 = vmatpush1.bf16.msra.mxu0 %v467
    %648 = vmatprep.subr.bf16.mxu0 0
    %649 = vmatpush1.bf16.msra.mxu0 %v468
    %650 = vmatprep.subr.bf16.mxu0 0
    %651 = vmatpush1.bf16.msra.mxu0 %v469
    %652 = vmatprep.subr.bf16.mxu0 0
    %653 = vmatpush1.bf16.msra.mxu0 %v470
    %654 = vmatprep.subr.bf16.mxu0 0
    %655 = vmatpush1.bf16.msra.mxu0 %v471
    %656 = vmatprep.subr.bf16.mxu0 0
    %657 = vmatpush1.bf16.msra.mxu0 %v472
    %658 = vmatprep.subr.bf16.mxu0 0
    %659 = vmatpush1.bf16.msra.mxu0 %v473
    %660 = vmatprep.subr.bf16.mxu0 0
    %661 = vmatpush1.bf16.msra.mxu0 %v474
    %662 = vmatprep.subr.bf16.mxu0 0
    %663 = vmatpush1.bf16.msra.mxu0 %v475
    %664 = vmatprep.subr.bf16.mxu0 0
    %665 = vmatpush1.bf16.msra.mxu0 %v476
    %666 = vmatprep.subr.bf16.mxu0 0
    %667 = vmatpush1.bf16.msra.mxu0 %v477
    %668 = vmatprep.subr.bf16.mxu0 0
    %669 = vmatpush1.bf16.msra.mxu0 %v478
    %670 = vmatprep.subr.bf16.mxu0 0
    %671 = vmatpush1.bf16.msra.mxu0 %v479
    %672 = vmatprep.mubr.bf16.mxu0 %v165
    %673 = vmatmul.mubr.bf16.gmra.mrb[0].mxu0 %v164
    %v674 = vpop.f32.mrb[0].mxu0
    %v675 = vadd.f32 %v635, %v674
    %v676 = vpop.f32.mrb[0].mxu0
    %v677 = vpop.f32.mrb[0].mxu0
    %v678 = vpop.f32.mrb[0].mxu0
    %679 = vdwg.mxu0
    %680 = vmatprep.subr.bf16.mxu0 0
    %681 = vmatpush1.bf16.msra.mxu0 %v480
    %682 = vmatprep.subr.bf16.mxu0 0
    %683 = vmatpush1.bf16.msra.mxu0 %v481
    %684 = vmatprep.subr.bf16.mxu0 0
    %685 = vmatpush1.bf16.msra.mxu0 %v482
    %686 = vmatprep.subr.bf16.mxu0 0
    %687 = vmatpush1.bf16.msra.mxu0 %v483
    %688 = vmatprep.subr.bf16.mxu0 0
    %689 = vmatpush1.bf16.msra.mxu0 %v484
    %690 = vmatprep.subr.bf16.mxu0 0
    %691 = vmatpush1.bf16.msra.mxu0 %v485
    %692 = vmatprep.subr.bf16.mxu0 0
    %693 = vmatpush1.bf16.msra.mxu0 %v486
    %694 = vmatprep.subr.bf16.mxu0 0
    %695 = vmatpush1.bf16.msra.mxu0 %v487
    %696 = vmatprep.subr.bf16.mxu0 0
    %697 = vmatpush1.bf16.msra.mxu0 %v488
    %698 = vmatprep.subr.bf16.mxu0 0
    %699 = vmatpush1.bf16.msra.mxu0 %v489
    %700 = vmatprep.subr.bf16.mxu0 0
    %701 = vmatpush1.bf16.msra.mxu0 %v490
    %702 = vmatprep.subr.bf16.mxu0 0
    %703 = vmatpush1.bf16.msra.mxu0 %v491
    %704 = vmatprep.subr.bf16.mxu0 0
    %705 = vmatpush1.bf16.msra.mxu0 %v492
    %706 = vmatprep.subr.bf16.mxu0 0
    %707 = vmatpush1.bf16.msra.mxu0 %v493
    %708 = vmatprep.subr.bf16.mxu0 0
    %709 = vmatpush1.bf16.msra.mxu0 %v494
    %710 = vmatprep.subr.bf16.mxu0 0
    %711 = vmatpush1.bf16.msra.mxu0 %v495
    %712 = vmatprep.mubr.bf16.mxu0 %v167
    %713 = vmatmul.mubr.bf16.gmra.mrb[0].mxu0 %v166
    %v714 = vpop.f32.mrb[0].mxu0
    %v715 = vadd.f32 %v675, %v714
    %v716 = vpop.f32.mrb[0].mxu0
    %v717 = vpop.f32.mrb[0].mxu0
    %v718 = vpop.f32.mrb[0].mxu0
    %719 = vdwg.mxu0
    %v720 = vrot.slane %v715, 4
    %v721 = vadd.f32 %v715, %v720
    %v722 = vrot.slane %v721, 2
    %v723 = vadd.f32 %v721, %v722
    %v724 = vrot.slane %v723, 1
    %v725 = vadd.f32 %v723, %v724
    %v726 = vmul.f32 %v725, 0.125
    %v727 = vmul.f32 %v715, %v715
    %v728 = vrot.slane %v727, 4
    %v729 = vadd.f32 %v727, %v728
    %v730 = vrot.slane %v729, 2
    %v731 = vadd.f32 %v729, %v730
    %v732 = vrot.slane %v731, 1
    %v733 = vadd.f32 %v731, %v732
    %v734 = vmul.f32 %v733, 0.125
    %v735 = vmul.f32 %v726, %v726
    %v736 = vsub.f32 %v734, %v735
    %v737 = vmax.f32 %v736, 0.0
    %v738 = vadd.f32 %v737, 1e-05
    %v739 = vrsqrt.pop %v738
    %v740 = vld [vmem:[%s2] sm:$0x1]
    %v741 = vmul.f32 %v740, %v739
    %v742 = vmul.f32 %v741, 0.25
    %v743 = vld [vmem:[%s2 + $0x1] sm:$0x1]
    %v744 = vmul.f32 %v743, 0.25
    %v745 = vmul.f32 %v726, %v742
    %v746 = vsub.f32 %v744, %v745
    %v747 = vlaneseq
    %v748 = vshrl.u32 %v747, 7
    %v749 = vsub.s32 0, %v748
    %v750 = vrot.slane %v742, %v749
    %v751 = vmul.f32 %v715, %v750
    %v752 = vlaneseq
    %v753 = vshrl.u32 %v752, 7
    %v754 = vsub.s32 0, %v753
    %v755 = vrot.slane %v746, %v754
    %v756 = vadd.f32 %v751, %v755
    %v757 = vmax.f32 %v756, 0.0
    %v759 = vcombine.high %v757, %v757
    %v761 = vunpack.c.l.s4 1983009808
    %v762 = vunpack.c.0.s8 %v761
    %v763 = vlaneseq
    %v764 = vshrl.u32 %v763, 7
    %v765 = vsub.s32 %v762, %v764
    %v766 = vrot.slane %v757, %v765
    %v768 = vunpack.c.l.s4 1983009808
    %v769 = vunpack.c.0.s8 %v768
    %v770 = vlaneseq
    %v771 = vshrl.u32 %v770, 7
    %v772 = vsub.s32 %v769, %v771
    %v773 = vrot.slane %v759, %v772
    %v774 = vcombine.high %v766, %v766
    %v775 = vcombine.high %v773, %v773
    %v780 = vadd.f32 %v766, %v774
    %v781 = vadd.f32 %v773, %v775
    %v784 = vrot.slane %v780, 7
    %v785 = vrot.slane %v784, 2
    %v786 = vrot.slane %v781, 7
    %v787 = vrot.slane %v786, 2
    %v790 = vadd.f32 %v780, %v785
    %v791 = vadd.f32 %v781, %v787
    %792 = vst [vmem:[#allocation2] sm:$0x1] %v790
    %793 = vst [vmem:[#allocation2 + $0x1] sm:$0x1] %v791
    // Predicated region
    $region14: #{encoder_forward.5} parent=1 // pred_check
      _
    $region15: #{encoder_forward.5} parent=1 // pred_check_branch
      %795 = sbr.rel (0) target = $region17
    $region16: #{encoder_forward.5} parent=1 // pred_region
      %s797 = ssub.s32 32, 32
      %798 = vsyncadd [#allocation3], %s797
      %s799 = sshll.u32 [#allocation2], 4
      %s800 = int_to_ptr.vmem [resolvable:$true] %s799
      %805 = dma.vmem_to_hbm [thread:$0]  %s800, 32, %s3, [#allocation3], 16, 16, 1
    $region17: #{encoder_forward.5} parent=1 // pred_fallthru
      _
    // Predicated region
    $region18: #{encoder_forward.5} parent=1 // pred_check
      _
    $region19: #{encoder_forward.5} parent=1 // pred_check_branch
      %807 = sbr.rel (0) target = $region21
    $region20: #{encoder_forward.5} parent=1 // pred_region
      %808 = dma.done [#allocation3], 32
    $region21: #{encoder_forward.5} parent=1 // pred_fallthru
      _
    %809 = vsyncpa [#allocation3], 1

</llo_original>
